<compile_context>
chip_gen: v5e
topology: v5e:2x2
jax: 0.10.0
libtpu: 0.0.40
codegen_flags: <defaults>
</compile_context>

<pallas_src>
import functools

import numpy as np
import jax
import jax.numpy as jnp
from jax.experimental import pallas as pl
from jax.experimental.pallas import tpu as pltpu


# ----------------------------------------------------------------------------
# Fused decoder kernel (one grid step == TB batch elements)
# ----------------------------------------------------------------------------
def _decoder_kernel(lat_ref, w1q_ref, b1t_ref, g2_ref, b2t_ref, g3_ref,
                    b3_ref, s2_ref, o_ref, xps_ref, *, latent_dim, tb):
    g = pl.program_id(0)
    zrow = jnp.zeros((1, 224), jnp.bfloat16)
    b1t = b1t_ref[...]                                   # (7, 224) f32
    b2t = b2t_ref[...]                                   # (1, 224) f32

    # ---- l1: Linear(latent -> 32*7*7) + ReLU, produced directly in the
    # NHWC-flattened (7, 7*32) layout (view + NCHW->NHWC folded into the
    # pre-packed weight).  K = latent_dim = 8 is far below MXU depth, so use
    # unrolled scalar-broadcast FMAs (VPU) with the latent read from SMEM.
    # Each element is written into THREE row-shifted buffers xps[s], s=0..2:
    #   xps[s][i*7 + m, :] = zero-row-padded activation row (m + s - 1),
    # so the l2 matmul LHS is a clean 2-D (TB*7, 224) slice per row tap.
    for i in range(tb):
        base = (g * tb + i) * latent_dim
        acc = b1t
        for k in range(latent_dim):
            acc = acc + lat_ref[base + k] * w1q_ref[k]
        z1 = jnp.maximum(acc, 0.0).astype(jnp.bfloat16)  # (7, 224)
        r0 = i * 7
        xps_ref[1, r0:r0 + 7, :] = z1
        xps_ref[0, r0:r0 + 1, :] = zrow                  # top padding row
        xps_ref[0, r0 + 1:r0 + 7, :] = z1[0:6]
        xps_ref[2, r0:r0 + 6, :] = z1[1:7]
        xps_ref[2, r0 + 6:r0 + 7, :] = zrow              # bottom padding row

    # ---- l2: ConvTranspose2d(32->16, k=4, s=2, p=1) + ReLU.
    # Column-folded sub-pixel form: per output-row parity rh, two dense
    # batched matmuls (TB*7, 224) x (224, 14*16); column scatter (2n+rw) and
    # the 4x4 kernel taps are folded into the packed weight g2.
    y1 = []
    for rh in range(2):
        acc = jnp.zeros((tb * 7, 224), jnp.float32)
        for dh in range(2):
            acc = acc + jnp.dot(xps_ref[rh + dh], g2_ref[rh * 2 + dh],
                                preferred_element_type=jnp.float32)
        y1.append(jnp.maximum(acc + b2t, 0.0).astype(jnp.bfloat16))

    # ---- l3 (a.k.a. the undefined `decoder_deconv2`):
    # ConvTranspose2d(16->1, k=4, s=2, p=1) + sigmoid, same column-folded form.
    # The row-shifted / row-interleaved LHS slabs xq[s2] (TB*14, 224) are built
    # from the two parity outputs with exact 0/1 selection matmuls (no
    # reshape / transpose / strided scatter in-kernel).
    acc3 = [jnp.zeros((tb * 14, 28), jnp.float32) for _ in range(2)]
    for s2 in range(3):
        xq = (jnp.dot(s2_ref[s2, 0], y1[0], preferred_element_type=jnp.float32)
              + jnp.dot(s2_ref[s2, 1], y1[1],
                        preferred_element_type=jnp.float32)
              ).astype(jnp.bfloat16)                      # (TB*14, 224)
        for rh in range(2):
            dh = s2 - rh
            if dh in (0, 1):
                acc3[rh] = acc3[rh] + jnp.dot(
                    xq, g3_ref[rh * 2 + dh], preferred_element_type=jnp.float32)

    # Lane-concat the two output-row parities -> (TB*14, 56) slab; the
    # natural-row-order (B,1,28,28) view is a free host-side reshape.
    out = jax.nn.sigmoid(
        jnp.concatenate([acc3[0], acc3[1]], axis=1) + b3_ref[0])
    o_ref[...] = out.astype(o_ref.dtype)


# ----------------------------------------------------------------------------
# One-time host-side weight pre-packing
# ----------------------------------------------------------------------------
def pack_decoder_params(params, tb):
    """Pack the PyTorch-layout parameters for the fused kernel (done once)."""
    W1, b1, W2, b2, W3, b3 = (np.asarray(p, np.float32) for p in params)
    L = W1.shape[1]

    # Linear: permute rows so the FMA loop directly produces the NHWC (7, 7*32)
    # activation (fuses view(B,32,7,7) + NCHW->NHWC transpose into the weight).
    w1q = np.transpose(W1.reshape(32, 7, 7, L), (3, 1, 2, 0)).reshape(L, 7, 224)
    b1t = np.transpose(b1.reshape(32, 7, 7), (1, 2, 0)).reshape(7, 224)

    # Column-folded sub-pixel decomposition of ConvTranspose2d(k=4, s=2, p=1):
    #   y[2m+rh, 2n+rw, co] = sum_{dh, iw, ci}
    #       xpad_rows[m+rh+dh, iw, ci] * G[rh,dh][iw*cin+ci, (2n+rw)*cout+co]
    # with G[rh,dh][iw*cin+ci, (2n+rw)*cout+co] = W[ci, co, 3-rh-2dh, 3-rw-2dw]
    # where dw = iw - n - rw + 1 (term dropped unless dw in {0,1}).
    def pack_deconv(w, win, cin, cout):
        G = np.zeros((2, 2, win * cin, 2 * win * cout), np.float32)
        for rh in range(2):
            for dh in range(2):
                kh = 3 - rh - 2 * dh
                for rw in range(2):
                    for dw in range(2):
                        kw = 3 - rw - 2 * dw
                        for n in range(win):
                            iw = n + rw + dw - 1
                            if 0 <= iw < win:
                                G[rh, dh,
                                  iw * cin:(iw + 1) * cin,
                                  (2 * n + rw) * cout:(2 * n + rw + 1) * cout] \
                                    = w[:, :, kh, kw]
        return G.reshape(4, win * cin, 2 * win * cout)

    g2 = pack_deconv(W2, 7, 32, 16)      # (4, 224, 224)
    g3 = pack_deconv(W3, 14, 16, 1)      # (4, 224, 28)
    b2t = np.tile(b2, 14).reshape(1, 224)

    # 0/1 selection matrices building the row-shifted, row-interleaved l3 input
    # slab from the two l2 parity outputs:
    #   xq[s2][i*14+m, :] = y1_i[m+s2-1, :]  (zero when out of range)
    #   y1_i[2q+p, :]     = Y1_p[i*7+q, :]
    S = np.zeros((3, 2, tb * 14, tb * 7), np.float32)
    for s2 in range(3):
        for p in range(2):
            for i in range(tb):
                for m in range(14):
                    r = m + s2 - 1
                    if 0 <= r < 14 and (r % 2) == p:
                        S[s2, p, i * 14 + m, i * 7 + r // 2] = 1.0

    return (jnp.asarray(w1q, jnp.float32),
            jnp.asarray(b1t, jnp.float32),
            jnp.asarray(g2, jnp.bfloat16),
            jnp.asarray(b2t, jnp.float32),
            jnp.asarray(g3, jnp.bfloat16),
            jnp.asarray(b3, jnp.float32).reshape(1),
            jnp.asarray(S, jnp.bfloat16))


# ----------------------------------------------------------------------------
# Forward wrapper: single pallas_call, grid over batch tiles of TB
# ----------------------------------------------------------------------------
def decoder_forward(latent, packed, *, tb=8):
    w1q, b1t, g2, b2t, g3, b3s, s2sel = packed
    B, L = latent.shape
    assert B % tb == 0, (B, tb)
    lat_flat = latent.reshape(B * L)

    kernel = functools.partial(_decoder_kernel, latent_dim=L, tb=tb)
    out2d = pl.pallas_call(
        kernel,
        out_shape=jax.ShapeDtypeStruct((B * 14, 56), jnp.float32),
        grid=(B // tb,),
        in_specs=[
            pl.BlockSpec(memory_space=pltpu.MemorySpace.SMEM),        # latent (B*L,)
            pl.BlockSpec((L, 7, 224), lambda g: (0, 0, 0)),           # w1q
            pl.BlockSpec((7, 224), lambda g: (0, 0)),                 # b1t
            pl.BlockSpec((4, 224, 224), lambda g: (0, 0, 0)),         # g2 (bf16)
            pl.BlockSpec((1, 224), lambda g: (0, 0)),                 # b2t
            pl.BlockSpec((4, 224, 28), lambda g: (0, 0, 0)),          # g3 (bf16)
            pl.BlockSpec(memory_space=pltpu.MemorySpace.SMEM),        # b3 (1,)
            pl.BlockSpec((3, 2, tb * 14, tb * 7),
                         lambda g: (0, 0, 0, 0)),                     # s2sel (bf16)
        ],
        out_specs=pl.BlockSpec((tb * 14, 56), lambda g: (g, 0)),
        scratch_shapes=[
            pltpu.VMEM((3, tb * 7, 224), jnp.bfloat16),  # 3 row-shifted l1 slabs
        ],
        compiler_params=pltpu.CompilerParams(
            dimension_semantics=("parallel",),
        ),
    )(lat_flat, w1q, b1t, g2, b2t, g3, b3s, s2sel)

    # (B*14, 56) slab with columns [parity0(28) | parity1(28)] is exactly the
    # row-major (B, 1, 28, 28) tensor.
    return out2d.reshape(B, 1, 28, 28)


# ----------------------------------------------------------------------------
# Pure-JAX reference (correctness check)
# ----------------------------------------------------------------------------
def _ref_conv_transpose(x_nchw, w_pt, b, stride=2, pad=1):
    Cin, Cout, K, _ = w_pt.shape
    wf = jnp.transpose(w_pt[:, :, ::-1, ::-1], (1, 0, 2, 3))     # (Cout,Cin,K,K)
    y = jax.lax.conv_general_dilated(
        x_nchw, wf, window_strides=(1, 1),
        padding=[(K - 1 - pad, K - 1 - pad)] * 2,
        lhs_dilation=(stride, stride),
        dimension_numbers=("NCHW", "OIHW", "NCHW"),
        precision=jax.lax.Precision.HIGHEST)
    return y + b[None, :, None, None]


def decoder_reference(latent, params):
    W1, b1, W2, b2, W3, b3 = params
    B = latent.shape[0]
    z = jnp.maximum(
        jnp.dot(latent, W1.T, precision=jax.lax.Precision.HIGHEST) + b1, 0.0)
    z = z.reshape(B, 32, 7, 7)
    z = jnp.maximum(_ref_conv_transpose(z, W2, b2), 0.0)
    z = jax.nn.sigmoid(_ref_conv_transpose(z, W3, b3))
    return z


# ----------------------------------------------------------------------------
if __name__ == "__main__":
    LATENT_DIM = 8
    BATCH = 16          # B % TB == 0; grid length 2 keeps both v7x cores busy
    TB = 8

    key = jax.random.PRNGKey(0)
    k_lat, k1, k2, k3, k4, k5, k6 = jax.random.split(key, 7)

    # Deterministic parameters in PyTorch module layout.
    W1 = jax.random.normal(k1, (32 * 7 * 7, LATENT_DIM), jnp.float32) * 0.1
    b1 = jax.random.normal(k2, (32 * 7 * 7,), jnp.float32) * 0.05
    W2 = jax.random.normal(k3, (32, 16, 4, 4), jnp.float32) * 0.1   # (Cin,Cout,K,K)
    b2 = jax.random.normal(k4, (16,), jnp.float32) * 0.05
    W3 = jax.random.normal(k5, (16, 1, 4, 4), jnp.float32) * 0.1
    b3 = jax.random.normal(k6, (1,), jnp.float32) * 0.05
    params = (W1, b1, W2, b2, W3, b3)

    latent = jax.random.normal(k_lat, (BATCH, LATENT_DIM), jnp.float32)

    packed = pack_decoder_params(params, TB)      # one-time weight pre-packing

    fwd = jax.jit(functools.partial(decoder_forward, tb=TB))
    out = fwd(latent, packed)
    out = jax.block_until_ready(out)
    assert out.shape == (BATCH, 1, 28, 28), out.shape

    ref = decoder_reference(latent, params)
    max_err = float(jnp.max(jnp.abs(out - ref)))
    # bf16 MXU operands with f32 accumulation -> loosened tolerance.
    assert max_err < 2e-2, max_err

    print("KERNEL_OK")
</pallas_src>

<mosaic_0001>
module attributes {stable_mosaic.version = 11 : i64} {
  func.func @_decoder_kernel(%arg0: i32, %arg1: memref<128xf32, #tpu.memory_space<smem>>, %arg2: memref<8x7x224xf32, #tpu.memory_space<vmem>>, %arg3: memref<7x224xf32, #tpu.memory_space<vmem>>, %arg4: memref<4x224x224xbf16, #tpu.memory_space<vmem>>, %arg5: memref<1x224xf32, #tpu.memory_space<vmem>>, %arg6: memref<4x224x28xbf16, #tpu.memory_space<vmem>>, %arg7: memref<1xf32, #tpu.memory_space<smem>>, %arg8: memref<3x2x112x56xbf16, #tpu.memory_space<vmem>>, %arg9: memref<112x56xf32, #tpu.memory_space<vmem>>, %arg10: memref<3x56x224xbf16, #tpu.memory_space<vmem>>) attributes {dimension_semantics = [#tpu.dimension_semantics<parallel>], iteration_bounds = array<i64: 2>, scalar_prefetch = 0 : i64, scratch_operands = 1 : i64, tpu.core_type = #tpu.core_type<tc>, window_params = [{transform_indices = @transform_0, window_bounds = array<i64: 128>}, {pipeline_mode = #tpu.pipeline_mode<synchronous>, transform_indices = @transform_1, window_bounds = array<i64: 8, 7, 224>}, {pipeline_mode = #tpu.pipeline_mode<synchronous>, transform_indices = @transform_2, window_bounds = array<i64: 7, 224>}, {pipeline_mode = #tpu.pipeline_mode<synchronous>, transform_indices = @transform_3, window_bounds = array<i64: 4, 224, 224>}, {pipeline_mode = #tpu.pipeline_mode<synchronous>, transform_indices = @transform_4, window_bounds = array<i64: 1, 224>}, {pipeline_mode = #tpu.pipeline_mode<synchronous>, transform_indices = @transform_5, window_bounds = array<i64: 4, 224, 28>}, {transform_indices = @transform_6, window_bounds = array<i64: 1>}, {pipeline_mode = #tpu.pipeline_mode<synchronous>, transform_indices = @transform_7, window_bounds = array<i64: 3, 2, 112, 56>}, {transform_indices = @transform_8, window_bounds = array<i64: 112, 56>}]} {
    %cst = arith.constant 0.000000e+00 : bf16
    %0 = vector.broadcast %cst : bf16 to vector<1x224xbf16>
    %c0 = arith.constant 0 : index
    %c0_0 = arith.constant 0 : index
    %1 = vector.load %arg3[%c0, %c0_0] : memref<7x224xf32, #tpu.memory_space<vmem>>, vector<7x224xf32>
    %c0_1 = arith.constant 0 : index
    %c0_2 = arith.constant 0 : index
    %2 = vector.load %arg5[%c0_1, %c0_2] : memref<1x224xf32, #tpu.memory_space<vmem>>, vector<1x224xf32>
    %c8_i32 = arith.constant 8 : i32
    %3 = arith.muli %arg0, %c8_i32 : i32
    %c0_i32 = arith.constant 0 : i32
    %4 = arith.addi %3, %c0_i32 : i32
    %c8_i32_3 = arith.constant 8 : i32
    %5 = arith.muli %4, %c8_i32_3 : i32
    %c0_i32_4 = arith.constant 0 : i32
    %6 = arith.addi %5, %c0_i32_4 : i32
    %7 = arith.index_cast %6 : i32 to index
    %8 = memref.load %arg1[%7] : memref<128xf32, #tpu.memory_space<smem>>
    %c0_5 = arith.constant 0 : index
    %c0_6 = arith.constant 0 : index
    %c0_7 = arith.constant 0 : index
    %9 = vector.load %arg2[%c0_5, %c0_6, %c0_7] : memref<8x7x224xf32, #tpu.memory_space<vmem>>, vector<1x7x224xf32>
    %10 = vector.shape_cast %9 : vector<1x7x224xf32> to vector<7x224xf32>
    %11 = vector.broadcast %8 : f32 to vector<7x224xf32>
    %12 = arith.mulf %11, %10 : vector<7x224xf32>
    %13 = arith.addf %1, %12 : vector<7x224xf32>
    %c1_i32 = arith.constant 1 : i32
    %14 = arith.addi %5, %c1_i32 : i32
    %15 = arith.index_cast %14 : i32 to index
    %16 = memref.load %arg1[%15] : memref<128xf32, #tpu.memory_space<smem>>
    %c1 = arith.constant 1 : index
    %c0_8 = arith.constant 0 : index
    %c0_9 = arith.constant 0 : index
    %17 = vector.load %arg2[%c1, %c0_8, %c0_9] : memref<8x7x224xf32, #tpu.memory_space<vmem>>, vector<1x7x224xf32>
    %18 = vector.shape_cast %17 : vector<1x7x224xf32> to vector<7x224xf32>
    %19 = vector.broadcast %16 : f32 to vector<7x224xf32>
    %20 = arith.mulf %19, %18 : vector<7x224xf32>
    %21 = arith.addf %13, %20 : vector<7x224xf32>
    %c2_i32 = arith.constant 2 : i32
    %22 = arith.addi %5, %c2_i32 : i32
    %23 = arith.index_cast %22 : i32 to index
    %24 = memref.load %arg1[%23] : memref<128xf32, #tpu.memory_space<smem>>
    %c2 = arith.constant 2 : index
    %c0_10 = arith.constant 0 : index
    %c0_11 = arith.constant 0 : index
    %25 = vector.load %arg2[%c2, %c0_10, %c0_11] : memref<8x7x224xf32, #tpu.memory_space<vmem>>, vector<1x7x224xf32>
    %26 = vector.shape_cast %25 : vector<1x7x224xf32> to vector<7x224xf32>
    %27 = vector.broadcast %24 : f32 to vector<7x224xf32>
    %28 = arith.mulf %27, %26 : vector<7x224xf32>
    %29 = arith.addf %21, %28 : vector<7x224xf32>
    %c3_i32 = arith.constant 3 : i32
    %30 = arith.addi %5, %c3_i32 : i32
    %31 = arith.index_cast %30 : i32 to index
    %32 = memref.load %arg1[%31] : memref<128xf32, #tpu.memory_space<smem>>
    %c3 = arith.constant 3 : index
    %c0_12 = arith.constant 0 : index
    %c0_13 = arith.constant 0 : index
    %33 = vector.load %arg2[%c3, %c0_12, %c0_13] : memref<8x7x224xf32, #tpu.memory_space<vmem>>, vector<1x7x224xf32>
    %34 = vector.shape_cast %33 : vector<1x7x224xf32> to vector<7x224xf32>
    %35 = vector.broadcast %32 : f32 to vector<7x224xf32>
    %36 = arith.mulf %35, %34 : vector<7x224xf32>
    %37 = arith.addf %29, %36 : vector<7x224xf32>
    %c4_i32 = arith.constant 4 : i32
    %38 = arith.addi %5, %c4_i32 : i32
    %39 = arith.index_cast %38 : i32 to index
    %40 = memref.load %arg1[%39] : memref<128xf32, #tpu.memory_space<smem>>
    %c4 = arith.constant 4 : index
    %c0_14 = arith.constant 0 : index
    %c0_15 = arith.constant 0 : index
    %41 = vector.load %arg2[%c4, %c0_14, %c0_15] : memref<8x7x224xf32, #tpu.memory_space<vmem>>, vector<1x7x224xf32>
    %42 = vector.shape_cast %41 : vector<1x7x224xf32> to vector<7x224xf32>
    %43 = vector.broadcast %40 : f32 to vector<7x224xf32>
    %44 = arith.mulf %43, %42 : vector<7x224xf32>
    %45 = arith.addf %37, %44 : vector<7x224xf32>
    %c5_i32 = arith.constant 5 : i32
    %46 = arith.addi %5, %c5_i32 : i32
    %47 = arith.index_cast %46 : i32 to index
    %48 = memref.load %arg1[%47] : memref<128xf32, #tpu.memory_space<smem>>
    %c5 = arith.constant 5 : index
    %c0_16 = arith.constant 0 : index
    %c0_17 = arith.constant 0 : index
    %49 = vector.load %arg2[%c5, %c0_16, %c0_17] : memref<8x7x224xf32, #tpu.memory_space<vmem>>, vector<1x7x224xf32>
    %50 = vector.shape_cast %49 : vector<1x7x224xf32> to vector<7x224xf32>
    %51 = vector.broadcast %48 : f32 to vector<7x224xf32>
    %52 = arith.mulf %51, %50 : vector<7x224xf32>
    %53 = arith.addf %45, %52 : vector<7x224xf32>
    %c6_i32 = arith.constant 6 : i32
    %54 = arith.addi %5, %c6_i32 : i32
    %55 = arith.index_cast %54 : i32 to index
    %56 = memref.load %arg1[%55] : memref<128xf32, #tpu.memory_space<smem>>
    %c6 = arith.constant 6 : index
    %c0_18 = arith.constant 0 : index
    %c0_19 = arith.constant 0 : index
    %57 = vector.load %arg2[%c6, %c0_18, %c0_19] : memref<8x7x224xf32, #tpu.memory_space<vmem>>, vector<1x7x224xf32>
    %58 = vector.shape_cast %57 : vector<1x7x224xf32> to vector<7x224xf32>
    %59 = vector.broadcast %56 : f32 to vector<7x224xf32>
    %60 = arith.mulf %59, %58 : vector<7x224xf32>
    %61 = arith.addf %53, %60 : vector<7x224xf32>
    %c7_i32 = arith.constant 7 : i32
    %62 = arith.addi %5, %c7_i32 : i32
    %63 = arith.index_cast %62 : i32 to index
    %64 = memref.load %arg1[%63] : memref<128xf32, #tpu.memory_space<smem>>
    %c7 = arith.constant 7 : index
    %c0_20 = arith.constant 0 : index
    %c0_21 = arith.constant 0 : index
    %65 = vector.load %arg2[%c7, %c0_20, %c0_21] : memref<8x7x224xf32, #tpu.memory_space<vmem>>, vector<1x7x224xf32>
    %66 = vector.shape_cast %65 : vector<1x7x224xf32> to vector<7x224xf32>
    %67 = vector.broadcast %64 : f32 to vector<7x224xf32>
    %68 = arith.mulf %67, %66 : vector<7x224xf32>
    %69 = arith.addf %61, %68 : vector<7x224xf32>
    %cst_22 = arith.constant 0.000000e+00 : f32
    %70 = vector.broadcast %cst_22 : f32 to vector<7x224xf32>
    %71 = arith.maximumf %69, %70 : vector<7x224xf32>
    %72 = arith.truncf %71 : vector<7x224xf32> to vector<7x224xbf16>
    %c1_23 = arith.constant 1 : index
    %c0_24 = arith.constant 0 : index
    %c0_25 = arith.constant 0 : index
    %73 = vector.load %arg10[%c1_23, %c0_24, %c0_25] : memref<3x56x224xbf16, #tpu.memory_space<vmem>>, vector<1x7x224xbf16>
    %74 = vector.shape_cast %73 : vector<1x7x224xbf16> to vector<7x224xbf16>
    %75 = vector.shape_cast %72 : vector<7x224xbf16> to vector<1x7x224xbf16>
    tpu.vector_store %arg10[%c1_23, %c0_24, %c0_25], %75 {strides = array<i32>} : memref<3x56x224xbf16, #tpu.memory_space<vmem>>, vector<1x7x224xbf16>,
    %c0_26 = arith.constant 0 : index
    %c0_27 = arith.constant 0 : index
    %c0_28 = arith.constant 0 : index
    %76 = vector.load %arg10[%c0_26, %c0_27, %c0_28] : memref<3x56x224xbf16, #tpu.memory_space<vmem>>, vector<1x1x224xbf16>
    %77 = vector.shape_cast %76 : vector<1x1x224xbf16> to vector<1x224xbf16>
    %78 = vector.shape_cast %0 : vector<1x224xbf16> to vector<1x1x224xbf16>
    tpu.vector_store %arg10[%c0_26, %c0_27, %c0_28], %78 {strides = array<i32>} : memref<3x56x224xbf16, #tpu.memory_space<vmem>>, vector<1x1x224xbf16>,
    %79 = vector.extract_strided_slice %72 {offsets = [0, 0], sizes = [6, 224], strides = [1, 1]} : vector<7x224xbf16> to vector<6x224xbf16>
    %c0_29 = arith.constant 0 : index
    %c1_30 = arith.constant 1 : index
    %c0_31 = arith.constant 0 : index
    %80 = vector.load %arg10[%c0_29, %c1_30, %c0_31] : memref<3x56x224xbf16, #tpu.memory_space<vmem>>, vector<1x6x224xbf16>
    %81 = vector.shape_cast %80 : vector<1x6x224xbf16> to vector<6x224xbf16>
    %82 = vector.shape_cast %79 : vector<6x224xbf16> to vector<1x6x224xbf16>
    tpu.vector_store %arg10[%c0_29, %c1_30, %c0_31], %82 {strides = array<i32>} : memref<3x56x224xbf16, #tpu.memory_space<vmem>>, vector<1x6x224xbf16>,
    %83 = vector.extract_strided_slice %72 {offsets = [1, 0], sizes = [6, 224], strides = [1, 1]} : vector<7x224xbf16> to vector<6x224xbf16>
    %c2_32 = arith.constant 2 : index
    %c0_33 = arith.constant 0 : index
    %c0_34 = arith.constant 0 : index
    %84 = vector.load %arg10[%c2_32, %c0_33, %c0_34] : memref<3x56x224xbf16, #tpu.memory_space<vmem>>, vector<1x6x224xbf16>
    %85 = vector.shape_cast %84 : vector<1x6x224xbf16> to vector<6x224xbf16>
    %86 = vector.shape_cast %83 : vector<6x224xbf16> to vector<1x6x224xbf16>
    tpu.vector_store %arg10[%c2_32, %c0_33, %c0_34], %86 {strides = array<i32>} : memref<3x56x224xbf16, #tpu.memory_space<vmem>>, vector<1x6x224xbf16>,
    %c2_35 = arith.constant 2 : index
    %c6_36 = arith.constant 6 : index
    %c0_37 = arith.constant 0 : index
    %87 = vector.load %arg10[%c2_35, %c6_36, %c0_37] : memref<3x56x224xbf16, #tpu.memory_space<vmem>>, vector<1x1x224xbf16>
    %88 = vector.shape_cast %87 : vector<1x1x224xbf16> to vector<1x224xbf16>
    %89 = vector.shape_cast %0 : vector<1x224xbf16> to vector<1x1x224xbf16>
    tpu.vector_store %arg10[%c2_35, %c6_36, %c0_37], %89 {strides = array<i32>} : memref<3x56x224xbf16, #tpu.memory_space<vmem>>, vector<1x1x224xbf16>,
    %c8_i32_38 = arith.constant 8 : i32
    %90 = arith.muli %arg0, %c8_i32_38 : i32
    %c1_i32_39 = arith.constant 1 : i32
    %91 = arith.addi %90, %c1_i32_39 : i32
    %c8_i32_40 = arith.constant 8 : i32
    %92 = arith.muli %91, %c8_i32_40 : i32
    %c0_i32_41 = arith.constant 0 : i32
    %93 = arith.addi %92, %c0_i32_41 : i32
    %94 = arith.index_cast %93 : i32 to index
    %95 = memref.load %arg1[%94] : memref<128xf32, #tpu.memory_space<smem>>
    %c0_42 = arith.constant 0 : index
    %c0_43 = arith.constant 0 : index
    %c0_44 = arith.constant 0 : index
    %96 = vector.load %arg2[%c0_42, %c0_43, %c0_44] : memref<8x7x224xf32, #tpu.memory_space<vmem>>, vector<1x7x224xf32>
    %97 = vector.shape_cast %96 : vector<1x7x224xf32> to vector<7x224xf32>
    %98 = vector.broadcast %95 : f32 to vector<7x224xf32>
    %99 = arith.mulf %98, %97 : vector<7x224xf32>
    %100 = arith.addf %1, %99 : vector<7x224xf32>
    %c1_i32_45 = arith.constant 1 : i32
    %101 = arith.addi %92, %c1_i32_45 : i32
    %102 = arith.index_cast %101 : i32 to index
    %103 = memref.load %arg1[%102] : memref<128xf32, #tpu.memory_space<smem>>
    %c1_46 = arith.constant 1 : index
    %c0_47 = arith.constant 0 : index
    %c0_48 = arith.constant 0 : index
    %104 = vector.load %arg2[%c1_46, %c0_47, %c0_48] : memref<8x7x224xf32, #tpu.memory_space<vmem>>, vector<1x7x224xf32>
    %105 = vector.shape_cast %104 : vector<1x7x224xf32> to vector<7x224xf32>
    %106 = vector.broadcast %103 : f32 to vector<7x224xf32>
    %107 = arith.mulf %106, %105 : vector<7x224xf32>
    %108 = arith.addf %100, %107 : vector<7x224xf32>
    %c2_i32_49 = arith.constant 2 : i32
    %109 = arith.addi %92, %c2_i32_49 : i32
    %110 = arith.index_cast %109 : i32 to index
    %111 = memref.load %arg1[%110] : memref<128xf32, #tpu.memory_space<smem>>
    %c2_50 = arith.constant 2 : index
    %c0_51 = arith.constant 0 : index
    %c0_52 = arith.constant 0 : index
    %112 = vector.load %arg2[%c2_50, %c0_51, %c0_52] : memref<8x7x224xf32, #tpu.memory_space<vmem>>, vector<1x7x224xf32>
    %113 = vector.shape_cast %112 : vector<1x7x224xf32> to vector<7x224xf32>
    %114 = vector.broadcast %111 : f32 to vector<7x224xf32>
    %115 = arith.mulf %114, %113 : vector<7x224xf32>
    %116 = arith.addf %108, %115 : vector<7x224xf32>
    %c3_i32_53 = arith.constant 3 : i32
    %117 = arith.addi %92, %c3_i32_53 : i32
    %118 = arith.index_cast %117 : i32 to index
    %119 = memref.load %arg1[%118] : memref<128xf32, #tpu.memory_space<smem>>
    %c3_54 = arith.constant 3 : index
    %c0_55 = arith.constant 0 : index
    %c0_56 = arith.constant 0 : index
    %120 = vector.load %arg2[%c3_54, %c0_55, %c0_56] : memref<8x7x224xf32, #tpu.memory_space<vmem>>, vector<1x7x224xf32>
    %121 = vector.shape_cast %120 : vector<1x7x224xf32> to vector<7x224xf32>
    %122 = vector.broadcast %119 : f32 to vector<7x224xf32>
    %123 = arith.mulf %122, %121 : vector<7x224xf32>
    %124 = arith.addf %116, %123 : vector<7x224xf32>
    %c4_i32_57 = arith.constant 4 : i32
    %125 = arith.addi %92, %c4_i32_57 : i32
    %126 = arith.index_cast %125 : i32 to index
    %127 = memref.load %arg1[%126] : memref<128xf32, #tpu.memory_space<smem>>
    %c4_58 = arith.constant 4 : index
    %c0_59 = arith.constant 0 : index
    %c0_60 = arith.constant 0 : index
    %128 = vector.load %arg2[%c4_58, %c0_59, %c0_60] : memref<8x7x224xf32, #tpu.memory_space<vmem>>, vector<1x7x224xf32>
    %129 = vector.shape_cast %128 : vector<1x7x224xf32> to vector<7x224xf32>
    %130 = vector.broadcast %127 : f32 to vector<7x224xf32>
    %131 = arith.mulf %130, %129 : vector<7x224xf32>
    %132 = arith.addf %124, %131 : vector<7x224xf32>
    %c5_i32_61 = arith.constant 5 : i32
    %133 = arith.addi %92, %c5_i32_61 : i32
    %134 = arith.index_cast %133 : i32 to index
    %135 = memref.load %arg1[%134] : memref<128xf32, #tpu.memory_space<smem>>
    %c5_62 = arith.constant 5 : index
    %c0_63 = arith.constant 0 : index
    %c0_64 = arith.constant 0 : index
    %136 = vector.load %arg2[%c5_62, %c0_63, %c0_64] : memref<8x7x224xf32, #tpu.memory_space<vmem>>, vector<1x7x224xf32>
    %137 = vector.shape_cast %136 : vector<1x7x224xf32> to vector<7x224xf32>
    %138 = vector.broadcast %135 : f32 to vector<7x224xf32>
    %139 = arith.mulf %138, %137 : vector<7x224xf32>
    %140 = arith.addf %132, %139 : vector<7x224xf32>
    %c6_i32_65 = arith.constant 6 : i32
    %141 = arith.addi %92, %c6_i32_65 : i32
    %142 = arith.index_cast %141 : i32 to index
    %143 = memref.load %arg1[%142] : memref<128xf32, #tpu.memory_space<smem>>
    %c6_66 = arith.constant 6 : index
    %c0_67 = arith.constant 0 : index
    %c0_68 = arith.constant 0 : index
    %144 = vector.load %arg2[%c6_66, %c0_67, %c0_68] : memref<8x7x224xf32, #tpu.memory_space<vmem>>, vector<1x7x224xf32>
    %145 = vector.shape_cast %144 : vector<1x7x224xf32> to vector<7x224xf32>
    %146 = vector.broadcast %143 : f32 to vector<7x224xf32>
    %147 = arith.mulf %146, %145 : vector<7x224xf32>
    %148 = arith.addf %140, %147 : vector<7x224xf32>
    %c7_i32_69 = arith.constant 7 : i32
    %149 = arith.addi %92, %c7_i32_69 : i32
    %150 = arith.index_cast %149 : i32 to index
    %151 = memref.load %arg1[%150] : memref<128xf32, #tpu.memory_space<smem>>
    %c7_70 = arith.constant 7 : index
    %c0_71 = arith.constant 0 : index
    %c0_72 = arith.constant 0 : index
    %152 = vector.load %arg2[%c7_70, %c0_71, %c0_72] : memref<8x7x224xf32, #tpu.memory_space<vmem>>, vector<1x7x224xf32>
    %153 = vector.shape_cast %152 : vector<1x7x224xf32> to vector<7x224xf32>
    %154 = vector.broadcast %151 : f32 to vector<7x224xf32>
    %155 = arith.mulf %154, %153 : vector<7x224xf32>
    %156 = arith.addf %148, %155 : vector<7x224xf32>
    %cst_73 = arith.constant 0.000000e+00 : f32
    %157 = vector.broadcast %cst_73 : f32 to vector<7x224xf32>
    %158 = arith.maximumf %156, %157 : vector<7x224xf32>
    %159 = arith.truncf %158 : vector<7x224xf32> to vector<7x224xbf16>
    %c1_74 = arith.constant 1 : index
    %c7_75 = arith.constant 7 : index
    %c0_76 = arith.constant 0 : index
    %160 = vector.load %arg10[%c1_74, %c7_75, %c0_76] : memref<3x56x224xbf16, #tpu.memory_space<vmem>>, vector<1x7x224xbf16>
    %161 = vector.shape_cast %160 : vector<1x7x224xbf16> to vector<7x224xbf16>
    %162 = vector.shape_cast %159 : vector<7x224xbf16> to vector<1x7x224xbf16>
    tpu.vector_store %arg10[%c1_74, %c7_75, %c0_76], %162 {strides = array<i32>} : memref<3x56x224xbf16, #tpu.memory_space<vmem>>, vector<1x7x224xbf16>,
    %c0_77 = arith.constant 0 : index
    %c7_78 = arith.constant 7 : index
    %c0_79 = arith.constant 0 : index
    %163 = vector.load %arg10[%c0_77, %c7_78, %c0_79] : memref<3x56x224xbf16, #tpu.memory_space<vmem>>, vector<1x1x224xbf16>
    %164 = vector.shape_cast %163 : vector<1x1x224xbf16> to vector<1x224xbf16>
    %165 = vector.shape_cast %0 : vector<1x224xbf16> to vector<1x1x224xbf16>
    tpu.vector_store %arg10[%c0_77, %c7_78, %c0_79], %165 {strides = array<i32>} : memref<3x56x224xbf16, #tpu.memory_space<vmem>>, vector<1x1x224xbf16>,
    %166 = vector.extract_strided_slice %159 {offsets = [0, 0], sizes = [6, 224], strides = [1, 1]} : vector<7x224xbf16> to vector<6x224xbf16>
    %c0_80 = arith.constant 0 : index
    %c8 = arith.constant 8 : index
    %c0_81 = arith.constant 0 : index
    %167 = vector.load %arg10[%c0_80, %c8, %c0_81] : memref<3x56x224xbf16, #tpu.memory_space<vmem>>, vector<1x6x224xbf16>
    %168 = vector.shape_cast %167 : vector<1x6x224xbf16> to vector<6x224xbf16>
    %169 = vector.shape_cast %166 : vector<6x224xbf16> to vector<1x6x224xbf16>
    tpu.vector_store %arg10[%c0_80, %c8, %c0_81], %169 {strides = array<i32>} : memref<3x56x224xbf16, #tpu.memory_space<vmem>>, vector<1x6x224xbf16>,
    %170 = vector.extract_strided_slice %159 {offsets = [1, 0], sizes = [6, 224], strides = [1, 1]} : vector<7x224xbf16> to vector<6x224xbf16>
    %c2_82 = arith.constant 2 : index
    %c7_83 = arith.constant 7 : index
    %c0_84 = arith.constant 0 : index
    %171 = vector.load %arg10[%c2_82, %c7_83, %c0_84] : memref<3x56x224xbf16, #tpu.memory_space<vmem>>, vector<1x6x224xbf16>
    %172 = vector.shape_cast %171 : vector<1x6x224xbf16> to vector<6x224xbf16>
    %173 = vector.shape_cast %170 : vector<6x224xbf16> to vector<1x6x224xbf16>
    tpu.vector_store %arg10[%c2_82, %c7_83, %c0_84], %173 {strides = array<i32>} : memref<3x56x224xbf16, #tpu.memory_space<vmem>>, vector<1x6x224xbf16>,
    %c2_85 = arith.constant 2 : index
    %c13 = arith.constant 13 : index
    %c0_86 = arith.constant 0 : index
    %174 = vector.load %arg10[%c2_85, %c13, %c0_86] : memref<3x56x224xbf16, #tpu.memory_space<vmem>>, vector<1x1x224xbf16>
    %175 = vector.shape_cast %174 : vector<1x1x224xbf16> to vector<1x224xbf16>
    %176 = vector.shape_cast %0 : vector<1x224xbf16> to vector<1x1x224xbf16>
    tpu.vector_store %arg10[%c2_85, %c13, %c0_86], %176 {strides = array<i32>} : memref<3x56x224xbf16, #tpu.memory_space<vmem>>, vector<1x1x224xbf16>,
    %c8_i32_87 = arith.constant 8 : i32
    %177 = arith.muli %arg0, %c8_i32_87 : i32
    %c2_i32_88 = arith.constant 2 : i32
    %178 = arith.addi %177, %c2_i32_88 : i32
    %c8_i32_89 = arith.constant 8 : i32
    %179 = arith.muli %178, %c8_i32_89 : i32
    %c0_i32_90 = arith.constant 0 : i32
    %180 = arith.addi %179, %c0_i32_90 : i32
    %181 = arith.index_cast %180 : i32 to index
    %182 = memref.load %arg1[%181] : memref<128xf32, #tpu.memory_space<smem>>
    %c0_91 = arith.constant 0 : index
    %c0_92 = arith.constant 0 : index
    %c0_93 = arith.constant 0 : index
    %183 = vector.load %arg2[%c0_91, %c0_92, %c0_93] : memref<8x7x224xf32, #tpu.memory_space<vmem>>, vector<1x7x224xf32>
    %184 = vector.shape_cast %183 : vector<1x7x224xf32> to vector<7x224xf32>
    %185 = vector.broadcast %182 : f32 to vector<7x224xf32>
    %186 = arith.mulf %185, %184 : vector<7x224xf32>
    %187 = arith.addf %1, %186 : vector<7x224xf32>
    %c1_i32_94 = arith.constant 1 : i32
    %188 = arith.addi %179, %c1_i32_94 : i32
    %189 = arith.index_cast %188 : i32 to index
    %190 = memref.load %arg1[%189] : memref<128xf32, #tpu.memory_space<smem>>
    %c1_95 = arith.constant 1 : index
    %c0_96 = arith.constant 0 : index
    %c0_97 = arith.constant 0 : index
    %191 = vector.load %arg2[%c1_95, %c0_96, %c0_97] : memref<8x7x224xf32, #tpu.memory_space<vmem>>, vector<1x7x224xf32>
    %192 = vector.shape_cast %191 : vector<1x7x224xf32> to vector<7x224xf32>
    %193 = vector.broadcast %190 : f32 to vector<7x224xf32>
    %194 = arith.mulf %193, %192 : vector<7x224xf32>
    %195 = arith.addf %187, %194 : vector<7x224xf32>
    %c2_i32_98 = arith.constant 2 : i32
    %196 = arith.addi %179, %c2_i32_98 : i32
    %197 = arith.index_cast %196 : i32 to index
    %198 = memref.load %arg1[%197] : memref<128xf32, #tpu.memory_space<smem>>
    %c2_99 = arith.constant 2 : index
    %c0_100 = arith.constant 0 : index
    %c0_101 = arith.constant 0 : index
    %199 = vector.load %arg2[%c2_99, %c0_100, %c0_101] : memref<8x7x224xf32, #tpu.memory_space<vmem>>, vector<1x7x224xf32>
    %200 = vector.shape_cast %199 : vector<1x7x224xf32> to vector<7x224xf32>
    %201 = vector.broadcast %198 : f32 to vector<7x224xf32>
    %202 = arith.mulf %201, %200 : vector<7x224xf32>
    %203 = arith.addf %195, %202 : vector<7x224xf32>
    %c3_i32_102 = arith.constant 3 : i32
    %204 = arith.addi %179, %c3_i32_102 : i32
    %205 = arith.index_cast %204 : i32 to index
    %206 = memref.load %arg1[%205] : memref<128xf32, #tpu.memory_space<smem>>
    %c3_103 = arith.constant 3 : index
    %c0_104 = arith.constant 0 : index
    %c0_105 = arith.constant 0 : index
    %207 = vector.load %arg2[%c3_103, %c0_104, %c0_105] : memref<8x7x224xf32, #tpu.memory_space<vmem>>, vector<1x7x224xf32>
    %208 = vector.shape_cast %207 : vector<1x7x224xf32> to vector<7x224xf32>
    %209 = vector.broadcast %206 : f32 to vector<7x224xf32>
    %210 = arith.mulf %209, %208 : vector<7x224xf32>
    %211 = arith.addf %203, %210 : vector<7x224xf32>
    %c4_i32_106 = arith.constant 4 : i32
    %212 = arith.addi %179, %c4_i32_106 : i32
    %213 = arith.index_cast %212 : i32 to index
    %214 = memref.load %arg1[%213] : memref<128xf32, #tpu.memory_space<smem>>
    %c4_107 = arith.constant 4 : index
    %c0_108 = arith.constant 0 : index
    %c0_109 = arith.constant 0 : index
    %215 = vector.load %arg2[%c4_107, %c0_108, %c0_109] : memref<8x7x224xf32, #tpu.memory_space<vmem>>, vector<1x7x224xf32>
    %216 = vector.shape_cast %215 : vector<1x7x224xf32> to vector<7x224xf32>
    %217 = vector.broadcast %214 : f32 to vector<7x224xf32>
    %218 = arith.mulf %217, %216 : vector<7x224xf32>
    %219 = arith.addf %211, %218 : vector<7x224xf32>
    %c5_i32_110 = arith.constant 5 : i32
    %220 = arith.addi %179, %c5_i32_110 : i32
    %221 = arith.index_cast %220 : i32 to index
    %222 = memref.load %arg1[%221] : memref<128xf32, #tpu.memory_space<smem>>
    %c5_111 = arith.constant 5 : index
    %c0_112 = arith.constant 0 : index
    %c0_113 = arith.constant 0 : index
    %223 = vector.load %arg2[%c5_111, %c0_112, %c0_113] : memref<8x7x224xf32, #tpu.memory_space<vmem>>, vector<1x7x224xf32>
    %224 = vector.shape_cast %223 : vector<1x7x224xf32> to vector<7x224xf32>
    %225 = vector.broadcast %222 : f32 to vector<7x224xf32>
    %226 = arith.mulf %225, %224 : vector<7x224xf32>
    %227 = arith.addf %219, %226 : vector<7x224xf32>
    %c6_i32_114 = arith.constant 6 : i32
    %228 = arith.addi %179, %c6_i32_114 : i32
    %229 = arith.index_cast %228 : i32 to index
    %230 = memref.load %arg1[%229] : memref<128xf32, #tpu.memory_space<smem>>
    %c6_115 = arith.constant 6 : index
    %c0_116 = arith.constant 0 : index
    %c0_117 = arith.constant 0 : index
    %231 = vector.load %arg2[%c6_115, %c0_116, %c0_117] : memref<8x7x224xf32, #tpu.memory_space<vmem>>, vector<1x7x224xf32>
    %232 = vector.shape_cast %231 : vector<1x7x224xf32> to vector<7x224xf32>
    %233 = vector.broadcast %230 : f32 to vector<7x224xf32>
    %234 = arith.mulf %233, %232 : vector<7x224xf32>
    %235 = arith.addf %227, %234 : vector<7x224xf32>
    %c7_i32_118 = arith.constant 7 : i32
    %236 = arith.addi %179, %c7_i32_118 : i32
    %237 = arith.index_cast %236 : i32 to index
    %238 = memref.load %arg1[%237] : memref<128xf32, #tpu.memory_space<smem>>
    %c7_119 = arith.constant 7 : index
    %c0_120 = arith.constant 0 : index
    %c0_121 = arith.constant 0 : index
    %239 = vector.load %arg2[%c7_119, %c0_120, %c0_121] : memref<8x7x224xf32, #tpu.memory_space<vmem>>, vector<1x7x224xf32>
    %240 = vector.shape_cast %239 : vector<1x7x224xf32> to vector<7x224xf32>
    %241 = vector.broadcast %238 : f32 to vector<7x224xf32>
    %242 = arith.mulf %241, %240 : vector<7x224xf32>
    %243 = arith.addf %235, %242 : vector<7x224xf32>
    %cst_122 = arith.constant 0.000000e+00 : f32
    %244 = vector.broadcast %cst_122 : f32 to vector<7x224xf32>
    %245 = arith.maximumf %243, %244 : vector<7x224xf32>
    %246 = arith.truncf %245 : vector<7x224xf32> to vector<7x224xbf16>
    %c1_123 = arith.constant 1 : index
    %c14 = arith.constant 14 : index
    %c0_124 = arith.constant 0 : index
    %247 = vector.load %arg10[%c1_123, %c14, %c0_124] : memref<3x56x224xbf16, #tpu.memory_space<vmem>>, vector<1x7x224xbf16>
    %248 = vector.shape_cast %247 : vector<1x7x224xbf16> to vector<7x224xbf16>
    %249 = vector.shape_cast %246 : vector<7x224xbf16> to vector<1x7x224xbf16>
    tpu.vector_store %arg10[%c1_123, %c14, %c0_124], %249 {strides = array<i32>} : memref<3x56x224xbf16, #tpu.memory_space<vmem>>, vector<1x7x224xbf16>,
    %c0_125 = arith.constant 0 : index
    %c14_126 = arith.constant 14 : index
    %c0_127 = arith.constant 0 : index
    %250 = vector.load %arg10[%c0_125, %c14_126, %c0_127] : memref<3x56x224xbf16, #tpu.memory_space<vmem>>, vector<1x1x224xbf16>
    %251 = vector.shape_cast %250 : vector<1x1x224xbf16> to vector<1x224xbf16>
    %252 = vector.shape_cast %0 : vector<1x224xbf16> to vector<1x1x224xbf16>
    tpu.vector_store %arg10[%c0_125, %c14_126, %c0_127], %252 {strides = array<i32>} : memref<3x56x224xbf16, #tpu.memory_space<vmem>>, vector<1x1x224xbf16>,
    %253 = vector.extract_strided_slice %246 {offsets = [0, 0], sizes = [6, 224], strides = [1, 1]} : vector<7x224xbf16> to vector<6x224xbf16>
    %c0_128 = arith.constant 0 : index
    %c15 = arith.constant 15 : index
    %c0_129 = arith.constant 0 : index
    %254 = vector.load %arg10[%c0_128, %c15, %c0_129] : memref<3x56x224xbf16, #tpu.memory_space<vmem>>, vector<1x6x224xbf16>
    %255 = vector.shape_cast %254 : vector<1x6x224xbf16> to vector<6x224xbf16>
    %256 = vector.shape_cast %253 : vector<6x224xbf16> to vector<1x6x224xbf16>
    tpu.vector_store %arg10[%c0_128, %c15, %c0_129], %256 {strides = array<i32>} : memref<3x56x224xbf16, #tpu.memory_space<vmem>>, vector<1x6x224xbf16>,
    %257 = vector.extract_strided_slice %246 {offsets = [1, 0], sizes = [6, 224], strides = [1, 1]} : vector<7x224xbf16> to vector<6x224xbf16>
    %c2_130 = arith.constant 2 : index
    %c14_131 = arith.constant 14 : index
    %c0_132 = arith.constant 0 : index
    %258 = vector.load %arg10[%c2_130, %c14_131, %c0_132] : memref<3x56x224xbf16, #tpu.memory_space<vmem>>, vector<1x6x224xbf16>
    %259 = vector.shape_cast %258 : vector<1x6x224xbf16> to vector<6x224xbf16>
    %260 = vector.shape_cast %257 : vector<6x224xbf16> to vector<1x6x224xbf16>
    tpu.vector_store %arg10[%c2_130, %c14_131, %c0_132], %260 {strides = array<i32>} : memref<3x56x224xbf16, #tpu.memory_space<vmem>>, vector<1x6x224xbf16>,
    %c2_133 = arith.constant 2 : index
    %c20 = arith.constant 20 : index
    %c0_134 = arith.constant 0 : index
    %261 = vector.load %arg10[%c2_133, %c20, %c0_134] : memref<3x56x224xbf16, #tpu.memory_space<vmem>>, vector<1x1x224xbf16>
    %262 = vector.shape_cast %261 : vector<1x1x224xbf16> to vector<1x224xbf16>
    %263 = vector.shape_cast %0 : vector<1x224xbf16> to vector<1x1x224xbf16>
    tpu.vector_store %arg10[%c2_133, %c20, %c0_134], %263 {strides = array<i32>} : memref<3x56x224xbf16, #tpu.memory_space<vmem>>, vector<1x1x224xbf16>,
    %c8_i32_135 = arith.constant 8 : i32
    %264 = arith.muli %arg0, %c8_i32_135 : i32
    %c3_i32_136 = arith.constant 3 : i32
    %265 = arith.addi %264, %c3_i32_136 : i32
    %c8_i32_137 = arith.constant 8 : i32
    %266 = arith.muli %265, %c8_i32_137 : i32
    %c0_i32_138 = arith.constant 0 : i32
    %267 = arith.addi %266, %c0_i32_138 : i32
    %268 = arith.index_cast %267 : i32 to index
    %269 = memref.load %arg1[%268] : memref<128xf32, #tpu.memory_space<smem>>
    %c0_139 = arith.constant 0 : index
    %c0_140 = arith.constant 0 : index
    %c0_141 = arith.constant 0 : index
    %270 = vector.load %arg2[%c0_139, %c0_140, %c0_141] : memref<8x7x224xf32, #tpu.memory_space<vmem>>, vector<1x7x224xf32>
    %271 = vector.shape_cast %270 : vector<1x7x224xf32> to vector<7x224xf32>
    %272 = vector.broadcast %269 : f32 to vector<7x224xf32>
    %273 = arith.mulf %272, %271 : vector<7x224xf32>
    %274 = arith.addf %1, %273 : vector<7x224xf32>
    %c1_i32_142 = arith.constant 1 : i32
    %275 = arith.addi %266, %c1_i32_142 : i32
    %276 = arith.index_cast %275 : i32 to index
    %277 = memref.load %arg1[%276] : memref<128xf32, #tpu.memory_space<smem>>
    %c1_143 = arith.constant 1 : index
    %c0_144 = arith.constant 0 : index
    %c0_145 = arith.constant 0 : index
    %278 = vector.load %arg2[%c1_143, %c0_144, %c0_145] : memref<8x7x224xf32, #tpu.memory_space<vmem>>, vector<1x7x224xf32>
    %279 = vector.shape_cast %278 : vector<1x7x224xf32> to vector<7x224xf32>
    %280 = vector.broadcast %277 : f32 to vector<7x224xf32>
    %281 = arith.mulf %280, %279 : vector<7x224xf32>
    %282 = arith.addf %274, %281 : vector<7x224xf32>
    %c2_i32_146 = arith.constant 2 : i32
    %283 = arith.addi %266, %c2_i32_146 : i32
    %284 = arith.index_cast %283 : i32 to index
    %285 = memref.load %arg1[%284] : memref<128xf32, #tpu.memory_space<smem>>
    %c2_147 = arith.constant 2 : index
    %c0_148 = arith.constant 0 : index
    %c0_149 = arith.constant 0 : index
    %286 = vector.load %arg2[%c2_147, %c0_148, %c0_149] : memref<8x7x224xf32, #tpu.memory_space<vmem>>, vector<1x7x224xf32>
    %287 = vector.shape_cast %286 : vector<1x7x224xf32> to vector<7x224xf32>
    %288 = vector.broadcast %285 : f32 to vector<7x224xf32>
    %289 = arith.mulf %288, %287 : vector<7x224xf32>
    %290 = arith.addf %282, %289 : vector<7x224xf32>
    %c3_i32_150 = arith.constant 3 : i32
    %291 = arith.addi %266, %c3_i32_150 : i32
    %292 = arith.index_cast %291 : i32 to index
    %293 = memref.load %arg1[%292] : memref<128xf32, #tpu.memory_space<smem>>
    %c3_151 = arith.constant 3 : index
    %c0_152 = arith.constant 0 : index
    %c0_153 = arith.constant 0 : index
    %294 = vector.load %arg2[%c3_151, %c0_152, %c0_153] : memref<8x7x224xf32, #tpu.memory_space<vmem>>, vector<1x7x224xf32>
    %295 = vector.shape_cast %294 : vector<1x7x224xf32> to vector<7x224xf32>
    %296 = vector.broadcast %293 : f32 to vector<7x224xf32>
    %297 = arith.mulf %296, %295 : vector<7x224xf32>
    %298 = arith.addf %290, %297 : vector<7x224xf32>
    %c4_i32_154 = arith.constant 4 : i32
    %299 = arith.addi %266, %c4_i32_154 : i32
    %300 = arith.index_cast %299 : i32 to index
    %301 = memref.load %arg1[%300] : memref<128xf32, #tpu.memory_space<smem>>
    %c4_155 = arith.constant 4 : index
    %c0_156 = arith.constant 0 : index
    %c0_157 = arith.constant 0 : index
    %302 = vector.load %arg2[%c4_155, %c0_156, %c0_157] : memref<8x7x224xf32, #tpu.memory_space<vmem>>, vector<1x7x224xf32>
    %303 = vector.shape_cast %302 : vector<1x7x224xf32> to vector<7x224xf32>
    %304 = vector.broadcast %301 : f32 to vector<7x224xf32>
    %305 = arith.mulf %304, %303 : vector<7x224xf32>
    %306 = arith.addf %298, %305 : vector<7x224xf32>
    %c5_i32_158 = arith.constant 5 : i32
    %307 = arith.addi %266, %c5_i32_158 : i32
    %308 = arith.index_cast %307 : i32 to index
    %309 = memref.load %arg1[%308] : memref<128xf32, #tpu.memory_space<smem>>
    %c5_159 = arith.constant 5 : index
    %c0_160 = arith.constant 0 : index
    %c0_161 = arith.constant 0 : index
    %310 = vector.load %arg2[%c5_159, %c0_160, %c0_161] : memref<8x7x224xf32, #tpu.memory_space<vmem>>, vector<1x7x224xf32>
    %311 = vector.shape_cast %310 : vector<1x7x224xf32> to vector<7x224xf32>
    %312 = vector.broadcast %309 : f32 to vector<7x224xf32>
    %313 = arith.mulf %312, %311 : vector<7x224xf32>
    %314 = arith.addf %306, %313 : vector<7x224xf32>
    %c6_i32_162 = arith.constant 6 : i32
    %315 = arith.addi %266, %c6_i32_162 : i32
    %316 = arith.index_cast %315 : i32 to index
    %317 = memref.load %arg1[%316] : memref<128xf32, #tpu.memory_space<smem>>
    %c6_163 = arith.constant 6 : index
    %c0_164 = arith.constant 0 : index
    %c0_165 = arith.constant 0 : index
    %318 = vector.load %arg2[%c6_163, %c0_164, %c0_165] : memref<8x7x224xf32, #tpu.memory_space<vmem>>, vector<1x7x224xf32>
    %319 = vector.shape_cast %318 : vector<1x7x224xf32> to vector<7x224xf32>
    %320 = vector.broadcast %317 : f32 to vector<7x224xf32>
    %321 = arith.mulf %320, %319 : vector<7x224xf32>
    %322 = arith.addf %314, %321 : vector<7x224xf32>
    %c7_i32_166 = arith.constant 7 : i32
    %323 = arith.addi %266, %c7_i32_166 : i32
    %324 = arith.index_cast %323 : i32 to index
    %325 = memref.load %arg1[%324] : memref<128xf32, #tpu.memory_space<smem>>
    %c7_167 = arith.constant 7 : index
    %c0_168 = arith.constant 0 : index
    %c0_169 = arith.constant 0 : index
    %326 = vector.load %arg2[%c7_167, %c0_168, %c0_169] : memref<8x7x224xf32, #tpu.memory_space<vmem>>, vector<1x7x224xf32>
    %327 = vector.shape_cast %326 : vector<1x7x224xf32> to vector<7x224xf32>
    %328 = vector.broadcast %325 : f32 to vector<7x224xf32>
    %329 = arith.mulf %328, %327 : vector<7x224xf32>
    %330 = arith.addf %322, %329 : vector<7x224xf32>
    %cst_170 = arith.constant 0.000000e+00 : f32
    %331 = vector.broadcast %cst_170 : f32 to vector<7x224xf32>
    %332 = arith.maximumf %330, %331 : vector<7x224xf32>
    %333 = arith.truncf %332 : vector<7x224xf32> to vector<7x224xbf16>
    %c1_171 = arith.constant 1 : index
    %c21 = arith.constant 21 : index
    %c0_172 = arith.constant 0 : index
    %334 = vector.load %arg10[%c1_171, %c21, %c0_172] : memref<3x56x224xbf16, #tpu.memory_space<vmem>>, vector<1x7x224xbf16>
    %335 = vector.shape_cast %334 : vector<1x7x224xbf16> to vector<7x224xbf16>
    %336 = vector.shape_cast %333 : vector<7x224xbf16> to vector<1x7x224xbf16>
    tpu.vector_store %arg10[%c1_171, %c21, %c0_172], %336 {strides = array<i32>} : memref<3x56x224xbf16, #tpu.memory_space<vmem>>, vector<1x7x224xbf16>,
    %c0_173 = arith.constant 0 : index
    %c21_174 = arith.constant 21 : index
    %c0_175 = arith.constant 0 : index
    %337 = vector.load %arg10[%c0_173, %c21_174, %c0_175] : memref<3x56x224xbf16, #tpu.memory_space<vmem>>, vector<1x1x224xbf16>
    %338 = vector.shape_cast %337 : vector<1x1x224xbf16> to vector<1x224xbf16>
    %339 = vector.shape_cast %0 : vector<1x224xbf16> to vector<1x1x224xbf16>
    tpu.vector_store %arg10[%c0_173, %c21_174, %c0_175], %339 {strides = array<i32>} : memref<3x56x224xbf16, #tpu.memory_space<vmem>>, vector<1x1x224xbf16>,
    %340 = vector.extract_strided_slice %333 {offsets = [0, 0], sizes = [6, 224], strides = [1, 1]} : vector<7x224xbf16> to vector<6x224xbf16>
    %c0_176 = arith.constant 0 : index
    %c22 = arith.constant 22 : index
    %c0_177 = arith.constant 0 : index
    %341 = vector.load %arg10[%c0_176, %c22, %c0_177] : memref<3x56x224xbf16, #tpu.memory_space<vmem>>, vector<1x6x224xbf16>
    %342 = vector.shape_cast %341 : vector<1x6x224xbf16> to vector<6x224xbf16>
    %343 = vector.shape_cast %340 : vector<6x224xbf16> to vector<1x6x224xbf16>
    tpu.vector_store %arg10[%c0_176, %c22, %c0_177], %343 {strides = array<i32>} : memref<3x56x224xbf16, #tpu.memory_space<vmem>>, vector<1x6x224xbf16>,
    %344 = vector.extract_strided_slice %333 {offsets = [1, 0], sizes = [6, 224], strides = [1, 1]} : vector<7x224xbf16> to vector<6x224xbf16>
    %c2_178 = arith.constant 2 : index
    %c21_179 = arith.constant 21 : index
    %c0_180 = arith.constant 0 : index
    %345 = vector.load %arg10[%c2_178, %c21_179, %c0_180] : memref<3x56x224xbf16, #tpu.memory_space<vmem>>, vector<1x6x224xbf16>
    %346 = vector.shape_cast %345 : vector<1x6x224xbf16> to vector<6x224xbf16>
    %347 = vector.shape_cast %344 : vector<6x224xbf16> to vector<1x6x224xbf16>
    tpu.vector_store %arg10[%c2_178, %c21_179, %c0_180], %347 {strides = array<i32>} : memref<3x56x224xbf16, #tpu.memory_space<vmem>>, vector<1x6x224xbf16>,
    %c2_181 = arith.constant 2 : index
    %c27 = arith.constant 27 : index
    %c0_182 = arith.constant 0 : index
    %348 = vector.load %arg10[%c2_181, %c27, %c0_182] : memref<3x56x224xbf16, #tpu.memory_space<vmem>>, vector<1x1x224xbf16>
    %349 = vector.shape_cast %348 : vector<1x1x224xbf16> to vector<1x224xbf16>
    %350 = vector.shape_cast %0 : vector<1x224xbf16> to vector<1x1x224xbf16>
    tpu.vector_store %arg10[%c2_181, %c27, %c0_182], %350 {strides = array<i32>} : memref<3x56x224xbf16, #tpu.memory_space<vmem>>, vector<1x1x224xbf16>,
    %c8_i32_183 = arith.constant 8 : i32
    %351 = arith.muli %arg0, %c8_i32_183 : i32
    %c4_i32_184 = arith.constant 4 : i32
    %352 = arith.addi %351, %c4_i32_184 : i32
    %c8_i32_185 = arith.constant 8 : i32
    %353 = arith.muli %352, %c8_i32_185 : i32
    %c0_i32_186 = arith.constant 0 : i32
    %354 = arith.addi %353, %c0_i32_186 : i32
    %355 = arith.index_cast %354 : i32 to index
    %356 = memref.load %arg1[%355] : memref<128xf32, #tpu.memory_space<smem>>
    %c0_187 = arith.constant 0 : index
    %c0_188 = arith.constant 0 : index
    %c0_189 = arith.constant 0 : index
    %357 = vector.load %arg2[%c0_187, %c0_188, %c0_189] : memref<8x7x224xf32, #tpu.memory_space<vmem>>, vector<1x7x224xf32>
    %358 = vector.shape_cast %357 : vector<1x7x224xf32> to vector<7x224xf32>
    %359 = vector.broadcast %356 : f32 to vector<7x224xf32>
    %360 = arith.mulf %359, %358 : vector<7x224xf32>
    %361 = arith.addf %1, %360 : vector<7x224xf32>
    %c1_i32_190 = arith.constant 1 : i32
    %362 = arith.addi %353, %c1_i32_190 : i32
    %363 = arith.index_cast %362 : i32 to index
    %364 = memref.load %arg1[%363] : memref<128xf32, #tpu.memory_space<smem>>
    %c1_191 = arith.constant 1 : index
    %c0_192 = arith.constant 0 : index
    %c0_193 = arith.constant 0 : index
    %365 = vector.load %arg2[%c1_191, %c0_192, %c0_193] : memref<8x7x224xf32, #tpu.memory_space<vmem>>, vector<1x7x224xf32>
    %366 = vector.shape_cast %365 : vector<1x7x224xf32> to vector<7x224xf32>
    %367 = vector.broadcast %364 : f32 to vector<7x224xf32>
    %368 = arith.mulf %367, %366 : vector<7x224xf32>
    %369 = arith.addf %361, %368 : vector<7x224xf32>
    %c2_i32_194 = arith.constant 2 : i32
    %370 = arith.addi %353, %c2_i32_194 : i32
    %371 = arith.index_cast %370 : i32 to index
    %372 = memref.load %arg1[%371] : memref<128xf32, #tpu.memory_space<smem>>
    %c2_195 = arith.constant 2 : index
    %c0_196 = arith.constant 0 : index
    %c0_197 = arith.constant 0 : index
    %373 = vector.load %arg2[%c2_195, %c0_196, %c0_197] : memref<8x7x224xf32, #tpu.memory_space<vmem>>, vector<1x7x224xf32>
    %374 = vector.shape_cast %373 : vector<1x7x224xf32> to vector<7x224xf32>
    %375 = vector.broadcast %372 : f32 to vector<7x224xf32>
    %376 = arith.mulf %375, %374 : vector<7x224xf32>
    %377 = arith.addf %369, %376 : vector<7x224xf32>
    %c3_i32_198 = arith.constant 3 : i32
    %378 = arith.addi %353, %c3_i32_198 : i32
    %379 = arith.index_cast %378 : i32 to index
    %380 = memref.load %arg1[%379] : memref<128xf32, #tpu.memory_space<smem>>
    %c3_199 = arith.constant 3 : index
    %c0_200 = arith.constant 0 : index
    %c0_201 = arith.constant 0 : index
    %381 = vector.load %arg2[%c3_199, %c0_200, %c0_201] : memref<8x7x224xf32, #tpu.memory_space<vmem>>, vector<1x7x224xf32>
    %382 = vector.shape_cast %381 : vector<1x7x224xf32> to vector<7x224xf32>
    %383 = vector.broadcast %380 : f32 to vector<7x224xf32>
    %384 = arith.mulf %383, %382 : vector<7x224xf32>
    %385 = arith.addf %377, %384 : vector<7x224xf32>
    %c4_i32_202 = arith.constant 4 : i32
    %386 = arith.addi %353, %c4_i32_202 : i32
    %387 = arith.index_cast %386 : i32 to index
    %388 = memref.load %arg1[%387] : memref<128xf32, #tpu.memory_space<smem>>
    %c4_203 = arith.constant 4 : index
    %c0_204 = arith.constant 0 : index
    %c0_205 = arith.constant 0 : index
    %389 = vector.load %arg2[%c4_203, %c0_204, %c0_205] : memref<8x7x224xf32, #tpu.memory_space<vmem>>, vector<1x7x224xf32>
    %390 = vector.shape_cast %389 : vector<1x7x224xf32> to vector<7x224xf32>
    %391 = vector.broadcast %388 : f32 to vector<7x224xf32>
    %392 = arith.mulf %391, %390 : vector<7x224xf32>
    %393 = arith.addf %385, %392 : vector<7x224xf32>
    %c5_i32_206 = arith.constant 5 : i32
    %394 = arith.addi %353, %c5_i32_206 : i32
    %395 = arith.index_cast %394 : i32 to index
    %396 = memref.load %arg1[%395] : memref<128xf32, #tpu.memory_space<smem>>
    %c5_207 = arith.constant 5 : index
    %c0_208 = arith.constant 0 : index
    %c0_209 = arith.constant 0 : index
    %397 = vector.load %arg2[%c5_207, %c0_208, %c0_209] : memref<8x7x224xf32, #tpu.memory_space<vmem>>, vector<1x7x224xf32>
    %398 = vector.shape_cast %397 : vector<1x7x224xf32> to vector<7x224xf32>
    %399 = vector.broadcast %396 : f32 to vector<7x224xf32>
    %400 = arith.mulf %399, %398 : vector<7x224xf32>
    %401 = arith.addf %393, %400 : vector<7x224xf32>
    %c6_i32_210 = arith.constant 6 : i32
    %402 = arith.addi %353, %c6_i32_210 : i32
    %403 = arith.index_cast %402 : i32 to index
    %404 = memref.load %arg1[%403] : memref<128xf32, #tpu.memory_space<smem>>
    %c6_211 = arith.constant 6 : index
    %c0_212 = arith.constant 0 : index
    %c0_213 = arith.constant 0 : index
    %405 = vector.load %arg2[%c6_211, %c0_212, %c0_213] : memref<8x7x224xf32, #tpu.memory_space<vmem>>, vector<1x7x224xf32>
    %406 = vector.shape_cast %405 : vector<1x7x224xf32> to vector<7x224xf32>
    %407 = vector.broadcast %404 : f32 to vector<7x224xf32>
    %408 = arith.mulf %407, %406 : vector<7x224xf32>
    %409 = arith.addf %401, %408 : vector<7x224xf32>
    %c7_i32_214 = arith.constant 7 : i32
    %410 = arith.addi %353, %c7_i32_214 : i32
    %411 = arith.index_cast %410 : i32 to index
    %412 = memref.load %arg1[%411] : memref<128xf32, #tpu.memory_space<smem>>
    %c7_215 = arith.constant 7 : index
    %c0_216 = arith.constant 0 : index
    %c0_217 = arith.constant 0 : index
    %413 = vector.load %arg2[%c7_215, %c0_216, %c0_217] : memref<8x7x224xf32, #tpu.memory_space<vmem>>, vector<1x7x224xf32>
    %414 = vector.shape_cast %413 : vector<1x7x224xf32> to vector<7x224xf32>
    %415 = vector.broadcast %412 : f32 to vector<7x224xf32>
    %416 = arith.mulf %415, %414 : vector<7x224xf32>
    %417 = arith.addf %409, %416 : vector<7x224xf32>
    %cst_218 = arith.constant 0.000000e+00 : f32
    %418 = vector.broadcast %cst_218 : f32 to vector<7x224xf32>
    %419 = arith.maximumf %417, %418 : vector<7x224xf32>
    %420 = arith.truncf %419 : vector<7x224xf32> to vector<7x224xbf16>
    %c1_219 = arith.constant 1 : index
    %c28 = arith.constant 28 : index
    %c0_220 = arith.constant 0 : index
    %421 = vector.load %arg10[%c1_219, %c28, %c0_220] : memref<3x56x224xbf16, #tpu.memory_space<vmem>>, vector<1x7x224xbf16>
    %422 = vector.shape_cast %421 : vector<1x7x224xbf16> to vector<7x224xbf16>
    %423 = vector.shape_cast %420 : vector<7x224xbf16> to vector<1x7x224xbf16>
    tpu.vector_store %arg10[%c1_219, %c28, %c0_220], %423 {strides = array<i32>} : memref<3x56x224xbf16, #tpu.memory_space<vmem>>, vector<1x7x224xbf16>,
    %c0_221 = arith.constant 0 : index
    %c28_222 = arith.constant 28 : index
    %c0_223 = arith.constant 0 : index
    %424 = vector.load %arg10[%c0_221, %c28_222, %c0_223] : memref<3x56x224xbf16, #tpu.memory_space<vmem>>, vector<1x1x224xbf16>
    %425 = vector.shape_cast %424 : vector<1x1x224xbf16> to vector<1x224xbf16>
    %426 = vector.shape_cast %0 : vector<1x224xbf16> to vector<1x1x224xbf16>
    tpu.vector_store %arg10[%c0_221, %c28_222, %c0_223], %426 {strides = array<i32>} : memref<3x56x224xbf16, #tpu.memory_space<vmem>>, vector<1x1x224xbf16>,
    %427 = vector.extract_strided_slice %420 {offsets = [0, 0], sizes = [6, 224], strides = [1, 1]} : vector<7x224xbf16> to vector<6x224xbf16>
    %c0_224 = arith.constant 0 : index
    %c29 = arith.constant 29 : index
    %c0_225 = arith.constant 0 : index
    %428 = vector.load %arg10[%c0_224, %c29, %c0_225] : memref<3x56x224xbf16, #tpu.memory_space<vmem>>, vector<1x6x224xbf16>
    %429 = vector.shape_cast %428 : vector<1x6x224xbf16> to vector<6x224xbf16>
    %430 = vector.shape_cast %427 : vector<6x224xbf16> to vector<1x6x224xbf16>
    tpu.vector_store %arg10[%c0_224, %c29, %c0_225], %430 {strides = array<i32>} : memref<3x56x224xbf16, #tpu.memory_space<vmem>>, vector<1x6x224xbf16>,
    %431 = vector.extract_strided_slice %420 {offsets = [1, 0], sizes = [6, 224], strides = [1, 1]} : vector<7x224xbf16> to vector<6x224xbf16>
    %c2_226 = arith.constant 2 : index
    %c28_227 = arith.constant 28 : index
    %c0_228 = arith.constant 0 : index
    %432 = vector.load %arg10[%c2_226, %c28_227, %c0_228] : memref<3x56x224xbf16, #tpu.memory_space<vmem>>, vector<1x6x224xbf16>
    %433 = vector.shape_cast %432 : vector<1x6x224xbf16> to vector<6x224xbf16>
    %434 = vector.shape_cast %431 : vector<6x224xbf16> to vector<1x6x224xbf16>
    tpu.vector_store %arg10[%c2_226, %c28_227, %c0_228], %434 {strides = array<i32>} : memref<3x56x224xbf16, #tpu.memory_space<vmem>>, vector<1x6x224xbf16>,
    %c2_229 = arith.constant 2 : index
    %c34 = arith.constant 34 : index
    %c0_230 = arith.constant 0 : index
    %435 = vector.load %arg10[%c2_229, %c34, %c0_230] : memref<3x56x224xbf16, #tpu.memory_space<vmem>>, vector<1x1x224xbf16>
    %436 = vector.shape_cast %435 : vector<1x1x224xbf16> to vector<1x224xbf16>
    %437 = vector.shape_cast %0 : vector<1x224xbf16> to vector<1x1x224xbf16>
    tpu.vector_store %arg10[%c2_229, %c34, %c0_230], %437 {strides = array<i32>} : memref<3x56x224xbf16, #tpu.memory_space<vmem>>, vector<1x1x224xbf16>,
    %c8_i32_231 = arith.constant 8 : i32
    %438 = arith.muli %arg0, %c8_i32_231 : i32
    %c5_i32_232 = arith.constant 5 : i32
    %439 = arith.addi %438, %c5_i32_232 : i32
    %c8_i32_233 = arith.constant 8 : i32
    %440 = arith.muli %439, %c8_i32_233 : i32
    %c0_i32_234 = arith.constant 0 : i32
    %441 = arith.addi %440, %c0_i32_234 : i32
    %442 = arith.index_cast %441 : i32 to index
    %443 = memref.load %arg1[%442] : memref<128xf32, #tpu.memory_space<smem>>
    %c0_235 = arith.constant 0 : index
    %c0_236 = arith.constant 0 : index
    %c0_237 = arith.constant 0 : index
    %444 = vector.load %arg2[%c0_235, %c0_236, %c0_237] : memref<8x7x224xf32, #tpu.memory_space<vmem>>, vector<1x7x224xf32>
    %445 = vector.shape_cast %444 : vector<1x7x224xf32> to vector<7x224xf32>
    %446 = vector.broadcast %443 : f32 to vector<7x224xf32>
    %447 = arith.mulf %446, %445 : vector<7x224xf32>
    %448 = arith.addf %1, %447 : vector<7x224xf32>
    %c1_i32_238 = arith.constant 1 : i32
    %449 = arith.addi %440, %c1_i32_238 : i32
    %450 = arith.index_cast %449 : i32 to index
    %451 = memref.load %arg1[%450] : memref<128xf32, #tpu.memory_space<smem>>
    %c1_239 = arith.constant 1 : index
    %c0_240 = arith.constant 0 : index
    %c0_241 = arith.constant 0 : index
    %452 = vector.load %arg2[%c1_239, %c0_240, %c0_241] : memref<8x7x224xf32, #tpu.memory_space<vmem>>, vector<1x7x224xf32>
    %453 = vector.shape_cast %452 : vector<1x7x224xf32> to vector<7x224xf32>
    %454 = vector.broadcast %451 : f32 to vector<7x224xf32>
    %455 = arith.mulf %454, %453 : vector<7x224xf32>
    %456 = arith.addf %448, %455 : vector<7x224xf32>
    %c2_i32_242 = arith.constant 2 : i32
    %457 = arith.addi %440, %c2_i32_242 : i32
    %458 = arith.index_cast %457 : i32 to index
    %459 = memref.load %arg1[%458] : memref<128xf32, #tpu.memory_space<smem>>
    %c2_243 = arith.constant 2 : index
    %c0_244 = arith.constant 0 : index
    %c0_245 = arith.constant 0 : index
    %460 = vector.load %arg2[%c2_243, %c0_244, %c0_245] : memref<8x7x224xf32, #tpu.memory_space<vmem>>, vector<1x7x224xf32>
    %461 = vector.shape_cast %460 : vector<1x7x224xf32> to vector<7x224xf32>
    %462 = vector.broadcast %459 : f32 to vector<7x224xf32>
    %463 = arith.mulf %462, %461 : vector<7x224xf32>
    %464 = arith.addf %456, %463 : vector<7x224xf32>
    %c3_i32_246 = arith.constant 3 : i32
    %465 = arith.addi %440, %c3_i32_246 : i32
    %466 = arith.index_cast %465 : i32 to index
    %467 = memref.load %arg1[%466] : memref<128xf32, #tpu.memory_space<smem>>
    %c3_247 = arith.constant 3 : index
    %c0_248 = arith.constant 0 : index
    %c0_249 = arith.constant 0 : index
    %468 = vector.load %arg2[%c3_247, %c0_248, %c0_249] : memref<8x7x224xf32, #tpu.memory_space<vmem>>, vector<1x7x224xf32>
    %469 = vector.shape_cast %468 : vector<1x7x224xf32> to vector<7x224xf32>
    %470 = vector.broadcast %467 : f32 to vector<7x224xf32>
    %471 = arith.mulf %470, %469 : vector<7x224xf32>
    %472 = arith.addf %464, %471 : vector<7x224xf32>
    %c4_i32_250 = arith.constant 4 : i32
    %473 = arith.addi %440, %c4_i32_250 : i32
    %474 = arith.index_cast %473 : i32 to index
    %475 = memref.load %arg1[%474] : memref<128xf32, #tpu.memory_space<smem>>
    %c4_251 = arith.constant 4 : index
    %c0_252 = arith.constant 0 : index
    %c0_253 = arith.constant 0 : index
    %476 = vector.load %arg2[%c4_251, %c0_252, %c0_253] : memref<8x7x224xf32, #tpu.memory_space<vmem>>, vector<1x7x224xf32>
    %477 = vector.shape_cast %476 : vector<1x7x224xf32> to vector<7x224xf32>
    %478 = vector.broadcast %475 : f32 to vector<7x224xf32>
    %479 = arith.mulf %478, %477 : vector<7x224xf32>
    %480 = arith.addf %472, %479 : vector<7x224xf32>
    %c5_i32_254 = arith.constant 5 : i32
    %481 = arith.addi %440, %c5_i32_254 : i32
    %482 = arith.index_cast %481 : i32 to index
    %483 = memref.load %arg1[%482] : memref<128xf32, #tpu.memory_space<smem>>
    %c5_255 = arith.constant 5 : index
    %c0_256 = arith.constant 0 : index
    %c0_257 = arith.constant 0 : index
    %484 = vector.load %arg2[%c5_255, %c0_256, %c0_257] : memref<8x7x224xf32, #tpu.memory_space<vmem>>, vector<1x7x224xf32>
    %485 = vector.shape_cast %484 : vector<1x7x224xf32> to vector<7x224xf32>
    %486 = vector.broadcast %483 : f32 to vector<7x224xf32>
    %487 = arith.mulf %486, %485 : vector<7x224xf32>
    %488 = arith.addf %480, %487 : vector<7x224xf32>
    %c6_i32_258 = arith.constant 6 : i32
    %489 = arith.addi %440, %c6_i32_258 : i32
    %490 = arith.index_cast %489 : i32 to index
    %491 = memref.load %arg1[%490] : memref<128xf32, #tpu.memory_space<smem>>
    %c6_259 = arith.constant 6 : index
    %c0_260 = arith.constant 0 : index
    %c0_261 = arith.constant 0 : index
    %492 = vector.load %arg2[%c6_259, %c0_260, %c0_261] : memref<8x7x224xf32, #tpu.memory_space<vmem>>, vector<1x7x224xf32>
    %493 = vector.shape_cast %492 : vector<1x7x224xf32> to vector<7x224xf32>
    %494 = vector.broadcast %491 : f32 to vector<7x224xf32>
    %495 = arith.mulf %494, %493 : vector<7x224xf32>
    %496 = arith.addf %488, %495 : vector<7x224xf32>
    %c7_i32_262 = arith.constant 7 : i32
    %497 = arith.addi %440, %c7_i32_262 : i32
    %498 = arith.index_cast %497 : i32 to index
    %499 = memref.load %arg1[%498] : memref<128xf32, #tpu.memory_space<smem>>
    %c7_263 = arith.constant 7 : index
    %c0_264 = arith.constant 0 : index
    %c0_265 = arith.constant 0 : index
    %500 = vector.load %arg2[%c7_263, %c0_264, %c0_265] : memref<8x7x224xf32, #tpu.memory_space<vmem>>, vector<1x7x224xf32>
    %501 = vector.shape_cast %500 : vector<1x7x224xf32> to vector<7x224xf32>
    %502 = vector.broadcast %499 : f32 to vector<7x224xf32>
    %503 = arith.mulf %502, %501 : vector<7x224xf32>
    %504 = arith.addf %496, %503 : vector<7x224xf32>
    %cst_266 = arith.constant 0.000000e+00 : f32
    %505 = vector.broadcast %cst_266 : f32 to vector<7x224xf32>
    %506 = arith.maximumf %504, %505 : vector<7x224xf32>
    %507 = arith.truncf %506 : vector<7x224xf32> to vector<7x224xbf16>
    %c1_267 = arith.constant 1 : index
    %c35 = arith.constant 35 : index
    %c0_268 = arith.constant 0 : index
    %508 = vector.load %arg10[%c1_267, %c35, %c0_268] : memref<3x56x224xbf16, #tpu.memory_space<vmem>>, vector<1x7x224xbf16>
    %509 = vector.shape_cast %508 : vector<1x7x224xbf16> to vector<7x224xbf16>
    %510 = vector.shape_cast %507 : vector<7x224xbf16> to vector<1x7x224xbf16>
    tpu.vector_store %arg10[%c1_267, %c35, %c0_268], %510 {strides = array<i32>} : memref<3x56x224xbf16, #tpu.memory_space<vmem>>, vector<1x7x224xbf16>,
    %c0_269 = arith.constant 0 : index
    %c35_270 = arith.constant 35 : index
    %c0_271 = arith.constant 0 : index
    %511 = vector.load %arg10[%c0_269, %c35_270, %c0_271] : memref<3x56x224xbf16, #tpu.memory_space<vmem>>, vector<1x1x224xbf16>
    %512 = vector.shape_cast %511 : vector<1x1x224xbf16> to vector<1x224xbf16>
    %513 = vector.shape_cast %0 : vector<1x224xbf16> to vector<1x1x224xbf16>
    tpu.vector_store %arg10[%c0_269, %c35_270, %c0_271], %513 {strides = array<i32>} : memref<3x56x224xbf16, #tpu.memory_space<vmem>>, vector<1x1x224xbf16>,
    %514 = vector.extract_strided_slice %507 {offsets = [0, 0], sizes = [6, 224], strides = [1, 1]} : vector<7x224xbf16> to vector<6x224xbf16>
    %c0_272 = arith.constant 0 : index
    %c36 = arith.constant 36 : index
    %c0_273 = arith.constant 0 : index
    %515 = vector.load %arg10[%c0_272, %c36, %c0_273] : memref<3x56x224xbf16, #tpu.memory_space<vmem>>, vector<1x6x224xbf16>
    %516 = vector.shape_cast %515 : vector<1x6x224xbf16> to vector<6x224xbf16>
    %517 = vector.shape_cast %514 : vector<6x224xbf16> to vector<1x6x224xbf16>
    tpu.vector_store %arg10[%c0_272, %c36, %c0_273], %517 {strides = array<i32>} : memref<3x56x224xbf16, #tpu.memory_space<vmem>>, vector<1x6x224xbf16>,
    %518 = vector.extract_strided_slice %507 {offsets = [1, 0], sizes = [6, 224], strides = [1, 1]} : vector<7x224xbf16> to vector<6x224xbf16>
    %c2_274 = arith.constant 2 : index
    %c35_275 = arith.constant 35 : index
    %c0_276 = arith.constant 0 : index
    %519 = vector.load %arg10[%c2_274, %c35_275, %c0_276] : memref<3x56x224xbf16, #tpu.memory_space<vmem>>, vector<1x6x224xbf16>
    %520 = vector.shape_cast %519 : vector<1x6x224xbf16> to vector<6x224xbf16>
    %521 = vector.shape_cast %518 : vector<6x224xbf16> to vector<1x6x224xbf16>
    tpu.vector_store %arg10[%c2_274, %c35_275, %c0_276], %521 {strides = array<i32>} : memref<3x56x224xbf16, #tpu.memory_space<vmem>>, vector<1x6x224xbf16>,
    %c2_277 = arith.constant 2 : index
    %c41 = arith.constant 41 : index
    %c0_278 = arith.constant 0 : index
    %522 = vector.load %arg10[%c2_277, %c41, %c0_278] : memref<3x56x224xbf16, #tpu.memory_space<vmem>>, vector<1x1x224xbf16>
    %523 = vector.shape_cast %522 : vector<1x1x224xbf16> to vector<1x224xbf16>
    %524 = vector.shape_cast %0 : vector<1x224xbf16> to vector<1x1x224xbf16>
    tpu.vector_store %arg10[%c2_277, %c41, %c0_278], %524 {strides = array<i32>} : memref<3x56x224xbf16, #tpu.memory_space<vmem>>, vector<1x1x224xbf16>,
    %c8_i32_279 = arith.constant 8 : i32
    %525 = arith.muli %arg0, %c8_i32_279 : i32
    %c6_i32_280 = arith.constant 6 : i32
    %526 = arith.addi %525, %c6_i32_280 : i32
    %c8_i32_281 = arith.constant 8 : i32
    %527 = arith.muli %526, %c8_i32_281 : i32
    %c0_i32_282 = arith.constant 0 : i32
    %528 = arith.addi %527, %c0_i32_282 : i32
    %529 = arith.index_cast %528 : i32 to index
    %530 = memref.load %arg1[%529] : memref<128xf32, #tpu.memory_space<smem>>
    %c0_283 = arith.constant 0 : index
    %c0_284 = arith.constant 0 : index
    %c0_285 = arith.constant 0 : index
    %531 = vector.load %arg2[%c0_283, %c0_284, %c0_285] : memref<8x7x224xf32, #tpu.memory_space<vmem>>, vector<1x7x224xf32>
    %532 = vector.shape_cast %531 : vector<1x7x224xf32> to vector<7x224xf32>
    %533 = vector.broadcast %530 : f32 to vector<7x224xf32>
    %534 = arith.mulf %533, %532 : vector<7x224xf32>
    %535 = arith.addf %1, %534 : vector<7x224xf32>
    %c1_i32_286 = arith.constant 1 : i32
    %536 = arith.addi %527, %c1_i32_286 : i32
    %537 = arith.index_cast %536 : i32 to index
    %538 = memref.load %arg1[%537] : memref<128xf32, #tpu.memory_space<smem>>
    %c1_287 = arith.constant 1 : index
    %c0_288 = arith.constant 0 : index
    %c0_289 = arith.constant 0 : index
    %539 = vector.load %arg2[%c1_287, %c0_288, %c0_289] : memref<8x7x224xf32, #tpu.memory_space<vmem>>, vector<1x7x224xf32>
    %540 = vector.shape_cast %539 : vector<1x7x224xf32> to vector<7x224xf32>
    %541 = vector.broadcast %538 : f32 to vector<7x224xf32>
    %542 = arith.mulf %541, %540 : vector<7x224xf32>
    %543 = arith.addf %535, %542 : vector<7x224xf32>
    %c2_i32_290 = arith.constant 2 : i32
    %544 = arith.addi %527, %c2_i32_290 : i32
    %545 = arith.index_cast %544 : i32 to index
    %546 = memref.load %arg1[%545] : memref<128xf32, #tpu.memory_space<smem>>
    %c2_291 = arith.constant 2 : index
    %c0_292 = arith.constant 0 : index
    %c0_293 = arith.constant 0 : index
    %547 = vector.load %arg2[%c2_291, %c0_292, %c0_293] : memref<8x7x224xf32, #tpu.memory_space<vmem>>, vector<1x7x224xf32>
    %548 = vector.shape_cast %547 : vector<1x7x224xf32> to vector<7x224xf32>
    %549 = vector.broadcast %546 : f32 to vector<7x224xf32>
    %550 = arith.mulf %549, %548 : vector<7x224xf32>
    %551 = arith.addf %543, %550 : vector<7x224xf32>
    %c3_i32_294 = arith.constant 3 : i32
    %552 = arith.addi %527, %c3_i32_294 : i32
    %553 = arith.index_cast %552 : i32 to index
    %554 = memref.load %arg1[%553] : memref<128xf32, #tpu.memory_space<smem>>
    %c3_295 = arith.constant 3 : index
    %c0_296 = arith.constant 0 : index
    %c0_297 = arith.constant 0 : index
    %555 = vector.load %arg2[%c3_295, %c0_296, %c0_297] : memref<8x7x224xf32, #tpu.memory_space<vmem>>, vector<1x7x224xf32>
    %556 = vector.shape_cast %555 : vector<1x7x224xf32> to vector<7x224xf32>
    %557 = vector.broadcast %554 : f32 to vector<7x224xf32>
    %558 = arith.mulf %557, %556 : vector<7x224xf32>
    %559 = arith.addf %551, %558 : vector<7x224xf32>
    %c4_i32_298 = arith.constant 4 : i32
    %560 = arith.addi %527, %c4_i32_298 : i32
    %561 = arith.index_cast %560 : i32 to index
    %562 = memref.load %arg1[%561] : memref<128xf32, #tpu.memory_space<smem>>
    %c4_299 = arith.constant 4 : index
    %c0_300 = arith.constant 0 : index
    %c0_301 = arith.constant 0 : index
    %563 = vector.load %arg2[%c4_299, %c0_300, %c0_301] : memref<8x7x224xf32, #tpu.memory_space<vmem>>, vector<1x7x224xf32>
    %564 = vector.shape_cast %563 : vector<1x7x224xf32> to vector<7x224xf32>
    %565 = vector.broadcast %562 : f32 to vector<7x224xf32>
    %566 = arith.mulf %565, %564 : vector<7x224xf32>
    %567 = arith.addf %559, %566 : vector<7x224xf32>
    %c5_i32_302 = arith.constant 5 : i32
    %568 = arith.addi %527, %c5_i32_302 : i32
    %569 = arith.index_cast %568 : i32 to index
    %570 = memref.load %arg1[%569] : memref<128xf32, #tpu.memory_space<smem>>
    %c5_303 = arith.constant 5 : index
    %c0_304 = arith.constant 0 : index
    %c0_305 = arith.constant 0 : index
    %571 = vector.load %arg2[%c5_303, %c0_304, %c0_305] : memref<8x7x224xf32, #tpu.memory_space<vmem>>, vector<1x7x224xf32>
    %572 = vector.shape_cast %571 : vector<1x7x224xf32> to vector<7x224xf32>
    %573 = vector.broadcast %570 : f32 to vector<7x224xf32>
    %574 = arith.mulf %573, %572 : vector<7x224xf32>
    %575 = arith.addf %567, %574 : vector<7x224xf32>
    %c6_i32_306 = arith.constant 6 : i32
    %576 = arith.addi %527, %c6_i32_306 : i32
    %577 = arith.index_cast %576 : i32 to index
    %578 = memref.load %arg1[%577] : memref<128xf32, #tpu.memory_space<smem>>
    %c6_307 = arith.constant 6 : index
    %c0_308 = arith.constant 0 : index
    %c0_309 = arith.constant 0 : index
    %579 = vector.load %arg2[%c6_307, %c0_308, %c0_309] : memref<8x7x224xf32, #tpu.memory_space<vmem>>, vector<1x7x224xf32>
    %580 = vector.shape_cast %579 : vector<1x7x224xf32> to vector<7x224xf32>
    %581 = vector.broadcast %578 : f32 to vector<7x224xf32>
    %582 = arith.mulf %581, %580 : vector<7x224xf32>
    %583 = arith.addf %575, %582 : vector<7x224xf32>
    %c7_i32_310 = arith.constant 7 : i32
    %584 = arith.addi %527, %c7_i32_310 : i32
    %585 = arith.index_cast %584 : i32 to index
    %586 = memref.load %arg1[%585] : memref<128xf32, #tpu.memory_space<smem>>
    %c7_311 = arith.constant 7 : index
    %c0_312 = arith.constant 0 : index
    %c0_313 = arith.constant 0 : index
    %587 = vector.load %arg2[%c7_311, %c0_312, %c0_313] : memref<8x7x224xf32, #tpu.memory_space<vmem>>, vector<1x7x224xf32>
    %588 = vector.shape_cast %587 : vector<1x7x224xf32> to vector<7x224xf32>
    %589 = vector.broadcast %586 : f32 to vector<7x224xf32>
    %590 = arith.mulf %589, %588 : vector<7x224xf32>
    %591 = arith.addf %583, %590 : vector<7x224xf32>
    %cst_314 = arith.constant 0.000000e+00 : f32
    %592 = vector.broadcast %cst_314 : f32 to vector<7x224xf32>
    %593 = arith.maximumf %591, %592 : vector<7x224xf32>
    %594 = arith.truncf %593 : vector<7x224xf32> to vector<7x224xbf16>
    %c1_315 = arith.constant 1 : index
    %c42 = arith.constant 42 : index
    %c0_316 = arith.constant 0 : index
    %595 = vector.load %arg10[%c1_315, %c42, %c0_316] : memref<3x56x224xbf16, #tpu.memory_space<vmem>>, vector<1x7x224xbf16>
    %596 = vector.shape_cast %595 : vector<1x7x224xbf16> to vector<7x224xbf16>
    %597 = vector.shape_cast %594 : vector<7x224xbf16> to vector<1x7x224xbf16>
    tpu.vector_store %arg10[%c1_315, %c42, %c0_316], %597 {strides = array<i32>} : memref<3x56x224xbf16, #tpu.memory_space<vmem>>, vector<1x7x224xbf16>,
    %c0_317 = arith.constant 0 : index
    %c42_318 = arith.constant 42 : index
    %c0_319 = arith.constant 0 : index
    %598 = vector.load %arg10[%c0_317, %c42_318, %c0_319] : memref<3x56x224xbf16, #tpu.memory_space<vmem>>, vector<1x1x224xbf16>
    %599 = vector.shape_cast %598 : vector<1x1x224xbf16> to vector<1x224xbf16>
    %600 = vector.shape_cast %0 : vector<1x224xbf16> to vector<1x1x224xbf16>
    tpu.vector_store %arg10[%c0_317, %c42_318, %c0_319], %600 {strides = array<i32>} : memref<3x56x224xbf16, #tpu.memory_space<vmem>>, vector<1x1x224xbf16>,
    %601 = vector.extract_strided_slice %594 {offsets = [0, 0], sizes = [6, 224], strides = [1, 1]} : vector<7x224xbf16> to vector<6x224xbf16>
    %c0_320 = arith.constant 0 : index
    %c43 = arith.constant 43 : index
    %c0_321 = arith.constant 0 : index
    %602 = vector.load %arg10[%c0_320, %c43, %c0_321] : memref<3x56x224xbf16, #tpu.memory_space<vmem>>, vector<1x6x224xbf16>
    %603 = vector.shape_cast %602 : vector<1x6x224xbf16> to vector<6x224xbf16>
    %604 = vector.shape_cast %601 : vector<6x224xbf16> to vector<1x6x224xbf16>
    tpu.vector_store %arg10[%c0_320, %c43, %c0_321], %604 {strides = array<i32>} : memref<3x56x224xbf16, #tpu.memory_space<vmem>>, vector<1x6x224xbf16>,
    %605 = vector.extract_strided_slice %594 {offsets = [1, 0], sizes = [6, 224], strides = [1, 1]} : vector<7x224xbf16> to vector<6x224xbf16>
    %c2_322 = arith.constant 2 : index
    %c42_323 = arith.constant 42 : index
    %c0_324 = arith.constant 0 : index
    %606 = vector.load %arg10[%c2_322, %c42_323, %c0_324] : memref<3x56x224xbf16, #tpu.memory_space<vmem>>, vector<1x6x224xbf16>
    %607 = vector.shape_cast %606 : vector<1x6x224xbf16> to vector<6x224xbf16>
    %608 = vector.shape_cast %605 : vector<6x224xbf16> to vector<1x6x224xbf16>
    tpu.vector_store %arg10[%c2_322, %c42_323, %c0_324], %608 {strides = array<i32>} : memref<3x56x224xbf16, #tpu.memory_space<vmem>>, vector<1x6x224xbf16>,
    %c2_325 = arith.constant 2 : index
    %c48 = arith.constant 48 : index
    %c0_326 = arith.constant 0 : index
    %609 = vector.load %arg10[%c2_325, %c48, %c0_326] : memref<3x56x224xbf16, #tpu.memory_space<vmem>>, vector<1x1x224xbf16>
    %610 = vector.shape_cast %609 : vector<1x1x224xbf16> to vector<1x224xbf16>
    %611 = vector.shape_cast %0 : vector<1x224xbf16> to vector<1x1x224xbf16>
    tpu.vector_store %arg10[%c2_325, %c48, %c0_326], %611 {strides = array<i32>} : memref<3x56x224xbf16, #tpu.memory_space<vmem>>, vector<1x1x224xbf16>,
    %c8_i32_327 = arith.constant 8 : i32
    %612 = arith.muli %arg0, %c8_i32_327 : i32
    %c7_i32_328 = arith.constant 7 : i32
    %613 = arith.addi %612, %c7_i32_328 : i32
    %c8_i32_329 = arith.constant 8 : i32
    %614 = arith.muli %613, %c8_i32_329 : i32
    %c0_i32_330 = arith.constant 0 : i32
    %615 = arith.addi %614, %c0_i32_330 : i32
    %616 = arith.index_cast %615 : i32 to index
    %617 = memref.load %arg1[%616] : memref<128xf32, #tpu.memory_space<smem>>
    %c0_331 = arith.constant 0 : index
    %c0_332 = arith.constant 0 : index
    %c0_333 = arith.constant 0 : index
    %618 = vector.load %arg2[%c0_331, %c0_332, %c0_333] : memref<8x7x224xf32, #tpu.memory_space<vmem>>, vector<1x7x224xf32>
    %619 = vector.shape_cast %618 : vector<1x7x224xf32> to vector<7x224xf32>
    %620 = vector.broadcast %617 : f32 to vector<7x224xf32>
    %621 = arith.mulf %620, %619 : vector<7x224xf32>
    %622 = arith.addf %1, %621 : vector<7x224xf32>
    %c1_i32_334 = arith.constant 1 : i32
    %623 = arith.addi %614, %c1_i32_334 : i32
    %624 = arith.index_cast %623 : i32 to index
    %625 = memref.load %arg1[%624] : memref<128xf32, #tpu.memory_space<smem>>
    %c1_335 = arith.constant 1 : index
    %c0_336 = arith.constant 0 : index
    %c0_337 = arith.constant 0 : index
    %626 = vector.load %arg2[%c1_335, %c0_336, %c0_337] : memref<8x7x224xf32, #tpu.memory_space<vmem>>, vector<1x7x224xf32>
    %627 = vector.shape_cast %626 : vector<1x7x224xf32> to vector<7x224xf32>
    %628 = vector.broadcast %625 : f32 to vector<7x224xf32>
    %629 = arith.mulf %628, %627 : vector<7x224xf32>
    %630 = arith.addf %622, %629 : vector<7x224xf32>
    %c2_i32_338 = arith.constant 2 : i32
    %631 = arith.addi %614, %c2_i32_338 : i32
    %632 = arith.index_cast %631 : i32 to index
    %633 = memref.load %arg1[%632] : memref<128xf32, #tpu.memory_space<smem>>
    %c2_339 = arith.constant 2 : index
    %c0_340 = arith.constant 0 : index
    %c0_341 = arith.constant 0 : index
    %634 = vector.load %arg2[%c2_339, %c0_340, %c0_341] : memref<8x7x224xf32, #tpu.memory_space<vmem>>, vector<1x7x224xf32>
    %635 = vector.shape_cast %634 : vector<1x7x224xf32> to vector<7x224xf32>
    %636 = vector.broadcast %633 : f32 to vector<7x224xf32>
    %637 = arith.mulf %636, %635 : vector<7x224xf32>
    %638 = arith.addf %630, %637 : vector<7x224xf32>
    %c3_i32_342 = arith.constant 3 : i32
    %639 = arith.addi %614, %c3_i32_342 : i32
    %640 = arith.index_cast %639 : i32 to index
    %641 = memref.load %arg1[%640] : memref<128xf32, #tpu.memory_space<smem>>
    %c3_343 = arith.constant 3 : index
    %c0_344 = arith.constant 0 : index
    %c0_345 = arith.constant 0 : index
    %642 = vector.load %arg2[%c3_343, %c0_344, %c0_345] : memref<8x7x224xf32, #tpu.memory_space<vmem>>, vector<1x7x224xf32>
    %643 = vector.shape_cast %642 : vector<1x7x224xf32> to vector<7x224xf32>
    %644 = vector.broadcast %641 : f32 to vector<7x224xf32>
    %645 = arith.mulf %644, %643 : vector<7x224xf32>
    %646 = arith.addf %638, %645 : vector<7x224xf32>
    %c4_i32_346 = arith.constant 4 : i32
    %647 = arith.addi %614, %c4_i32_346 : i32
    %648 = arith.index_cast %647 : i32 to index
    %649 = memref.load %arg1[%648] : memref<128xf32, #tpu.memory_space<smem>>
    %c4_347 = arith.constant 4 : index
    %c0_348 = arith.constant 0 : index
    %c0_349 = arith.constant 0 : index
    %650 = vector.load %arg2[%c4_347, %c0_348, %c0_349] : memref<8x7x224xf32, #tpu.memory_space<vmem>>, vector<1x7x224xf32>
    %651 = vector.shape_cast %650 : vector<1x7x224xf32> to vector<7x224xf32>
    %652 = vector.broadcast %649 : f32 to vector<7x224xf32>
    %653 = arith.mulf %652, %651 : vector<7x224xf32>
    %654 = arith.addf %646, %653 : vector<7x224xf32>
    %c5_i32_350 = arith.constant 5 : i32
    %655 = arith.addi %614, %c5_i32_350 : i32
    %656 = arith.index_cast %655 : i32 to index
    %657 = memref.load %arg1[%656] : memref<128xf32, #tpu.memory_space<smem>>
    %c5_351 = arith.constant 5 : index
    %c0_352 = arith.constant 0 : index
    %c0_353 = arith.constant 0 : index
    %658 = vector.load %arg2[%c5_351, %c0_352, %c0_353] : memref<8x7x224xf32, #tpu.memory_space<vmem>>, vector<1x7x224xf32>
    %659 = vector.shape_cast %658 : vector<1x7x224xf32> to vector<7x224xf32>
    %660 = vector.broadcast %657 : f32 to vector<7x224xf32>
    %661 = arith.mulf %660, %659 : vector<7x224xf32>
    %662 = arith.addf %654, %661 : vector<7x224xf32>
    %c6_i32_354 = arith.constant 6 : i32
    %663 = arith.addi %614, %c6_i32_354 : i32
    %664 = arith.index_cast %663 : i32 to index
    %665 = memref.load %arg1[%664] : memref<128xf32, #tpu.memory_space<smem>>
    %c6_355 = arith.constant 6 : index
    %c0_356 = arith.constant 0 : index
    %c0_357 = arith.constant 0 : index
    %666 = vector.load %arg2[%c6_355, %c0_356, %c0_357] : memref<8x7x224xf32, #tpu.memory_space<vmem>>, vector<1x7x224xf32>
    %667 = vector.shape_cast %666 : vector<1x7x224xf32> to vector<7x224xf32>
    %668 = vector.broadcast %665 : f32 to vector<7x224xf32>
    %669 = arith.mulf %668, %667 : vector<7x224xf32>
    %670 = arith.addf %662, %669 : vector<7x224xf32>
    %c7_i32_358 = arith.constant 7 : i32
    %671 = arith.addi %614, %c7_i32_358 : i32
    %672 = arith.index_cast %671 : i32 to index
    %673 = memref.load %arg1[%672] : memref<128xf32, #tpu.memory_space<smem>>
    %c7_359 = arith.constant 7 : index
    %c0_360 = arith.constant 0 : index
    %c0_361 = arith.constant 0 : index
    %674 = vector.load %arg2[%c7_359, %c0_360, %c0_361] : memref<8x7x224xf32, #tpu.memory_space<vmem>>, vector<1x7x224xf32>
    %675 = vector.shape_cast %674 : vector<1x7x224xf32> to vector<7x224xf32>
    %676 = vector.broadcast %673 : f32 to vector<7x224xf32>
    %677 = arith.mulf %676, %675 : vector<7x224xf32>
    %678 = arith.addf %670, %677 : vector<7x224xf32>
    %cst_362 = arith.constant 0.000000e+00 : f32
    %679 = vector.broadcast %cst_362 : f32 to vector<7x224xf32>
    %680 = arith.maximumf %678, %679 : vector<7x224xf32>
    %681 = arith.truncf %680 : vector<7x224xf32> to vector<7x224xbf16>
    %c1_363 = arith.constant 1 : index
    %c49 = arith.constant 49 : index
    %c0_364 = arith.constant 0 : index
    %682 = vector.load %arg10[%c1_363, %c49, %c0_364] : memref<3x56x224xbf16, #tpu.memory_space<vmem>>, vector<1x7x224xbf16>
    %683 = vector.shape_cast %682 : vector<1x7x224xbf16> to vector<7x224xbf16>
    %684 = vector.shape_cast %681 : vector<7x224xbf16> to vector<1x7x224xbf16>
    tpu.vector_store %arg10[%c1_363, %c49, %c0_364], %684 {strides = array<i32>} : memref<3x56x224xbf16, #tpu.memory_space<vmem>>, vector<1x7x224xbf16>,
    %c0_365 = arith.constant 0 : index
    %c49_366 = arith.constant 49 : index
    %c0_367 = arith.constant 0 : index
    %685 = vector.load %arg10[%c0_365, %c49_366, %c0_367] : memref<3x56x224xbf16, #tpu.memory_space<vmem>>, vector<1x1x224xbf16>
    %686 = vector.shape_cast %685 : vector<1x1x224xbf16> to vector<1x224xbf16>
    %687 = vector.shape_cast %0 : vector<1x224xbf16> to vector<1x1x224xbf16>
    tpu.vector_store %arg10[%c0_365, %c49_366, %c0_367], %687 {strides = array<i32>} : memref<3x56x224xbf16, #tpu.memory_space<vmem>>, vector<1x1x224xbf16>,
    %688 = vector.extract_strided_slice %681 {offsets = [0, 0], sizes = [6, 224], strides = [1, 1]} : vector<7x224xbf16> to vector<6x224xbf16>
    %c0_368 = arith.constant 0 : index
    %c50 = arith.constant 50 : index
    %c0_369 = arith.constant 0 : index
    %689 = vector.load %arg10[%c0_368, %c50, %c0_369] : memref<3x56x224xbf16, #tpu.memory_space<vmem>>, vector<1x6x224xbf16>
    %690 = vector.shape_cast %689 : vector<1x6x224xbf16> to vector<6x224xbf16>
    %691 = vector.shape_cast %688 : vector<6x224xbf16> to vector<1x6x224xbf16>
    tpu.vector_store %arg10[%c0_368, %c50, %c0_369], %691 {strides = array<i32>} : memref<3x56x224xbf16, #tpu.memory_space<vmem>>, vector<1x6x224xbf16>,
    %692 = vector.extract_strided_slice %681 {offsets = [1, 0], sizes = [6, 224], strides = [1, 1]} : vector<7x224xbf16> to vector<6x224xbf16>
    %c2_370 = arith.constant 2 : index
    %c49_371 = arith.constant 49 : index
    %c0_372 = arith.constant 0 : index
    %693 = vector.load %arg10[%c2_370, %c49_371, %c0_372] : memref<3x56x224xbf16, #tpu.memory_space<vmem>>, vector<1x6x224xbf16>
    %694 = vector.shape_cast %693 : vector<1x6x224xbf16> to vector<6x224xbf16>
    %695 = vector.shape_cast %692 : vector<6x224xbf16> to vector<1x6x224xbf16>
    tpu.vector_store %arg10[%c2_370, %c49_371, %c0_372], %695 {strides = array<i32>} : memref<3x56x224xbf16, #tpu.memory_space<vmem>>, vector<1x6x224xbf16>,
    %c2_373 = arith.constant 2 : index
    %c55 = arith.constant 55 : index
    %c0_374 = arith.constant 0 : index
    %696 = vector.load %arg10[%c2_373, %c55, %c0_374] : memref<3x56x224xbf16, #tpu.memory_space<vmem>>, vector<1x1x224xbf16>
    %697 = vector.shape_cast %696 : vector<1x1x224xbf16> to vector<1x224xbf16>
    %698 = vector.shape_cast %0 : vector<1x224xbf16> to vector<1x1x224xbf16>
    tpu.vector_store %arg10[%c2_373, %c55, %c0_374], %698 {strides = array<i32>} : memref<3x56x224xbf16, #tpu.memory_space<vmem>>, vector<1x1x224xbf16>,
    %cst_375 = arith.constant 0.000000e+00 : f32
    %699 = vector.broadcast %cst_375 : f32 to vector<56x224xf32>
    %c0_376 = arith.constant 0 : index
    %c0_377 = arith.constant 0 : index
    %c0_378 = arith.constant 0 : index
    %700 = vector.load %arg10[%c0_376, %c0_377, %c0_378] : memref<3x56x224xbf16, #tpu.memory_space<vmem>>, vector<1x56x224xbf16>
    %701 = vector.shape_cast %700 : vector<1x56x224xbf16> to vector<56x224xbf16>
    %c0_379 = arith.constant 0 : index
    %c0_380 = arith.constant 0 : index
    %c0_381 = arith.constant 0 : index
    %702 = vector.load %arg4[%c0_379, %c0_380, %c0_381] : memref<4x224x224xbf16, #tpu.memory_space<vmem>>, vector<1x224x224xbf16>
    %703 = vector.shape_cast %702 : vector<1x224x224xbf16> to vector<224x224xbf16>
    %cst_382 = arith.constant dense<0.000000e+00> : vector<56x224xf32>
    %704 = tpu.matmul %701, %703, %cst_382 {dimension_numbers = #tpu.dot_dimension_numbers<[1], [0], [0], [1], [0, 0, 1, 1], [], []>} : vector<56x224xbf16>, vector<224x224xbf16>, vector<56x224xf32> -> vector<56x224xf32>
    %705 = arith.addf %699, %704 : vector<56x224xf32>
    %c1_383 = arith.constant 1 : index
    %c0_384 = arith.constant 0 : index
    %c0_385 = arith.constant 0 : index
    %706 = vector.load %arg10[%c1_383, %c0_384, %c0_385] : memref<3x56x224xbf16, #tpu.memory_space<vmem>>, vector<1x56x224xbf16>
    %707 = vector.shape_cast %706 : vector<1x56x224xbf16> to vector<56x224xbf16>
    %c1_386 = arith.constant 1 : index
    %c0_387 = arith.constant 0 : index
    %c0_388 = arith.constant 0 : index
    %708 = vector.load %arg4[%c1_386, %c0_387, %c0_388] : memref<4x224x224xbf16, #tpu.memory_space<vmem>>, vector<1x224x224xbf16>
    %709 = vector.shape_cast %708 : vector<1x224x224xbf16> to vector<224x224xbf16>
    %cst_389 = arith.constant dense<0.000000e+00> : vector<56x224xf32>
    %710 = tpu.matmul %707, %709, %cst_389 {dimension_numbers = #tpu.dot_dimension_numbers<[1], [0], [0], [1], [0, 0, 1, 1], [], []>} : vector<56x224xbf16>, vector<224x224xbf16>, vector<56x224xf32> -> vector<56x224xf32>
    %711 = arith.addf %705, %710 : vector<56x224xf32>
    %712 = vector.broadcast %2 : vector<1x224xf32> to vector<56x224xf32>
    %713 = arith.addf %711, %712 : vector<56x224xf32>
    %cst_390 = arith.constant 0.000000e+00 : f32
    %714 = vector.broadcast %cst_390 : f32 to vector<56x224xf32>
    %715 = arith.maximumf %713, %714 : vector<56x224xf32>
    %716 = arith.truncf %715 : vector<56x224xf32> to vector<56x224xbf16>
    %cst_391 = arith.constant 0.000000e+00 : f32
    %717 = vector.broadcast %cst_391 : f32 to vector<56x224xf32>
    %c1_392 = arith.constant 1 : index
    %c0_393 = arith.constant 0 : index
    %c0_394 = arith.constant 0 : index
    %718 = vector.load %arg10[%c1_392, %c0_393, %c0_394] : memref<3x56x224xbf16, #tpu.memory_space<vmem>>, vector<1x56x224xbf16>
    %719 = vector.shape_cast %718 : vector<1x56x224xbf16> to vector<56x224xbf16>
    %c2_395 = arith.constant 2 : index
    %c0_396 = arith.constant 0 : index
    %c0_397 = arith.constant 0 : index
    %720 = vector.load %arg4[%c2_395, %c0_396, %c0_397] : memref<4x224x224xbf16, #tpu.memory_space<vmem>>, vector<1x224x224xbf16>
    %721 = vector.shape_cast %720 : vector<1x224x224xbf16> to vector<224x224xbf16>
    %cst_398 = arith.constant dense<0.000000e+00> : vector<56x224xf32>
    %722 = tpu.matmul %719, %721, %cst_398 {dimension_numbers = #tpu.dot_dimension_numbers<[1], [0], [0], [1], [0, 0, 1, 1], [], []>} : vector<56x224xbf16>, vector<224x224xbf16>, vector<56x224xf32> -> vector<56x224xf32>
    %723 = arith.addf %717, %722 : vector<56x224xf32>
    %c2_399 = arith.constant 2 : index
    %c0_400 = arith.constant 0 : index
    %c0_401 = arith.constant 0 : index
    %724 = vector.load %arg10[%c2_399, %c0_400, %c0_401] : memref<3x56x224xbf16, #tpu.memory_space<vmem>>, vector<1x56x224xbf16>
    %725 = vector.shape_cast %724 : vector<1x56x224xbf16> to vector<56x224xbf16>
    %c3_402 = arith.constant 3 : index
    %c0_403 = arith.constant 0 : index
    %c0_404 = arith.constant 0 : index
    %726 = vector.load %arg4[%c3_402, %c0_403, %c0_404] : memref<4x224x224xbf16, #tpu.memory_space<vmem>>, vector<1x224x224xbf16>
    %727 = vector.shape_cast %726 : vector<1x224x224xbf16> to vector<224x224xbf16>
    %cst_405 = arith.constant dense<0.000000e+00> : vector<56x224xf32>
    %728 = tpu.matmul %725, %727, %cst_405 {dimension_numbers = #tpu.dot_dimension_numbers<[1], [0], [0], [1], [0, 0, 1, 1], [], []>} : vector<56x224xbf16>, vector<224x224xbf16>, vector<56x224xf32> -> vector<56x224xf32>
    %729 = arith.addf %723, %728 : vector<56x224xf32>
    %730 = vector.broadcast %2 : vector<1x224xf32> to vector<56x224xf32>
    %731 = arith.addf %729, %730 : vector<56x224xf32>
    %cst_406 = arith.constant 0.000000e+00 : f32
    %732 = vector.broadcast %cst_406 : f32 to vector<56x224xf32>
    %733 = arith.maximumf %731, %732 : vector<56x224xf32>
    %734 = arith.truncf %733 : vector<56x224xf32> to vector<56x224xbf16>
    %cst_407 = arith.constant 0.000000e+00 : f32
    %735 = vector.broadcast %cst_407 : f32 to vector<112x28xf32>
    %cst_408 = arith.constant 0.000000e+00 : f32
    %736 = vector.broadcast %cst_408 : f32 to vector<112x28xf32>
    %c0_409 = arith.constant 0 : index
    %c0_410 = arith.constant 0 : index
    %c0_411 = arith.constant 0 : index
    %c0_412 = arith.constant 0 : index
    %737 = vector.load %arg8[%c0_409, %c0_410, %c0_411, %c0_412] : memref<3x2x112x56xbf16, #tpu.memory_space<vmem>>, vector<1x1x112x56xbf16>
    %738 = vector.shape_cast %737 : vector<1x1x112x56xbf16> to vector<112x56xbf16>
    %cst_413 = arith.constant dense<0.000000e+00> : vector<112x224xf32>
    %739 = tpu.matmul %738, %716, %cst_413 {dimension_numbers = #tpu.dot_dimension_numbers<[1], [0], [0], [1], [0, 0, 1, 1], [], []>} : vector<112x56xbf16>, vector<56x224xbf16>, vector<112x224xf32> -> vector<112x224xf32>
    %c0_414 = arith.constant 0 : index
    %c1_415 = arith.constant 1 : index
    %c0_416 = arith.constant 0 : index
    %c0_417 = arith.constant 0 : index
    %740 = vector.load %arg8[%c0_414, %c1_415, %c0_416, %c0_417] : memref<3x2x112x56xbf16, #tpu.memory_space<vmem>>, vector<1x1x112x56xbf16>
    %741 = vector.shape_cast %740 : vector<1x1x112x56xbf16> to vector<112x56xbf16>
    %cst_418 = arith.constant dense<0.000000e+00> : vector<112x224xf32>
    %742 = tpu.matmul %741, %734, %cst_418 {dimension_numbers = #tpu.dot_dimension_numbers<[1], [0], [0], [1], [0, 0, 1, 1], [], []>} : vector<112x56xbf16>, vector<56x224xbf16>, vector<112x224xf32> -> vector<112x224xf32>
    %743 = arith.addf %739, %742 : vector<112x224xf32>
    %744 = arith.truncf %743 : vector<112x224xf32> to vector<112x224xbf16>
    %c0_419 = arith.constant 0 : index
    %c0_420 = arith.constant 0 : index
    %c0_421 = arith.constant 0 : index
    %745 = vector.load %arg6[%c0_419, %c0_420, %c0_421] : memref<4x224x28xbf16, #tpu.memory_space<vmem>>, vector<1x224x28xbf16>
    %746 = vector.shape_cast %745 : vector<1x224x28xbf16> to vector<224x28xbf16>
    %cst_422 = arith.constant dense<0.000000e+00> : vector<112x28xf32>
    %747 = tpu.matmul %744, %746, %cst_422 {dimension_numbers = #tpu.dot_dimension_numbers<[1], [0], [0], [1], [0, 0, 1, 1], [], []>} : vector<112x224xbf16>, vector<224x28xbf16>, vector<112x28xf32> -> vector<112x28xf32>
    %748 = arith.addf %735, %747 : vector<112x28xf32>
    %c1_423 = arith.constant 1 : index
    %c0_424 = arith.constant 0 : index
    %c0_425 = arith.constant 0 : index
    %c0_426 = arith.constant 0 : index
    %749 = vector.load %arg8[%c1_423, %c0_424, %c0_425, %c0_426] : memref<3x2x112x56xbf16, #tpu.memory_space<vmem>>, vector<1x1x112x56xbf16>
    %750 = vector.shape_cast %749 : vector<1x1x112x56xbf16> to vector<112x56xbf16>
    %cst_427 = arith.constant dense<0.000000e+00> : vector<112x224xf32>
    %751 = tpu.matmul %750, %716, %cst_427 {dimension_numbers = #tpu.dot_dimension_numbers<[1], [0], [0], [1], [0, 0, 1, 1], [], []>} : vector<112x56xbf16>, vector<56x224xbf16>, vector<112x224xf32> -> vector<112x224xf32>
    %c1_428 = arith.constant 1 : index
    %c1_429 = arith.constant 1 : index
    %c0_430 = arith.constant 0 : index
    %c0_431 = arith.constant 0 : index
    %752 = vector.load %arg8[%c1_428, %c1_429, %c0_430, %c0_431] : memref<3x2x112x56xbf16, #tpu.memory_space<vmem>>, vector<1x1x112x56xbf16>
    %753 = vector.shape_cast %752 : vector<1x1x112x56xbf16> to vector<112x56xbf16>
    %cst_432 = arith.constant dense<0.000000e+00> : vector<112x224xf32>
    %754 = tpu.matmul %753, %734, %cst_432 {dimension_numbers = #tpu.dot_dimension_numbers<[1], [0], [0], [1], [0, 0, 1, 1], [], []>} : vector<112x56xbf16>, vector<56x224xbf16>, vector<112x224xf32> -> vector<112x224xf32>
    %755 = arith.addf %751, %754 : vector<112x224xf32>
    %756 = arith.truncf %755 : vector<112x224xf32> to vector<112x224xbf16>
    %c1_433 = arith.constant 1 : index
    %c0_434 = arith.constant 0 : index
    %c0_435 = arith.constant 0 : index
    %757 = vector.load %arg6[%c1_433, %c0_434, %c0_435] : memref<4x224x28xbf16, #tpu.memory_space<vmem>>, vector<1x224x28xbf16>
    %758 = vector.shape_cast %757 : vector<1x224x28xbf16> to vector<224x28xbf16>
    %cst_436 = arith.constant dense<0.000000e+00> : vector<112x28xf32>
    %759 = tpu.matmul %756, %758, %cst_436 {dimension_numbers = #tpu.dot_dimension_numbers<[1], [0], [0], [1], [0, 0, 1, 1], [], []>} : vector<112x224xbf16>, vector<224x28xbf16>, vector<112x28xf32> -> vector<112x28xf32>
    %760 = arith.addf %748, %759 : vector<112x28xf32>
    %c2_437 = arith.constant 2 : index
    %c0_438 = arith.constant 0 : index
    %c0_439 = arith.constant 0 : index
    %761 = vector.load %arg6[%c2_437, %c0_438, %c0_439] : memref<4x224x28xbf16, #tpu.memory_space<vmem>>, vector<1x224x28xbf16>
    %762 = vector.shape_cast %761 : vector<1x224x28xbf16> to vector<224x28xbf16>
    %cst_440 = arith.constant dense<0.000000e+00> : vector<112x28xf32>
    %763 = tpu.matmul %756, %762, %cst_440 {dimension_numbers = #tpu.dot_dimension_numbers<[1], [0], [0], [1], [0, 0, 1, 1], [], []>} : vector<112x224xbf16>, vector<224x28xbf16>, vector<112x28xf32> -> vector<112x28xf32>
    %764 = arith.addf %736, %763 : vector<112x28xf32>
    %c2_441 = arith.constant 2 : index
    %c0_442 = arith.constant 0 : index
    %c0_443 = arith.constant 0 : index
    %c0_444 = arith.constant 0 : index
    %765 = vector.load %arg8[%c2_441, %c0_442, %c0_443, %c0_444] : memref<3x2x112x56xbf16, #tpu.memory_space<vmem>>, vector<1x1x112x56xbf16>
    %766 = vector.shape_cast %765 : vector<1x1x112x56xbf16> to vector<112x56xbf16>
    %cst_445 = arith.constant dense<0.000000e+00> : vector<112x224xf32>
    %767 = tpu.matmul %766, %716, %cst_445 {dimension_numbers = #tpu.dot_dimension_numbers<[1], [0], [0], [1], [0, 0, 1, 1], [], []>} : vector<112x56xbf16>, vector<56x224xbf16>, vector<112x224xf32> -> vector<112x224xf32>
    %c2_446 = arith.constant 2 : index
    %c1_447 = arith.constant 1 : index
    %c0_448 = arith.constant 0 : index
    %c0_449 = arith.constant 0 : index
    %768 = vector.load %arg8[%c2_446, %c1_447, %c0_448, %c0_449] : memref<3x2x112x56xbf16, #tpu.memory_space<vmem>>, vector<1x1x112x56xbf16>
    %769 = vector.shape_cast %768 : vector<1x1x112x56xbf16> to vector<112x56xbf16>
    %cst_450 = arith.constant dense<0.000000e+00> : vector<112x224xf32>
    %770 = tpu.matmul %769, %734, %cst_450 {dimension_numbers = #tpu.dot_dimension_numbers<[1], [0], [0], [1], [0, 0, 1, 1], [], []>} : vector<112x56xbf16>, vector<56x224xbf16>, vector<112x224xf32> -> vector<112x224xf32>
    %771 = arith.addf %767, %770 : vector<112x224xf32>
    %772 = arith.truncf %771 : vector<112x224xf32> to vector<112x224xbf16>
    %c3_451 = arith.constant 3 : index
    %c0_452 = arith.constant 0 : index
    %c0_453 = arith.constant 0 : index
    %773 = vector.load %arg6[%c3_451, %c0_452, %c0_453] : memref<4x224x28xbf16, #tpu.memory_space<vmem>>, vector<1x224x28xbf16>
    %774 = vector.shape_cast %773 : vector<1x224x28xbf16> to vector<224x28xbf16>
    %cst_454 = arith.constant dense<0.000000e+00> : vector<112x28xf32>
    %775 = tpu.matmul %772, %774, %cst_454 {dimension_numbers = #tpu.dot_dimension_numbers<[1], [0], [0], [1], [0, 0, 1, 1], [], []>} : vector<112x224xbf16>, vector<224x28xbf16>, vector<112x28xf32> -> vector<112x28xf32>
    %776 = arith.addf %764, %775 : vector<112x28xf32>
    %777 = tpu.concatenate %760, %776 in 1 : vector<112x28xf32>, vector<112x28xf32> -> vector<112x56xf32>
    %c0_455 = arith.constant 0 : index
    %778 = memref.load %arg7[%c0_455] : memref<1xf32, #tpu.memory_space<smem>>
    %779 = vector.broadcast %778 : f32 to vector<112x56xf32>
    %780 = arith.addf %777, %779 : vector<112x56xf32>
    %781 = arith.negf %780 : vector<112x56xf32>
    %782 = math.exp %781 : vector<112x56xf32>
    %cst_456 = arith.constant 1.000000e+00 : f32
    %783 = vector.broadcast %cst_456 : f32 to vector<112x56xf32>
    %784 = arith.addf %783, %782 : vector<112x56xf32>
    %785 = arith.divf %783, %784 : vector<112x56xf32>
    %c0_457 = arith.constant 0 : index
    %c0_458 = arith.constant 0 : index
    %786 = vector.load %arg9[%c0_457, %c0_458] : memref<112x56xf32, #tpu.memory_space<vmem>>, vector<112x56xf32>
    tpu.vector_store %arg9[%c0_457, %c0_458], %785 {strides = array<i32>} : memref<112x56xf32, #tpu.memory_space<vmem>>, vector<112x56xf32>,
    return
  }
  func.func @transform_0(%arg0: i32) -> i32 {
    %c0_i32 = arith.constant 0 : i32
    %c0_i32_0 = arith.constant 0 : i32
    return %c0_i32 : i32
  }
  func.func @transform_1(%arg0: i32) -> (i32, i32, i32) {
    %c0_i32 = arith.constant 0 : i32
    %c0_i32_0 = arith.constant 0 : i32
    %c0_i32_1 = arith.constant 0 : i32
    %c0_i32_2 = arith.constant 0 : i32
    return %c0_i32, %c0_i32_0, %c0_i32_1 : i32, i32, i32
  }
  func.func @transform_2(%arg0: i32) -> (i32, i32) {
    %c0_i32 = arith.constant 0 : i32
    %c0_i32_0 = arith.constant 0 : i32
    %c0_i32_1 = arith.constant 0 : i32
    return %c0_i32, %c0_i32_0 : i32, i32
  }
  func.func @transform_3(%arg0: i32) -> (i32, i32, i32) {
    %c0_i32 = arith.constant 0 : i32
    %c0_i32_0 = arith.constant 0 : i32
    %c0_i32_1 = arith.constant 0 : i32
    %c0_i32_2 = arith.constant 0 : i32
    return %c0_i32, %c0_i32_0, %c0_i32_1 : i32, i32, i32
  }
  func.func @transform_4(%arg0: i32) -> (i32, i32) {
    %c0_i32 = arith.constant 0 : i32
    %c0_i32_0 = arith.constant 0 : i32
    %c0_i32_1 = arith.constant 0 : i32
    return %c0_i32, %c0_i32_0 : i32, i32
  }
  func.func @transform_5(%arg0: i32) -> (i32, i32, i32) {
    %c0_i32 = arith.constant 0 : i32
    %c0_i32_0 = arith.constant 0 : i32
    %c0_i32_1 = arith.constant 0 : i32
    %c0_i32_2 = arith.constant 0 : i32
    return %c0_i32, %c0_i32_0, %c0_i32_1 : i32, i32, i32
  }
  func.func @transform_6(%arg0: i32) -> i32 {
    %c0_i32 = arith.constant 0 : i32
    %c0_i32_0 = arith.constant 0 : i32
    return %c0_i32 : i32
  }
  func.func @transform_7(%arg0: i32) -> (i32, i32, i32, i32) {
    %c0_i32 = arith.constant 0 : i32
    %c0_i32_0 = arith.constant 0 : i32
    %c0_i32_1 = arith.constant 0 : i32
    %c0_i32_2 = arith.constant 0 : i32
    %c0_i32_3 = arith.constant 0 : i32
    return %c0_i32, %c0_i32_0, %c0_i32_1, %c0_i32_2 : i32, i32, i32, i32
  }
  func.func @transform_8(%arg0: i32) -> (i32, i32) {
    %c0_i32 = arith.constant 0 : i32
    %c0_i32_0 = arith.constant 0 : i32
    return %arg0, %c0_i32 : i32, i32
  }
}

</mosaic_0001>

<llo_original>
// kernel: decoder_forward.1
$region0: #{decoder_forward.1}
  #allocation0 [shape = 'u32[]', space=smem, size = 0x4, offset = 0x4, fixed_abs, tag = 'smem constant byte address 0x4 - core index']
  #allocation1 [shape = 'u32[72,128]{1,0:T(1,128)}', space=vmem, size = 0x9000, scoped, tag = 'internal scratch']
  #allocation2 [shape = 'bf16[3,56,224]{2,1,0:T(8,128)(2,1)}', space=vmem, size = 0x15000, scoped, tag = 'scratch operand']
  #allocation3 [shape = 'f32[1]{0:T(128)S(6)}', space=smem, size = 0x200, scoped, tag = 'scoped memory for decoder_forward.1']
  %s0 = inlined_call_operand.vmem [shape: f32[128], index: 0, kind: input, shape index: {}]
  %s1 = inlined_call_operand.vmem [shape: f32[8,7,224], index: 1, kind: input, shape index: {}]
  %s2 = inlined_call_operand.vmem [shape: f32[7,224], index: 2, kind: input, shape index: {}]
  %s3 = inlined_call_operand.vmem [shape: bf16[4,224,224], index: 3, kind: input, shape index: {}]
  %s4 = inlined_call_operand.vmem [shape: f32[1,224], index: 4, kind: input, shape index: {}]
  %s5 = inlined_call_operand.vmem [shape: bf16[4,224,28], index: 5, kind: input, shape index: {}]
  %s6 = inlined_call_operand.<no memory space> [shape: f32[1], index: 6, kind: input, shape index: {}]
  %s7 = inlined_call_operand.vmem [shape: bf16[3,2,112,56], index: 7, kind: input, shape index: {}]
  %s8 = inlined_call_operand.vmem [shape: f32[224,56], index: 8, kind: output, shape index: {}]
  %s9 = sld [smem:[#allocation0]]
  $region69: #{decoder_forward.1} parent=0
    _
  %s11 = ssub.s32 1, %s9
  %s12 = scalar_select 0, %s11, %s9
  %13 = sst [smem:[#allocation3]] %s6
  $region1: #{decoder_forward.1} parent=0
    #allocation4 [shape = 'u8[512]{0}', space=smem, size = 0x200, scoped, tag = 'input window, operand 0, single buffered']
    #allocation5 [shape = 's32[2]{0}', space=sflag, size = 0x8, scoped, tag = 'scoped memory for decoder_forward.1']
    %14 = vsyncpa [#allocation5], 0
    loop: start=0, step=1, limit=4
    $region2: #{decoder_forward.1} parent=1 // loop_pre_header
      _
    $region3: #{decoder_forward.1} parent=1 // loop_header
      %s16 = sphi 0, %s20
      %p17 = scmp.ge.s32.totalorder %s16, 4
      %s24 = sphi 0, %s24
      %s26 = sphi 0, %s24
      %s27 = sphi 0, %s26
      %s41 = sphi 0, %s27
      %s45 = sphi 0, %s45
      %s47 = sphi 0, %s45
      %s48 = sphi 0, %s47
      %s62 = sphi 0, %s48
      %s66 = sphi 0, %s66
      %s68 = sphi 0, %s66
      %s69 = sphi 0, %s68
      %s83 = sphi 0, %s69
      %s87 = sphi 0, %s87
      %s89 = sphi 0, %s87
      %s90 = sphi 0, %s89
      %s104 = sphi 0, %s90
      %s108 = sphi 0, %s108
      %s110 = sphi 0, %s108
      %s111 = sphi 0, %s110
      %s125 = sphi 0, %s111
      %s129 = sphi 0, %s129
      %s131 = sphi 0, %s129
      %s132 = sphi 0, %s131
      %s146 = sphi 0, %s132
      %s150 = sphi 0, %s150
      %s152 = sphi 0, %s150
      %s153 = sphi 0, %s152
      %s167 = sphi 0, %s153
      %s171 = sphi 0, %s171
      %s173 = sphi 0, %s171
      %s174 = sphi 0, %s173
      %s188 = sphi 0, %s174
      %s194 = sphi 0, %s196
      %s197 = sphi 0, %s194
      %s198 = sphi 0, %s197
      %s214 = sphi 0, %s198
    $region4: #{decoder_forward.1} parent=1 // loop_header_branch
      %19 = sbr.rel (%p17) target = $region8
    $region5: #{decoder_forward.1} parent=1 // loop_body
      %s21 = ssub.s32 %s16, 1
      %s22 = ssub.s32 %s16, 2
      %s23 = sadd.s32 %s16, 1
      %s25 = sadd.s32 %s24, 1
      %p28 = scmp.eq.s32.totalorder %s16, 1
      %p29 = scmp.ne.s32.totalorder %s24, %s26
      %p30 = scmp.eq.s32.totalorder %s16, 0
      %p31 = por %p29, %p30
      %p32 = scmp.ne.s32.totalorder %s24, %s26
      %p33 = scmp.eq.s32.totalorder %s21, 1
      %p34 = por %p32, %p33
      %p35 = scmp.ne.s32.totalorder %s26, %s27
      %p36 = scmp.eq.s32.totalorder %s21, 0
      %p37 = por %p35, %p36
      %p38 = scmp.ne.s32.totalorder %s26, %s27
      %p39 = scmp.eq.s32.totalorder %s22, 1
      %p40 = por %p38, %p39
      %p42 = scmp.ne.s32.totalorder %s27, %s41
      %p43 = scmp.eq.s32.totalorder %s22, 0
      %p44 = por %p42, %p43
      %s46 = sadd.s32 %s45, 1
      %p49 = scmp.eq.s32.totalorder %s16, 1
      %p50 = scmp.ne.s32.totalorder %s45, %s47
      %p51 = scmp.eq.s32.totalorder %s16, 0
      %p52 = por %p50, %p51
      %p53 = scmp.ne.s32.totalorder %s45, %s47
      %p54 = scmp.eq.s32.totalorder %s21, 1
      %p55 = por %p53, %p54
      %p56 = scmp.ne.s32.totalorder %s47, %s48
      %p57 = scmp.eq.s32.totalorder %s21, 0
      %p58 = por %p56, %p57
      %p59 = scmp.ne.s32.totalorder %s47, %s48
      %p60 = scmp.eq.s32.totalorder %s22, 1
      %p61 = por %p59, %p60
      %p63 = scmp.ne.s32.totalorder %s48, %s62
      %p64 = scmp.eq.s32.totalorder %s22, 0
      %p65 = por %p63, %p64
      %s67 = sadd.s32 %s66, 1
      %p70 = scmp.eq.s32.totalorder %s16, 1
      %p71 = scmp.ne.s32.totalorder %s66, %s68
      %p72 = scmp.eq.s32.totalorder %s16, 0
      %p73 = por %p71, %p72
      %p74 = scmp.ne.s32.totalorder %s66, %s68
      %p75 = scmp.eq.s32.totalorder %s21, 1
      %p76 = por %p74, %p75
      %p77 = scmp.ne.s32.totalorder %s68, %s69
      %p78 = scmp.eq.s32.totalorder %s21, 0
      %p79 = por %p77, %p78
      %p80 = scmp.ne.s32.totalorder %s68, %s69
      %p81 = scmp.eq.s32.totalorder %s22, 1
      %p82 = por %p80, %p81
      %p84 = scmp.ne.s32.totalorder %s69, %s83
      %p85 = scmp.eq.s32.totalorder %s22, 0
      %p86 = por %p84, %p85
      %s88 = sadd.s32 %s87, 1
      %p91 = scmp.eq.s32.totalorder %s16, 1
      %p92 = scmp.ne.s32.totalorder %s87, %s89
      %p93 = scmp.eq.s32.totalorder %s16, 0
      %p94 = por %p92, %p93
      %p95 = scmp.ne.s32.totalorder %s87, %s89
      %p96 = scmp.eq.s32.totalorder %s21, 1
      %p97 = por %p95, %p96
      %p98 = scmp.ne.s32.totalorder %s89, %s90
      %p99 = scmp.eq.s32.totalorder %s21, 0
      %p100 = por %p98, %p99
      %p101 = scmp.ne.s32.totalorder %s89, %s90
      %p102 = scmp.eq.s32.totalorder %s22, 1
      %p103 = por %p101, %p102
      %p105 = scmp.ne.s32.totalorder %s90, %s104
      %p106 = scmp.eq.s32.totalorder %s22, 0
      %p107 = por %p105, %p106
      %s109 = sadd.s32 %s108, 1
      %p112 = scmp.eq.s32.totalorder %s16, 1
      %p113 = scmp.ne.s32.totalorder %s108, %s110
      %p114 = scmp.eq.s32.totalorder %s16, 0
      %p115 = por %p113, %p114
      %p116 = scmp.ne.s32.totalorder %s108, %s110
      %p117 = scmp.eq.s32.totalorder %s21, 1
      %p118 = por %p116, %p117
      %p119 = scmp.ne.s32.totalorder %s110, %s111
      %p120 = scmp.eq.s32.totalorder %s21, 0
      %p121 = por %p119, %p120
      %p122 = scmp.ne.s32.totalorder %s110, %s111
      %p123 = scmp.eq.s32.totalorder %s22, 1
      %p124 = por %p122, %p123
      %p126 = scmp.ne.s32.totalorder %s111, %s125
      %p127 = scmp.eq.s32.totalorder %s22, 0
      %p128 = por %p126, %p127
      %s130 = sadd.s32 %s129, 1
      %p133 = scmp.eq.s32.totalorder %s16, 1
      %p134 = scmp.ne.s32.totalorder %s129, %s131
      %p135 = scmp.eq.s32.totalorder %s16, 0
      %p136 = por %p134, %p135
      %p137 = scmp.ne.s32.totalorder %s129, %s131
      %p138 = scmp.eq.s32.totalorder %s21, 1
      %p139 = por %p137, %p138
      %p140 = scmp.ne.s32.totalorder %s131, %s132
      %p141 = scmp.eq.s32.totalorder %s21, 0
      %p142 = por %p140, %p141
      %p143 = scmp.ne.s32.totalorder %s131, %s132
      %p144 = scmp.eq.s32.totalorder %s22, 1
      %p145 = por %p143, %p144
      %p147 = scmp.ne.s32.totalorder %s132, %s146
      %p148 = scmp.eq.s32.totalorder %s22, 0
      %p149 = por %p147, %p148
      %s151 = sadd.s32 %s150, 1
      %p154 = scmp.eq.s32.totalorder %s16, 1
      %p155 = scmp.ne.s32.totalorder %s150, %s152
      %p156 = scmp.eq.s32.totalorder %s16, 0
      %p157 = por %p155, %p156
      %p158 = scmp.ne.s32.totalorder %s150, %s152
      %p159 = scmp.eq.s32.totalorder %s21, 1
      %p160 = por %p158, %p159
      %p161 = scmp.ne.s32.totalorder %s152, %s153
      %p162 = scmp.eq.s32.totalorder %s21, 0
      %p163 = por %p161, %p162
      %p164 = scmp.ne.s32.totalorder %s152, %s153
      %p165 = scmp.eq.s32.totalorder %s22, 1
      %p166 = por %p164, %p165
      %p168 = scmp.ne.s32.totalorder %s153, %s167
      %p169 = scmp.eq.s32.totalorder %s22, 0
      %p170 = por %p168, %p169
      %s172 = sadd.s32 %s171, 1
      %p175 = scmp.eq.s32.totalorder %s16, 1
      %p176 = scmp.ne.s32.totalorder %s171, %s173
      %p177 = scmp.eq.s32.totalorder %s16, 0
      %p178 = por %p176, %p177
      %p179 = scmp.ne.s32.totalorder %s171, %s173
      %p180 = scmp.eq.s32.totalorder %s21, 1
      %p181 = por %p179, %p180
      %p182 = scmp.ne.s32.totalorder %s173, %s174
      %p183 = scmp.eq.s32.totalorder %s21, 0
      %p184 = por %p182, %p183
      %p185 = scmp.ne.s32.totalorder %s173, %s174
      %p186 = scmp.eq.s32.totalorder %s22, 1
      %p187 = por %p185, %p186
      %p189 = scmp.ne.s32.totalorder %s174, %s188
      %p190 = scmp.eq.s32.totalorder %s22, 0
      %p191 = por %p189, %p190
      %s192 = ssub.s32 %s16, %s23
      %p193 = scmp.eq.s32.totalorder %s192, 0
      %s195 = sadd.s32 %s194, 1
      %s196 = scalar_select %p193, %s194, %s195
      %p199 = pneg %p193
      %p200 = scmp.eq.s32.totalorder %s16, 1
      %p201 = por %p199, %p200
      %p202 = scmp.ne.s32.totalorder %s194, %s197
      %p203 = scmp.eq.s32.totalorder %s16, 0
      %p204 = por %p202, %p203
      %p205 = scmp.ne.s32.totalorder %s194, %s197
      %p206 = scmp.eq.s32.totalorder %s21, 1
      %p207 = por %p205, %p206
      %p208 = scmp.ne.s32.totalorder %s197, %s198
      %p209 = scmp.eq.s32.totalorder %s21, 0
      %p210 = por %p208, %p209
      %p211 = scmp.ne.s32.totalorder %s197, %s198
      %p212 = scmp.eq.s32.totalorder %s22, 1
      %p213 = por %p211, %p212
      %p215 = scmp.ne.s32.totalorder %s198, %s214
      %p216 = scmp.eq.s32.totalorder %s22, 0
      %p217 = por %p215, %p216
      %p218 = scmp.le.s32.totalorder 1, %s16
      %p219 = scmp.lt.s32.totalorder %s16, 3
      %p220 = pnand %p218, %p219
      %p221 = pneg %p220
      // Predicated region
      $region9: #{decoder_forward.1} parent=5 // pred_check
        _
      $region10: #{decoder_forward.1} parent=5 // pred_check_branch
        %223 = sbr.rel (%p220) target = $region12
      $region11: #{decoder_forward.1} parent=5 // pred_region
        %s224 = ssub.s32 %s16, 1
        // Predicated region
        $region13: #{decoder_forward.1} parent=11 // pred_check
          %p225 = pneg %p37
        $region14: #{decoder_forward.1} parent=11 // pred_check_branch
          %227 = sbr.rel (%p225) target = $region16
        $region15: #{decoder_forward.1} parent=11 // pred_region
          %229 = vsyncadd [#allocation5], 0
          %s231 = sshll.u32 %s0, 4
          %s232 = int_to_ptr.vmem [resolvable:$true] %s231
          %234 = dma.vmem_to_smem %s232, 16, [#allocation4], [#allocation5]
        $region16: #{decoder_forward.1} parent=11 // pred_fallthru
          _
        // Predicated region
        $region17: #{decoder_forward.1} parent=11 // pred_check
          %p235 = pneg %p58
        $region18: #{decoder_forward.1} parent=11 // pred_check_branch
          %237 = sbr.rel (%p235) target = $region20
        $region19: #{decoder_forward.1} parent=11 // pred_region
          _
        $region20: #{decoder_forward.1} parent=11 // pred_fallthru
          _
        // Predicated region
        $region21: #{decoder_forward.1} parent=11 // pred_check
          %p238 = pneg %p79
        $region22: #{decoder_forward.1} parent=11 // pred_check_branch
          %240 = sbr.rel (%p238) target = $region24
        $region23: #{decoder_forward.1} parent=11 // pred_region
          _
        $region24: #{decoder_forward.1} parent=11 // pred_fallthru
          _
        // Predicated region
        $region25: #{decoder_forward.1} parent=11 // pred_check
          %p241 = pneg %p100
        $region26: #{decoder_forward.1} parent=11 // pred_check_branch
          %243 = sbr.rel (%p241) target = $region28
        $region27: #{decoder_forward.1} parent=11 // pred_region
          _
        $region28: #{decoder_forward.1} parent=11 // pred_fallthru
          _
        // Predicated region
        $region29: #{decoder_forward.1} parent=11 // pred_check
          %p244 = pneg %p121
        $region30: #{decoder_forward.1} parent=11 // pred_check_branch
          %246 = sbr.rel (%p244) target = $region32
        $region31: #{decoder_forward.1} parent=11 // pred_region
          _
        $region32: #{decoder_forward.1} parent=11 // pred_fallthru
          _
        // Predicated region
        $region33: #{decoder_forward.1} parent=11 // pred_check
          %p247 = pneg %p142
        $region34: #{decoder_forward.1} parent=11 // pred_check_branch
          %249 = sbr.rel (%p247) target = $region36
        $region35: #{decoder_forward.1} parent=11 // pred_region
          _
        $region36: #{decoder_forward.1} parent=11 // pred_fallthru
          _
        // Predicated region
        $region37: #{decoder_forward.1} parent=11 // pred_check
          %p250 = pneg %p163
        $region38: #{decoder_forward.1} parent=11 // pred_check_branch
          %252 = sbr.rel (%p250) target = $region40
        $region39: #{decoder_forward.1} parent=11 // pred_region
          _
        $region40: #{decoder_forward.1} parent=11 // pred_fallthru
          _
        // Predicated region
        $region41: #{decoder_forward.1} parent=11 // pred_check
          %p253 = pneg %p184
        $region42: #{decoder_forward.1} parent=11 // pred_check_branch
          %255 = sbr.rel (%p253) target = $region44
        $region43: #{decoder_forward.1} parent=11 // pred_region
          _
        $region44: #{decoder_forward.1} parent=11 // pred_fallthru
          _
      $region12: #{decoder_forward.1} parent=5 // pred_fallthru
        _
      %p256 = scmp.lt.s32.totalorder %s16, 2
      // Predicated region
      $region45: #{decoder_forward.1} parent=5 // pred_check
        %p257 = pneg %p256
      $region46: #{decoder_forward.1} parent=5 // pred_check_branch
        %259 = sbr.rel (%p257) target = $region48
      $region47: #{decoder_forward.1} parent=5 // pred_region
        _
      $region48: #{decoder_forward.1} parent=5 // pred_fallthru
        _
      %p260 = scmp.le.s32.totalorder 1, %s16
      %p261 = scmp.lt.s32.totalorder %s16, 3
      %p262 = pnand %p260, %p261
      %p263 = pneg %p262
      // Predicated region
      $region49: #{decoder_forward.1} parent=5 // pred_check
        _
      $region50: #{decoder_forward.1} parent=5 // pred_check_branch
        %265 = sbr.rel (%p262) target = $region52
      $region51: #{decoder_forward.1} parent=5 // pred_region
        %s266 = ssub.s32 %s16, 1
        // Predicated region
        $region53: #{decoder_forward.1} parent=51 // pred_check
          %p267 = pneg %p37
        $region54: #{decoder_forward.1} parent=51 // pred_check_branch
          %269 = sbr.rel (%p267) target = $region56
        $region55: #{decoder_forward.1} parent=51 // pred_region
          %271 = dma.done [#allocation5], 16
        $region56: #{decoder_forward.1} parent=51 // pred_fallthru
          _
        %272 = sfence
        %p273 = pneg %p37
        %p274 = pneg %p34
        %p275 = pneg %p58
        %p276 = pneg %p55
        %p277 = pneg %p79
        %p278 = pneg %p76
        %p279 = pneg %p100
        %p280 = pneg %p97
        %p281 = pneg %p121
        %p282 = pneg %p118
        %p283 = pneg %p142
        %p284 = pneg %p139
        %p285 = pneg %p163
        %p286 = pneg %p160
        %p287 = pneg %p184
        %p288 = pneg %p181
        %p289 = pneg %p210
        %p290 = pneg %p207
        %s291 = smul.u32 14, %s21
        %p292 = scmp.lt.s32.totalorder %s291, 27
        %s293 = scalar_select %p292, %s291, 27
        %s294 = smul.addr %s293, 8
        %s295 = scalar_lea.vmem %s8, %s294
        %s296 = smul.u32 14, %s21
        %p297 = scmp.lt.s32.totalorder %s296, 27
        %s298 = scalar_select %p297, %s296, 27
        %s299 = smul.addr %s298, 8
        %s300 = scalar_lea.vmem %s8, %s299
        %s301 = smul.u32 14, %s21
        %v303 = vld [vmem:[%s2] sm:$0x7f]
        %v304 = vld [vmem:[%s2 + $0x8] sm:$0x7f]
        %v305 = vld [vmem:[%s4] sm:$0x3]
        %s306 = smul.u32 %s21, 64
        %s307 = sld [smem:[#allocation4 + %s306]]
        %v308 = vld [vmem:[%s1] sm:$0x7f]
        %v309 = vld [vmem:[%s1 + $0x8] sm:$0x7f]
        %v310 = vstv %s307
        %v311 = vmul.f32 %v310, %v308
        %v312 = vmul.f32 %v310, %v309
        %v313 = vadd.f32 %v303, %v311
        %v314 = vadd.f32 %v304, %v312
        %s315 = sadd.s32 %s306, 1
        %s316 = sld [smem:[#allocation4 + %s315]]
        %s317 = scalar_lea.vmem %s1, 16
        %v318 = vld [vmem:[%s317] sm:$0x7f]
        %v319 = vld [vmem:[%s317 + $0x8] sm:$0x7f]
        %v320 = vstv %s316
        %v321 = vmul.f32 %v320, %v318
        %v322 = vmul.f32 %v320, %v319
        %v323 = vadd.f32 %v313, %v321
        %v324 = vadd.f32 %v314, %v322
        %s325 = sadd.s32 %s306, 2
        %s326 = sld [smem:[#allocation4 + %s325]]
        %s327 = scalar_lea.vmem %s1, 32
        %v328 = vld [vmem:[%s327] sm:$0x7f]
        %v329 = vld [vmem:[%s327 + $0x8] sm:$0x7f]
        %v330 = vstv %s326
        %v331 = vmul.f32 %v330, %v328
        %v332 = vmul.f32 %v330, %v329
        %v333 = vadd.f32 %v323, %v331
        %v334 = vadd.f32 %v324, %v332
        %s335 = sadd.s32 %s306, 3
        %s336 = sld [smem:[#allocation4 + %s335]]
        %s337 = scalar_lea.vmem %s1, 48
        %v338 = vld [vmem:[%s337] sm:$0x7f]
        %v339 = vld [vmem:[%s337 + $0x8] sm:$0x7f]
        %v340 = vstv %s336
        %v341 = vmul.f32 %v340, %v338
        %v342 = vmul.f32 %v340, %v339
        %v343 = vadd.f32 %v333, %v341
        %v344 = vadd.f32 %v334, %v342
        %s345 = sadd.s32 %s306, 4
        %s346 = sld [smem:[#allocation4 + %s345]]
        %s347 = scalar_lea.vmem %s1, 64
        %v348 = vld [vmem:[%s347] sm:$0x7f]
        %v349 = vld [vmem:[%s347 + $0x8] sm:$0x7f]
        %v350 = vstv %s346
        %v351 = vmul.f32 %v350, %v348
        %v352 = vmul.f32 %v350, %v349
        %v353 = vadd.f32 %v343, %v351
        %v354 = vadd.f32 %v344, %v352
        %s355 = sadd.s32 %s306, 5
        %s356 = sld [smem:[#allocation4 + %s355]]
        %s357 = scalar_lea.vmem %s1, 80
        %v358 = vld [vmem:[%s357] sm:$0x7f]
        %v359 = vld [vmem:[%s357 + $0x8] sm:$0x7f]
        %v360 = vstv %s356
        %v361 = vmul.f32 %v360, %v358
        %v362 = vmul.f32 %v360, %v359
        %v363 = vadd.f32 %v353, %v361
        %v364 = vadd.f32 %v354, %v362
        %s365 = sadd.s32 %s306, 6
        %s366 = sld [smem:[#allocation4 + %s365]]
        %s367 = scalar_lea.vmem %s1, 96
        %v368 = vld [vmem:[%s367] sm:$0x7f]
        %v369 = vld [vmem:[%s367 + $0x8] sm:$0x7f]
        %v370 = vstv %s366
        %v371 = vmul.f32 %v370, %v368
        %v372 = vmul.f32 %v370, %v369
        %v373 = vadd.f32 %v363, %v371
        %v374 = vadd.f32 %v364, %v372
        %s375 = sadd.s32 %s306, 7
        %s376 = sld [smem:[#allocation4 + %s375]]
        %s377 = scalar_lea.vmem %s1, 112
        %v378 = vld [vmem:[%s377] sm:$0x7f]
        %v379 = vld [vmem:[%s377 + $0x8] sm:$0x7f]
        %v380 = vstv %s376
        %v381 = vmul.f32 %v380, %v378
        %v382 = vmul.f32 %v380, %v379
        %v383 = vadd.f32 %v373, %v381
        %v384 = vadd.f32 %v374, %v382
        %v385 = vmax.f32 %v383, 0.0
        %v386 = vmax.f32 %v384, 0.0
        %v387 = vpack.c.bf16 %v386, %v385
        %s388 = scalar_lea.vmem [#allocation2], 56
        %vm389 = vcmask 1043456
        %vm390 = vsmask.f32 3328
        %vm391 = vmand %vm389, %vm390
        %vm392 = vcmask 785412
        %vm393 = vsmask.f32 7424
        %vm394 = vmand %vm392, %vm393
        %vm395 = vmor %vm394, %vm391
        %v396 = vld [vmem:[%s388] sm:$0xff]
        %v397 = vsel %vm395, %v387, %v396
        %398 = vst [vmem:[%s388] sm:$0xff] %v397
        %vm399 = vcmask 1040384
        %vm400 = vsmask.f32 256
        %vm401 = vmand %vm399, %vm400
        %vm402 = vcmask 782340
        %vm403 = vsmask.f32 4352
        %vm404 = vmand %vm402, %vm403
        %vm405 = vmor %vm404, %vm401
        %v406 = vld [vmem:[#allocation2] sm:$0x11]
        %v407 = vsel %vm405, 0, %v406
        %408 = vst [vmem:[#allocation2] sm:$0x11] %v407
        %v410 = vshrl.u32 %v387, 16
        %v412 = vrot.slane %v410, 7
        %v413 = vshll.u32 %v387, 16
        %v415 = vor.u32 %v412, %v413
        %vm417 = vsmask.f32 3330
        %vm418 = vmand %vm389, %vm417
        %vm419 = vsmask.f32 7442
        %vm420 = vmand %vm392, %vm419
        %vm421 = vmor %vm420, %vm418
        %v422 = vld [vmem:[#allocation2] sm:$0xff]
        %v423 = vsel %vm421, %v415, %v422
        %424 = vst [vmem:[#allocation2] sm:$0xff] %v423
        %v425 = vrot.slane %v410, 4
        %v426 = vrot.slane %v413, 5
        %v427 = vor.u32 %v425, %v426
        %v428 = vrot.slane %v427, 4
        %s430 = scalar_lea.vmem [#allocation2], 112
        %vm431 = vcmask 1042432
        %vm432 = vcmask 784388
        %vm433 = vmor %vm432, %vm431
        %434 = vst.msk [vmem:[%s430] sm:$0x77] %vm433, %v428
        %vm435 = vcmask 1043459
        %vm436 = vmand %vm435, %vm390
        %vm437 = vcmask 785415
        %vm438 = vmand %vm437, %vm393
        %vm439 = vmor %vm438, %vm436
        %v440 = vld [vmem:[%s430] sm:$0x88]
        %v441 = vsel %vm439, 0, %v440
        %442 = vst [vmem:[%s430] sm:$0x88] %v441
        %s443 = smul.u32 %s21, 8
        %s444 = sadd.s32 %s443, 1
        %s445 = smul.u32 %s444, 8
        %s446 = sld [smem:[#allocation4 + %s445]]
        %v447 = vld [vmem:[%s1] sm:$0x7f]
        %v448 = vld [vmem:[%s1 + $0x8] sm:$0x7f]
        %v449 = vstv %s446
        %v450 = vmul.f32 %v449, %v447
        %v451 = vmul.f32 %v449, %v448
        %v452 = vadd.f32 %v303, %v450
        %v453 = vadd.f32 %v304, %v451
        %s454 = sadd.s32 %s445, 1
        %s455 = sld [smem:[#allocation4 + %s454]]
        %v456 = vld [vmem:[%s317] sm:$0x7f]
        %v457 = vld [vmem:[%s317 + $0x8] sm:$0x7f]
        %v458 = vstv %s455
        %v459 = vmul.f32 %v458, %v456
        %v460 = vmul.f32 %v458, %v457
        %v461 = vadd.f32 %v452, %v459
        %v462 = vadd.f32 %v453, %v460
        %s463 = sadd.s32 %s445, 2
        %s464 = sld [smem:[#allocation4 + %s463]]
        %v465 = vld [vmem:[%s327] sm:$0x7f]
        %v466 = vld [vmem:[%s327 + $0x8] sm:$0x7f]
        %v467 = vstv %s464
        %v468 = vmul.f32 %v467, %v465
        %v469 = vmul.f32 %v467, %v466
        %v470 = vadd.f32 %v461, %v468
        %v471 = vadd.f32 %v462, %v469
        %s472 = sadd.s32 %s445, 3
        %s473 = sld [smem:[#allocation4 + %s472]]
        %v474 = vld [vmem:[%s337] sm:$0x7f]
        %v475 = vld [vmem:[%s337 + $0x8] sm:$0x7f]
        %v476 = vstv %s473
        %v477 = vmul.f32 %v476, %v474
        %v478 = vmul.f32 %v476, %v475
        %v479 = vadd.f32 %v470, %v477
        %v480 = vadd.f32 %v471, %v478
        %s481 = sadd.s32 %s445, 4
        %s482 = sld [smem:[#allocation4 + %s481]]
        %v483 = vld [vmem:[%s347] sm:$0x7f]
        %v484 = vld [vmem:[%s347 + $0x8] sm:$0x7f]
        %v485 = vstv %s482
        %v486 = vmul.f32 %v485, %v483
        %v487 = vmul.f32 %v485, %v484
        %v488 = vadd.f32 %v479, %v486
        %v489 = vadd.f32 %v480, %v487
        %s490 = sadd.s32 %s445, 5
        %s491 = sld [smem:[#allocation4 + %s490]]
        %v492 = vld [vmem:[%s357] sm:$0x7f]
        %v493 = vld [vmem:[%s357 + $0x8] sm:$0x7f]
        %v494 = vstv %s491
        %v495 = vmul.f32 %v494, %v492
        %v496 = vmul.f32 %v494, %v493
        %v497 = vadd.f32 %v488, %v495
        %v498 = vadd.f32 %v489, %v496
        %s499 = sadd.s32 %s445, 6
        %s500 = sld [smem:[#allocation4 + %s499]]
        %v501 = vld [vmem:[%s367] sm:$0x7f]
        %v502 = vld [vmem:[%s367 + $0x8] sm:$0x7f]
        %v503 = vstv %s500
        %v504 = vmul.f32 %v503, %v501
        %v505 = vmul.f32 %v503, %v502
        %v506 = vadd.f32 %v497, %v504
        %v507 = vadd.f32 %v498, %v505
        %s508 = sadd.s32 %s445, 7
        %s509 = sld [smem:[#allocation4 + %s508]]
        %v510 = vld [vmem:[%s377] sm:$0x7f]
        %v511 = vld [vmem:[%s377 + $0x8] sm:$0x7f]
        %v512 = vstv %s509
        %v513 = vmul.f32 %v512, %v510
        %v514 = vmul.f32 %v512, %v511
        %v515 = vadd.f32 %v506, %v513
        %v516 = vadd.f32 %v507, %v514
        %v517 = vmax.f32 %v515, 0.0
        %v518 = vmax.f32 %v516, 0.0
        %v519 = vpack.c.bf16 %v518, %v517
        %v521 = vshll.u32 %v519, 16
        %v523 = vrot.slane %v521, 5
        %v524 = vshrl.u32 %v519, 16
        %v526 = vrot.slane %v524, 4
        %v527 = vor.u32 %v526, %v523
        %v528 = vrot.slane %v527, 4
        %vm531 = vsmask.f32 7950
        %vm532 = vmand %vm435, %vm531
        %vm533 = vsmask.f32 7966
        %vm534 = vmand %vm437, %vm533
        %vm535 = vmor %vm534, %vm532
        %v536 = vld [vmem:[%s388] sm:$0x88]
        %v537 = vsel %vm535, %v523, %v536
        %538 = vst [vmem:[%s388] sm:$0x88] %v537
        %539 = vst.msk [vmem:[%s388 + $0x8] sm:$0x77] %vm433, %v528
        %v540 = vld [vmem:[#allocation2] sm:$0x88]
        %v541 = vsel %vm535, 0, %v540
        %542 = vst [vmem:[#allocation2] sm:$0x88] %v541
        %543 = vst.msk [vmem:[#allocation2 + $0x8] sm:$0x77] %vm433, %v519
        %v545 = vrot.slane %v519, 5
        %v546 = vrot.slane %v545, 4
        %v549 = vld [vmem:[%s430] sm:$0x88]
        %v550 = vsel %vm535, %v545, %v549
        %551 = vst [vmem:[%s430] sm:$0x88] %v550
        %vm552 = vcmask 1042432
        %vm553 = vsmask.f32 2304
        %vm554 = vmand %vm552, %vm553
        %vm555 = vcmask 784388
        %vm556 = vsmask.f32 6400
        %vm557 = vmand %vm555, %vm556
        %vm558 = vmor %vm557, %vm554
        %v559 = vld [vmem:[%s430 + $0x8] sm:$0x77]
        %v560 = vsel %vm558, %v546, %v559
        %561 = vst [vmem:[%s430 + $0x8] sm:$0x77] %v560
        %vm562 = vcmask 1042434
        %vm563 = vsmask.f32 7946
        %vm564 = vmand %vm562, %vm563
        %vm565 = vcmask 784390
        %vm566 = vsmask.f32 7962
        %vm567 = vmand %vm565, %vm566
        %vm568 = vmor %vm567, %vm564
        %v569 = vld [vmem:[%s430 + $0x8] sm:$0x44]
        %v570 = vsel %vm568, 0, %v569
        %571 = vst [vmem:[%s430 + $0x8] sm:$0x44] %v570
        %s572 = sadd.s32 %s443, 2
        %s573 = smul.u32 %s572, 8
        %s574 = sld [smem:[#allocation4 + %s573]]
        %v575 = vld [vmem:[%s1] sm:$0x7f]
        %v576 = vld [vmem:[%s1 + $0x8] sm:$0x7f]
        %v577 = vstv %s574
        %v578 = vmul.f32 %v577, %v575
        %v579 = vmul.f32 %v577, %v576
        %v580 = vadd.f32 %v303, %v578
        %v581 = vadd.f32 %v304, %v579
        %s582 = sadd.s32 %s573, 1
        %s583 = sld [smem:[#allocation4 + %s582]]
        %v584 = vld [vmem:[%s317] sm:$0x7f]
        %v585 = vld [vmem:[%s317 + $0x8] sm:$0x7f]
        %v586 = vstv %s583
        %v587 = vmul.f32 %v586, %v584
        %v588 = vmul.f32 %v586, %v585
        %v589 = vadd.f32 %v580, %v587
        %v590 = vadd.f32 %v581, %v588
        %s591 = sadd.s32 %s573, 2
        %s592 = sld [smem:[#allocation4 + %s591]]
        %v593 = vld [vmem:[%s327] sm:$0x7f]
        %v594 = vld [vmem:[%s327 + $0x8] sm:$0x7f]
        %v595 = vstv %s592
        %v596 = vmul.f32 %v595, %v593
        %v597 = vmul.f32 %v595, %v594
        %v598 = vadd.f32 %v589, %v596
        %v599 = vadd.f32 %v590, %v597
        %s600 = sadd.s32 %s573, 3
        %s601 = sld [smem:[#allocation4 + %s600]]
        %v602 = vld [vmem:[%s337] sm:$0x7f]
        %v603 = vld [vmem:[%s337 + $0x8] sm:$0x7f]
        %v604 = vstv %s601
        %v605 = vmul.f32 %v604, %v602
        %v606 = vmul.f32 %v604, %v603
        %v607 = vadd.f32 %v598, %v605
        %v608 = vadd.f32 %v599, %v606
        %s609 = sadd.s32 %s573, 4
        %s610 = sld [smem:[#allocation4 + %s609]]
        %v611 = vld [vmem:[%s347] sm:$0x7f]
        %v612 = vld [vmem:[%s347 + $0x8] sm:$0x7f]
        %v613 = vstv %s610
        %v614 = vmul.f32 %v613, %v611
        %v615 = vmul.f32 %v613, %v612
        %v616 = vadd.f32 %v607, %v614
        %v617 = vadd.f32 %v608, %v615
        %s618 = sadd.s32 %s573, 5
        %s619 = sld [smem:[#allocation4 + %s618]]
        %v620 = vld [vmem:[%s357] sm:$0x7f]
        %v621 = vld [vmem:[%s357 + $0x8] sm:$0x7f]
        %v622 = vstv %s619
        %v623 = vmul.f32 %v622, %v620
        %v624 = vmul.f32 %v622, %v621
        %v625 = vadd.f32 %v616, %v623
        %v626 = vadd.f32 %v617, %v624
        %s627 = sadd.s32 %s573, 6
        %s628 = sld [smem:[#allocation4 + %s627]]
        %v629 = vld [vmem:[%s367] sm:$0x7f]
        %v630 = vld [vmem:[%s367 + $0x8] sm:$0x7f]
        %v631 = vstv %s628
        %v632 = vmul.f32 %v631, %v629
        %v633 = vmul.f32 %v631, %v630
        %v634 = vadd.f32 %v625, %v632
        %v635 = vadd.f32 %v626, %v633
        %s636 = sadd.s32 %s573, 7
        %s637 = sld [smem:[#allocation4 + %s636]]
        %v638 = vld [vmem:[%s377] sm:$0x7f]
        %v639 = vld [vmem:[%s377 + $0x8] sm:$0x7f]
        %v640 = vstv %s637
        %v641 = vmul.f32 %v640, %v638
        %v642 = vmul.f32 %v640, %v639
        %v643 = vadd.f32 %v634, %v641
        %v644 = vadd.f32 %v635, %v642
        %v645 = vmax.f32 %v643, 0.0
        %v646 = vmax.f32 %v644, 0.0
        %v647 = vpack.c.bf16 %v646, %v645
        %v649 = vrot.slane %v647, 5
        %v650 = vrot.slane %v649, 4
        %vm653 = vcmask 1043459
        %vm654 = vcmask 785415
        %vm655 = vmor %vm654, %vm653
        %656 = vst.msk [vmem:[%s388 + $0x8] sm:$0x88] %vm655, %v649
        %v657 = vld [vmem:[%s388 + $0x10] sm:$0x77]
        %v658 = vsel %vm558, %v650, %v657
        %659 = vst [vmem:[%s388 + $0x10] sm:$0x77] %v658
        %v660 = vld [vmem:[#allocation2 + $0x8] sm:$0x88]
        %v661 = vsel %vm439, 0, %v660
        %662 = vst [vmem:[#allocation2 + $0x8] sm:$0x88] %v661
        %v664 = vshll.u32 %v647, 16
        %v666 = vrot.slane %v664, 5
        %v667 = vshrl.u32 %v647, 16
        %v669 = vrot.slane %v667, 4
        %v670 = vor.u32 %v669, %v666
        %v671 = vrot.slane %v670, 4
        %v674 = vld [vmem:[#allocation2 + $0x8] sm:$0x88]
        %v675 = vsel %vm535, %v666, %v674
        %676 = vst [vmem:[#allocation2 + $0x8] sm:$0x88] %v675
        %v677 = vld [vmem:[#allocation2 + $0x10] sm:$0x77]
        %v678 = vsel %vm558, %v671, %v677
        %679 = vst [vmem:[#allocation2 + $0x10] sm:$0x77] %v678
        %v680 = vrot.slane %v667, 5
        %v681 = vrot.slane %v664, 6
        %v682 = vor.u32 %v680, %v681
        %v683 = vrot.slane %v682, 4
        %686 = vst.msk [vmem:[%s430 + $0x8] sm:$0x88] %vm655, %v682
        %vm687 = vcmask 1041408
        %vm688 = vcmask 783364
        %vm689 = vmor %vm688, %vm687
        %690 = vst.msk [vmem:[%s430 + $0x10] sm:$0x33] %vm689, %v683
        %vm691 = vmand %vm562, %vm553
        %vm692 = vmand %vm565, %vm556
        %vm693 = vmor %vm692, %vm691
        %v694 = vld [vmem:[%s430 + $0x10] sm:$0x44]
        %v695 = vsel %vm693, 0, %v694
        %696 = vst [vmem:[%s430 + $0x10] sm:$0x44] %v695
        %s697 = sadd.s32 %s443, 3
        %s698 = smul.u32 %s697, 8
        %s699 = sld [smem:[#allocation4 + %s698]]
        %v700 = vld [vmem:[%s1] sm:$0x7f]
        %v701 = vld [vmem:[%s1 + $0x8] sm:$0x7f]
        %v702 = vstv %s699
        %v703 = vmul.f32 %v702, %v700
        %v704 = vmul.f32 %v702, %v701
        %v705 = vadd.f32 %v303, %v703
        %v706 = vadd.f32 %v304, %v704
        %s707 = sadd.s32 %s698, 1
        %s708 = sld [smem:[#allocation4 + %s707]]
        %v709 = vld [vmem:[%s317] sm:$0x7f]
        %v710 = vld [vmem:[%s317 + $0x8] sm:$0x7f]
        %v711 = vstv %s708
        %v712 = vmul.f32 %v711, %v709
        %v713 = vmul.f32 %v711, %v710
        %v714 = vadd.f32 %v705, %v712
        %v715 = vadd.f32 %v706, %v713
        %s716 = sadd.s32 %s698, 2
        %s717 = sld [smem:[#allocation4 + %s716]]
        %v718 = vld [vmem:[%s327] sm:$0x7f]
        %v719 = vld [vmem:[%s327 + $0x8] sm:$0x7f]
        %v720 = vstv %s717
        %v721 = vmul.f32 %v720, %v718
        %v722 = vmul.f32 %v720, %v719
        %v723 = vadd.f32 %v714, %v721
        %v724 = vadd.f32 %v715, %v722
        %s725 = sadd.s32 %s698, 3
        %s726 = sld [smem:[#allocation4 + %s725]]
        %v727 = vld [vmem:[%s337] sm:$0x7f]
        %v728 = vld [vmem:[%s337 + $0x8] sm:$0x7f]
        %v729 = vstv %s726
        %v730 = vmul.f32 %v729, %v727
        %v731 = vmul.f32 %v729, %v728
        %v732 = vadd.f32 %v723, %v730
        %v733 = vadd.f32 %v724, %v731
        %s734 = sadd.s32 %s698, 4
        %s735 = sld [smem:[#allocation4 + %s734]]
        %v736 = vld [vmem:[%s347] sm:$0x7f]
        %v737 = vld [vmem:[%s347 + $0x8] sm:$0x7f]
        %v738 = vstv %s735
        %v739 = vmul.f32 %v738, %v736
        %v740 = vmul.f32 %v738, %v737
        %v741 = vadd.f32 %v732, %v739
        %v742 = vadd.f32 %v733, %v740
        %s743 = sadd.s32 %s698, 5
        %s744 = sld [smem:[#allocation4 + %s743]]
        %v745 = vld [vmem:[%s357] sm:$0x7f]
        %v746 = vld [vmem:[%s357 + $0x8] sm:$0x7f]
        %v747 = vstv %s744
        %v748 = vmul.f32 %v747, %v745
        %v749 = vmul.f32 %v747, %v746
        %v750 = vadd.f32 %v741, %v748
        %v751 = vadd.f32 %v742, %v749
        %s752 = sadd.s32 %s698, 6
        %s753 = sld [smem:[#allocation4 + %s752]]
        %v754 = vld [vmem:[%s367] sm:$0x7f]
        %v755 = vld [vmem:[%s367 + $0x8] sm:$0x7f]
        %v756 = vstv %s753
        %v757 = vmul.f32 %v756, %v754
        %v758 = vmul.f32 %v756, %v755
        %v759 = vadd.f32 %v750, %v757
        %v760 = vadd.f32 %v751, %v758
        %s761 = sadd.s32 %s698, 7
        %s762 = sld [smem:[#allocation4 + %s761]]
        %v763 = vld [vmem:[%s377] sm:$0x7f]
        %v764 = vld [vmem:[%s377 + $0x8] sm:$0x7f]
        %v765 = vstv %s762
        %v766 = vmul.f32 %v765, %v763
        %v767 = vmul.f32 %v765, %v764
        %v768 = vadd.f32 %v759, %v766
        %v769 = vadd.f32 %v760, %v767
        %v770 = vmax.f32 %v768, 0.0
        %v771 = vmax.f32 %v769, 0.0
        %v772 = vpack.c.bf16 %v771, %v770
        %v774 = vshrl.u32 %v772, 16
        %v776 = vrot.slane %v774, 5
        %v777 = vshll.u32 %v772, 16
        %v779 = vrot.slane %v777, 6
        %v780 = vor.u32 %v776, %v779
        %v781 = vrot.slane %v780, 4
        %vm784 = vcmask 1043458
        %vm785 = vmand %vm784, %vm563
        %vm786 = vcmask 785414
        %vm787 = vmand %vm786, %vm566
        %vm788 = vmor %vm787, %vm785
        %v789 = vld [vmem:[%s388 + $0x10] sm:$0xcc]
        %v790 = vsel %vm788, %v780, %v789
        %791 = vst [vmem:[%s388 + $0x10] sm:$0xcc] %v790
        %792 = vst.msk [vmem:[%s388 + $0x18] sm:$0x33] %vm689, %v781
        %v793 = vld [vmem:[#allocation2 + $0x10] sm:$0x44]
        %v794 = vsel %vm568, 0, %v793
        %795 = vst [vmem:[#allocation2 + $0x10] sm:$0x44] %v794
        %v797 = vrot.slane %v772, 5
        %v798 = vrot.slane %v797, 4
        %801 = vst.msk [vmem:[#allocation2 + $0x10] sm:$0x88] %vm655, %v797
        %802 = vst.msk [vmem:[#allocation2 + $0x18] sm:$0x33] %vm689, %v798
        %v803 = vrot.slane %v772, 6
        %v804 = vrot.slane %v803, 4
        %v807 = vld [vmem:[%s430 + $0x10] sm:$0xcc]
        %v808 = vsel %vm788, %v803, %v807
        %809 = vst [vmem:[%s430 + $0x10] sm:$0xcc] %v808
        %vm810 = vcmask 1041408
        %vm811 = vsmask.f32 1280
        %vm812 = vmand %vm810, %vm811
        %vm813 = vcmask 783364
        %vm814 = vsmask.f32 5376
        %vm815 = vmand %vm813, %vm814
        %vm816 = vmor %vm815, %vm812
        %v817 = vld [vmem:[%s430 + $0x18] sm:$0x33]
        %v818 = vsel %vm816, %v804, %v817
        %819 = vst [vmem:[%s430 + $0x18] sm:$0x33] %v818
        %vm820 = vcmask 1041409
        %vm821 = vsmask.f32 7942
        %vm822 = vmand %vm820, %vm821
        %vm823 = vcmask 783365
        %vm824 = vsmask.f32 7958
        %vm825 = vmand %vm823, %vm824
        %vm826 = vmor %vm825, %vm822
        %v827 = vld [vmem:[%s430 + $0x18] sm:$0x22]
        %v828 = vsel %vm826, 0, %v827
        %829 = vst [vmem:[%s430 + $0x18] sm:$0x22] %v828
        %s830 = sadd.s32 %s443, 4
        %s831 = smul.u32 %s830, 8
        %s832 = sld [smem:[#allocation4 + %s831]]
        %v833 = vld [vmem:[%s1] sm:$0x7f]
        %v834 = vld [vmem:[%s1 + $0x8] sm:$0x7f]
        %v835 = vstv %s832
        %v836 = vmul.f32 %v835, %v833
        %v837 = vmul.f32 %v835, %v834
        %v838 = vadd.f32 %v303, %v836
        %v839 = vadd.f32 %v304, %v837
        %s840 = sadd.s32 %s831, 1
        %s841 = sld [smem:[#allocation4 + %s840]]
        %v842 = vld [vmem:[%s317] sm:$0x7f]
        %v843 = vld [vmem:[%s317 + $0x8] sm:$0x7f]
        %v844 = vstv %s841
        %v845 = vmul.f32 %v844, %v842
        %v846 = vmul.f32 %v844, %v843
        %v847 = vadd.f32 %v838, %v845
        %v848 = vadd.f32 %v839, %v846
        %s849 = sadd.s32 %s831, 2
        %s850 = sld [smem:[#allocation4 + %s849]]
        %v851 = vld [vmem:[%s327] sm:$0x7f]
        %v852 = vld [vmem:[%s327 + $0x8] sm:$0x7f]
        %v853 = vstv %s850
        %v854 = vmul.f32 %v853, %v851
        %v855 = vmul.f32 %v853, %v852
        %v856 = vadd.f32 %v847, %v854
        %v857 = vadd.f32 %v848, %v855
        %s858 = sadd.s32 %s831, 3
        %s859 = sld [smem:[#allocation4 + %s858]]
        %v860 = vld [vmem:[%s337] sm:$0x7f]
        %v861 = vld [vmem:[%s337 + $0x8] sm:$0x7f]
        %v862 = vstv %s859
        %v863 = vmul.f32 %v862, %v860
        %v864 = vmul.f32 %v862, %v861
        %v865 = vadd.f32 %v856, %v863
        %v866 = vadd.f32 %v857, %v864
        %s867 = sadd.s32 %s831, 4
        %s868 = sld [smem:[#allocation4 + %s867]]
        %v869 = vld [vmem:[%s347] sm:$0x7f]
        %v870 = vld [vmem:[%s347 + $0x8] sm:$0x7f]
        %v871 = vstv %s868
        %v872 = vmul.f32 %v871, %v869
        %v873 = vmul.f32 %v871, %v870
        %v874 = vadd.f32 %v865, %v872
        %v875 = vadd.f32 %v866, %v873
        %s876 = sadd.s32 %s831, 5
        %s877 = sld [smem:[#allocation4 + %s876]]
        %v878 = vld [vmem:[%s357] sm:$0x7f]
        %v879 = vld [vmem:[%s357 + $0x8] sm:$0x7f]
        %v880 = vstv %s877
        %v881 = vmul.f32 %v880, %v878
        %v882 = vmul.f32 %v880, %v879
        %v883 = vadd.f32 %v874, %v881
        %v884 = vadd.f32 %v875, %v882
        %s885 = sadd.s32 %s831, 6
        %s886 = sld [smem:[#allocation4 + %s885]]
        %v887 = vld [vmem:[%s367] sm:$0x7f]
        %v888 = vld [vmem:[%s367 + $0x8] sm:$0x7f]
        %v889 = vstv %s886
        %v890 = vmul.f32 %v889, %v887
        %v891 = vmul.f32 %v889, %v888
        %v892 = vadd.f32 %v883, %v890
        %v893 = vadd.f32 %v884, %v891
        %s894 = sadd.s32 %s831, 7
        %s895 = sld [smem:[#allocation4 + %s894]]
        %v896 = vld [vmem:[%s377] sm:$0x7f]
        %v897 = vld [vmem:[%s377 + $0x8] sm:$0x7f]
        %v898 = vstv %s895
        %v899 = vmul.f32 %v898, %v896
        %v900 = vmul.f32 %v898, %v897
        %v901 = vadd.f32 %v892, %v899
        %v902 = vadd.f32 %v893, %v900
        %v903 = vmax.f32 %v901, 0.0
        %v904 = vmax.f32 %v902, 0.0
        %v905 = vpack.c.bf16 %v904, %v903
        %v907 = vrot.slane %v905, 6
        %v908 = vrot.slane %v907, 4
        %vm911 = vcmask 1043458
        %vm912 = vcmask 785414
        %vm913 = vmor %vm912, %vm911
        %914 = vst.msk [vmem:[%s388 + $0x18] sm:$0xcc] %vm913, %v907
        %v915 = vld [vmem:[%s388 + $0x20] sm:$0x33]
        %v916 = vsel %vm816, %v908, %v915
        %917 = vst [vmem:[%s388 + $0x20] sm:$0x33] %v916
        %v918 = vld [vmem:[#allocation2 + $0x18] sm:$0x44]
        %v919 = vsel %vm693, 0, %v918
        %920 = vst [vmem:[#allocation2 + $0x18] sm:$0x44] %v919
        %v922 = vshrl.u32 %v905, 16
        %v924 = vrot.slane %v922, 5
        %v925 = vshll.u32 %v905, 16
        %v927 = vrot.slane %v925, 6
        %v928 = vor.u32 %v924, %v927
        %v929 = vrot.slane %v928, 4
        %v932 = vld [vmem:[#allocation2 + $0x18] sm:$0xcc]
        %v933 = vsel %vm788, %v928, %v932
        %934 = vst [vmem:[#allocation2 + $0x18] sm:$0xcc] %v933
        %v935 = vld [vmem:[#allocation2 + $0x20] sm:$0x33]
        %v936 = vsel %vm816, %v929, %v935
        %937 = vst [vmem:[#allocation2 + $0x20] sm:$0x33] %v936
        %v938 = vrot.slane %v922, 6
        %v939 = vrot.slane %v925, 7
        %v940 = vor.u32 %v938, %v939
        %v941 = vrot.slane %v940, 4
        %944 = vst.msk [vmem:[%s430 + $0x18] sm:$0xcc] %vm913, %v940
        %vm945 = vcmask 1040384
        %vm946 = vcmask 782340
        %vm947 = vmor %vm946, %vm945
        %948 = vst.msk [vmem:[%s430 + $0x20] sm:$0x11] %vm947, %v941
        %vm949 = vmand %vm820, %vm811
        %vm950 = vmand %vm823, %vm814
        %vm951 = vmor %vm950, %vm949
        %v952 = vld [vmem:[%s430 + $0x20] sm:$0x22]
        %v953 = vsel %vm951, 0, %v952
        %954 = vst [vmem:[%s430 + $0x20] sm:$0x22] %v953
        %s955 = sadd.s32 %s443, 5
        %s956 = smul.u32 %s955, 8
        %s957 = sld [smem:[#allocation4 + %s956]]
        %v958 = vld [vmem:[%s1] sm:$0x7f]
        %v959 = vld [vmem:[%s1 + $0x8] sm:$0x7f]
        %v960 = vstv %s957
        %v961 = vmul.f32 %v960, %v958
        %v962 = vmul.f32 %v960, %v959
        %v963 = vadd.f32 %v303, %v961
        %v964 = vadd.f32 %v304, %v962
        %s965 = sadd.s32 %s956, 1
        %s966 = sld [smem:[#allocation4 + %s965]]
        %v967 = vld [vmem:[%s317] sm:$0x7f]
        %v968 = vld [vmem:[%s317 + $0x8] sm:$0x7f]
        %v969 = vstv %s966
        %v970 = vmul.f32 %v969, %v967
        %v971 = vmul.f32 %v969, %v968
        %v972 = vadd.f32 %v963, %v970
        %v973 = vadd.f32 %v964, %v971
        %s974 = sadd.s32 %s956, 2
        %s975 = sld [smem:[#allocation4 + %s974]]
        %v976 = vld [vmem:[%s327] sm:$0x7f]
        %v977 = vld [vmem:[%s327 + $0x8] sm:$0x7f]
        %v978 = vstv %s975
        %v979 = vmul.f32 %v978, %v976
        %v980 = vmul.f32 %v978, %v977
        %v981 = vadd.f32 %v972, %v979
        %v982 = vadd.f32 %v973, %v980
        %s983 = sadd.s32 %s956, 3
        %s984 = sld [smem:[#allocation4 + %s983]]
        %v985 = vld [vmem:[%s337] sm:$0x7f]
        %v986 = vld [vmem:[%s337 + $0x8] sm:$0x7f]
        %v987 = vstv %s984
        %v988 = vmul.f32 %v987, %v985
        %v989 = vmul.f32 %v987, %v986
        %v990 = vadd.f32 %v981, %v988
        %v991 = vadd.f32 %v982, %v989
        %s992 = sadd.s32 %s956, 4
        %s993 = sld [smem:[#allocation4 + %s992]]
        %v994 = vld [vmem:[%s347] sm:$0x7f]
        %v995 = vld [vmem:[%s347 + $0x8] sm:$0x7f]
        %v996 = vstv %s993
        %v997 = vmul.f32 %v996, %v994
        %v998 = vmul.f32 %v996, %v995
        %v999 = vadd.f32 %v990, %v997
        %v1000 = vadd.f32 %v991, %v998
        %s1001 = sadd.s32 %s956, 5
        %s1002 = sld [smem:[#allocation4 + %s1001]]
        %v1003 = vld [vmem:[%s357] sm:$0x7f]
        %v1004 = vld [vmem:[%s357 + $0x8] sm:$0x7f]
        %v1005 = vstv %s1002
        %v1006 = vmul.f32 %v1005, %v1003
        %v1007 = vmul.f32 %v1005, %v1004
        %v1008 = vadd.f32 %v999, %v1006
        %v1009 = vadd.f32 %v1000, %v1007
        %s1010 = sadd.s32 %s956, 6
        %s1011 = sld [smem:[#allocation4 + %s1010]]
        %v1012 = vld [vmem:[%s367] sm:$0x7f]
        %v1013 = vld [vmem:[%s367 + $0x8] sm:$0x7f]
        %v1014 = vstv %s1011
        %v1015 = vmul.f32 %v1014, %v1012
        %v1016 = vmul.f32 %v1014, %v1013
        %v1017 = vadd.f32 %v1008, %v1015
        %v1018 = vadd.f32 %v1009, %v1016
        %s1019 = sadd.s32 %s956, 7
        %s1020 = sld [smem:[#allocation4 + %s1019]]
        %v1021 = vld [vmem:[%s377] sm:$0x7f]
        %v1022 = vld [vmem:[%s377 + $0x8] sm:$0x7f]
        %v1023 = vstv %s1020
        %v1024 = vmul.f32 %v1023, %v1021
        %v1025 = vmul.f32 %v1023, %v1022
        %v1026 = vadd.f32 %v1017, %v1024
        %v1027 = vadd.f32 %v1018, %v1025
        %v1028 = vmax.f32 %v1026, 0.0
        %v1029 = vmax.f32 %v1027, 0.0
        %v1030 = vpack.c.bf16 %v1029, %v1028
        %v1032 = vshrl.u32 %v1030, 16
        %v1034 = vrot.slane %v1032, 6
        %v1035 = vshll.u32 %v1030, 16
        %v1037 = vrot.slane %v1035, 7
        %v1038 = vor.u32 %v1034, %v1037
        %v1039 = vrot.slane %v1038, 4
        %vm1042 = vcmask 1043457
        %vm1043 = vmand %vm1042, %vm821
        %vm1044 = vcmask 785413
        %vm1045 = vmand %vm1044, %vm824
        %vm1046 = vmor %vm1045, %vm1043
        %v1047 = vld [vmem:[%s388 + $0x20] sm:$0xee]
        %v1048 = vsel %vm1046, %v1038, %v1047
        %1049 = vst [vmem:[%s388 + $0x20] sm:$0xee] %v1048
        %1050 = vst.msk [vmem:[%s388 + $0x28] sm:$0x11] %vm947, %v1039
        %v1051 = vld [vmem:[#allocation2 + $0x20] sm:$0x22]
        %v1052 = vsel %vm826, 0, %v1051
        %1053 = vst [vmem:[#allocation2 + $0x20] sm:$0x22] %v1052
        %v1055 = vrot.slane %v1030, 6
        %v1056 = vrot.slane %v1055, 4
        %1059 = vst.msk [vmem:[#allocation2 + $0x20] sm:$0xcc] %vm913, %v1055
        %1060 = vst.msk [vmem:[#allocation2 + $0x28] sm:$0x11] %vm947, %v1056
        %v1061 = vrot.slane %v1030, 7
        %v1062 = vrot.slane %v1061, 4
        %v1065 = vld [vmem:[%s430 + $0x20] sm:$0xee]
        %v1066 = vsel %vm1046, %v1061, %v1065
        %1067 = vst [vmem:[%s430 + $0x20] sm:$0xee] %v1066
        %v1068 = vld [vmem:[%s430 + $0x28] sm:$0x11]
        %v1069 = vsel %vm405, %v1062, %v1068
        %1070 = vst [vmem:[%s430 + $0x28] sm:$0x11] %v1069
        %vm1071 = vsmask.f32 7938
        %vm1072 = vmand %vm399, %vm1071
        %vm1073 = vsmask.f32 7954
        %vm1074 = vmand %vm402, %vm1073
        %vm1075 = vmor %vm1074, %vm1072
        %v1076 = vld [vmem:[%s430 + $0x28] sm:$0x11]
        %v1077 = vsel %vm1075, 0, %v1076
        %1078 = vst [vmem:[%s430 + $0x28] sm:$0x11] %v1077
        %s1079 = sadd.s32 %s443, 6
        %s1080 = smul.u32 %s1079, 8
        %s1081 = sld [smem:[#allocation4 + %s1080]]
        %v1082 = vld [vmem:[%s1] sm:$0x7f]
        %v1083 = vld [vmem:[%s1 + $0x8] sm:$0x7f]
        %v1084 = vstv %s1081
        %v1085 = vmul.f32 %v1084, %v1082
        %v1086 = vmul.f32 %v1084, %v1083
        %v1087 = vadd.f32 %v303, %v1085
        %v1088 = vadd.f32 %v304, %v1086
        %s1089 = sadd.s32 %s1080, 1
        %s1090 = sld [smem:[#allocation4 + %s1089]]
        %v1091 = vld [vmem:[%s317] sm:$0x7f]
        %v1092 = vld [vmem:[%s317 + $0x8] sm:$0x7f]
        %v1093 = vstv %s1090
        %v1094 = vmul.f32 %v1093, %v1091
        %v1095 = vmul.f32 %v1093, %v1092
        %v1096 = vadd.f32 %v1087, %v1094
        %v1097 = vadd.f32 %v1088, %v1095
        %s1098 = sadd.s32 %s1080, 2
        %s1099 = sld [smem:[#allocation4 + %s1098]]
        %v1100 = vld [vmem:[%s327] sm:$0x7f]
        %v1101 = vld [vmem:[%s327 + $0x8] sm:$0x7f]
        %v1102 = vstv %s1099
        %v1103 = vmul.f32 %v1102, %v1100
        %v1104 = vmul.f32 %v1102, %v1101
        %v1105 = vadd.f32 %v1096, %v1103
        %v1106 = vadd.f32 %v1097, %v1104
        %s1107 = sadd.s32 %s1080, 3
        %s1108 = sld [smem:[#allocation4 + %s1107]]
        %v1109 = vld [vmem:[%s337] sm:$0x7f]
        %v1110 = vld [vmem:[%s337 + $0x8] sm:$0x7f]
        %v1111 = vstv %s1108
        %v1112 = vmul.f32 %v1111, %v1109
        %v1113 = vmul.f32 %v1111, %v1110
        %v1114 = vadd.f32 %v1105, %v1112
        %v1115 = vadd.f32 %v1106, %v1113
        %s1116 = sadd.s32 %s1080, 4
        %s1117 = sld [smem:[#allocation4 + %s1116]]
        %v1118 = vld [vmem:[%s347] sm:$0x7f]
        %v1119 = vld [vmem:[%s347 + $0x8] sm:$0x7f]
        %v1120 = vstv %s1117
        %v1121 = vmul.f32 %v1120, %v1118
        %v1122 = vmul.f32 %v1120, %v1119
        %v1123 = vadd.f32 %v1114, %v1121
        %v1124 = vadd.f32 %v1115, %v1122
        %s1125 = sadd.s32 %s1080, 5
        %s1126 = sld [smem:[#allocation4 + %s1125]]
        %v1127 = vld [vmem:[%s357] sm:$0x7f]
        %v1128 = vld [vmem:[%s357 + $0x8] sm:$0x7f]
        %v1129 = vstv %s1126
        %v1130 = vmul.f32 %v1129, %v1127
        %v1131 = vmul.f32 %v1129, %v1128
        %v1132 = vadd.f32 %v1123, %v1130
        %v1133 = vadd.f32 %v1124, %v1131
        %s1134 = sadd.s32 %s1080, 6
        %s1135 = sld [smem:[#allocation4 + %s1134]]
        %v1136 = vld [vmem:[%s367] sm:$0x7f]
        %v1137 = vld [vmem:[%s367 + $0x8] sm:$0x7f]
        %v1138 = vstv %s1135
        %v1139 = vmul.f32 %v1138, %v1136
        %v1140 = vmul.f32 %v1138, %v1137
        %v1141 = vadd.f32 %v1132, %v1139
        %v1142 = vadd.f32 %v1133, %v1140
        %s1143 = sadd.s32 %s1080, 7
        %s1144 = sld [smem:[#allocation4 + %s1143]]
        %v1145 = vld [vmem:[%s377] sm:$0x7f]
        %v1146 = vld [vmem:[%s377 + $0x8] sm:$0x7f]
        %v1147 = vstv %s1144
        %v1148 = vmul.f32 %v1147, %v1145
        %v1149 = vmul.f32 %v1147, %v1146
        %v1150 = vadd.f32 %v1141, %v1148
        %v1151 = vadd.f32 %v1142, %v1149
        %v1152 = vmax.f32 %v1150, 0.0
        %v1153 = vmax.f32 %v1151, 0.0
        %v1154 = vpack.c.bf16 %v1153, %v1152
        %v1156 = vrot.slane %v1154, 7
        %v1157 = vrot.slane %v1156, 4
        %vm1160 = vcmask 1043457
        %vm1161 = vcmask 785413
        %vm1162 = vmor %vm1161, %vm1160
        %1163 = vst.msk [vmem:[%s388 + $0x28] sm:$0xee] %vm1162, %v1156
        %v1164 = vld [vmem:[%s388 + $0x30] sm:$0x11]
        %v1165 = vsel %vm405, %v1157, %v1164
        %1166 = vst [vmem:[%s388 + $0x30] sm:$0x11] %v1165
        %v1167 = vld [vmem:[#allocation2 + $0x28] sm:$0x22]
        %v1168 = vsel %vm951, 0, %v1167
        %1169 = vst [vmem:[#allocation2 + $0x28] sm:$0x22] %v1168
        %v1171 = vshrl.u32 %v1154, 16
        %v1173 = vrot.slane %v1171, 6
        %v1174 = vshll.u32 %v1154, 16
        %v1176 = vrot.slane %v1174, 7
        %v1177 = vor.u32 %v1173, %v1176
        %v1178 = vrot.slane %v1173, 4
        %v1181 = vld [vmem:[#allocation2 + $0x28] sm:$0xee]
        %v1182 = vsel %vm1046, %v1177, %v1181
        %1183 = vst [vmem:[#allocation2 + $0x28] sm:$0xee] %v1182
        %v1184 = vld [vmem:[#allocation2 + $0x30] sm:$0x11]
        %v1185 = vsel %vm405, %v1178, %v1184
        %1186 = vst [vmem:[#allocation2 + $0x30] sm:$0x11] %v1185
        %v1187 = vrot.slane %v1171, 7
        %v1188 = vor.u32 %v1187, %v1174
        %1190 = vst.msk [vmem:[%s430 + $0x28] sm:$0xee] %vm1162, %v1188
        %v1191 = vld [vmem:[%s430 + $0x30] sm:$0x11]
        %v1192 = vsel %vm405, 0, %v1191
        %1193 = vst [vmem:[%s430 + $0x30] sm:$0x11] %v1192
        %s1194 = sadd.s32 %s443, 7
        %s1195 = smul.u32 %s1194, 8
        %s1196 = sld [smem:[#allocation4 + %s1195]]
        %v1197 = vld [vmem:[%s1] sm:$0x7f]
        %v1198 = vld [vmem:[%s1 + $0x8] sm:$0x7f]
        %v1199 = vstv %s1196
        %v1200 = vmul.f32 %v1199, %v1197
        %v1201 = vmul.f32 %v1199, %v1198
        %v1202 = vadd.f32 %v303, %v1200
        %v1203 = vadd.f32 %v304, %v1201
        %s1204 = sadd.s32 %s1195, 1
        %s1205 = sld [smem:[#allocation4 + %s1204]]
        %v1206 = vld [vmem:[%s317] sm:$0x7f]
        %v1207 = vld [vmem:[%s317 + $0x8] sm:$0x7f]
        %v1208 = vstv %s1205
        %v1209 = vmul.f32 %v1208, %v1206
        %v1210 = vmul.f32 %v1208, %v1207
        %v1211 = vadd.f32 %v1202, %v1209
        %v1212 = vadd.f32 %v1203, %v1210
        %s1213 = sadd.s32 %s1195, 2
        %s1214 = sld [smem:[#allocation4 + %s1213]]
        %v1215 = vld [vmem:[%s327] sm:$0x7f]
        %v1216 = vld [vmem:[%s327 + $0x8] sm:$0x7f]
        %v1217 = vstv %s1214
        %v1218 = vmul.f32 %v1217, %v1215
        %v1219 = vmul.f32 %v1217, %v1216
        %v1220 = vadd.f32 %v1211, %v1218
        %v1221 = vadd.f32 %v1212, %v1219
        %s1222 = sadd.s32 %s1195, 3
        %s1223 = sld [smem:[#allocation4 + %s1222]]
        %v1224 = vld [vmem:[%s337] sm:$0x7f]
        %v1225 = vld [vmem:[%s337 + $0x8] sm:$0x7f]
        %v1226 = vstv %s1223
        %v1227 = vmul.f32 %v1226, %v1224
        %v1228 = vmul.f32 %v1226, %v1225
        %v1229 = vadd.f32 %v1220, %v1227
        %v1230 = vadd.f32 %v1221, %v1228
        %s1231 = sadd.s32 %s1195, 4
        %s1232 = sld [smem:[#allocation4 + %s1231]]
        %v1233 = vld [vmem:[%s347] sm:$0x7f]
        %v1234 = vld [vmem:[%s347 + $0x8] sm:$0x7f]
        %v1235 = vstv %s1232
        %v1236 = vmul.f32 %v1235, %v1233
        %v1237 = vmul.f32 %v1235, %v1234
        %v1238 = vadd.f32 %v1229, %v1236
        %v1239 = vadd.f32 %v1230, %v1237
        %s1240 = sadd.s32 %s1195, 5
        %s1241 = sld [smem:[#allocation4 + %s1240]]
        %v1242 = vld [vmem:[%s357] sm:$0x7f]
        %v1243 = vld [vmem:[%s357 + $0x8] sm:$0x7f]
        %v1244 = vstv %s1241
        %v1245 = vmul.f32 %v1244, %v1242
        %v1246 = vmul.f32 %v1244, %v1243
        %v1247 = vadd.f32 %v1238, %v1245
        %v1248 = vadd.f32 %v1239, %v1246
        %s1249 = sadd.s32 %s1195, 6
        %s1250 = sld [smem:[#allocation4 + %s1249]]
        %v1251 = vld [vmem:[%s367] sm:$0x7f]
        %v1252 = vld [vmem:[%s367 + $0x8] sm:$0x7f]
        %v1253 = vstv %s1250
        %v1254 = vmul.f32 %v1253, %v1251
        %v1255 = vmul.f32 %v1253, %v1252
        %v1256 = vadd.f32 %v1247, %v1254
        %v1257 = vadd.f32 %v1248, %v1255
        %s1258 = sadd.s32 %s1195, 7
        %s1259 = sld [smem:[#allocation4 + %s1258]]
        %v1260 = vld [vmem:[%s377] sm:$0x7f]
        %v1261 = vld [vmem:[%s377 + $0x8] sm:$0x7f]
        %v1262 = vstv %s1259
        %v1263 = vmul.f32 %v1262, %v1260
        %v1264 = vmul.f32 %v1262, %v1261
        %v1265 = vadd.f32 %v1256, %v1263
        %v1266 = vadd.f32 %v1257, %v1264
        %v1267 = vmax.f32 %v1265, 0.0
        %v1268 = vmax.f32 %v1266, 0.0
        %v1269 = vpack.c.bf16 %v1268, %v1267
        %v1271 = vshrl.u32 %v1269, 16
        %v1273 = vrot.slane %v1271, 7
        %v1274 = vshll.u32 %v1269, 16
        %v1276 = vor.u32 %v1273, %v1274
        %vm1278 = vmand %vm389, %vm1071
        %vm1279 = vmand %vm392, %vm1073
        %vm1280 = vmor %vm1279, %vm1278
        %v1281 = vld [vmem:[%s388 + $0x30] sm:$0xff]
        %v1282 = vsel %vm1280, %v1276, %v1281
        %1283 = vst [vmem:[%s388 + $0x30] sm:$0xff] %v1282
        %v1284 = vld [vmem:[#allocation2 + $0x30] sm:$0x11]
        %v1285 = vsel %vm1075, 0, %v1284
        %1286 = vst [vmem:[#allocation2 + $0x30] sm:$0x11] %v1285
        %v1288 = vrot.slane %v1269, 7
        %1290 = vst.msk [vmem:[#allocation2 + $0x30] sm:$0xee] %vm1162, %v1288
        %v1291 = vld [vmem:[%s430 + $0x30] sm:$0xff]
        %v1292 = vsel %vm421, %v1269, %v1291
        %1293 = vst [vmem:[%s430 + $0x30] sm:$0xff] %v1292
        %v1294 = vld [vmem:[%s430 + $0x30] sm:$0x88]
        %v1295 = vsel %vm535, 0, %v1294
        %1296 = vst [vmem:[%s430 + $0x30] sm:$0x88] %v1295
        %v1297 = vld [vmem:[#allocation2] sm:$0xff]
        %v1298 = vld [vmem:[#allocation2 + $0x8] sm:$0xff]
        %v1299 = vld [vmem:[#allocation2 + $0x10] sm:$0xff]
        %v1300 = vld [vmem:[#allocation2 + $0x18] sm:$0xff]
        %v1301 = vld [vmem:[#allocation2 + $0x20] sm:$0xff]
        %v1302 = vld [vmem:[#allocation2 + $0x28] sm:$0xff]
        %v1303 = vld [vmem:[#allocation2 + $0x30] sm:$0xff]
        %v1304 = vld [vmem:[%s3] sm:$0xff]
        %v1305 = vld [vmem:[%s3 + $0x8] sm:$0xff]
        %v1306 = vld [vmem:[%s3 + $0x10] sm:$0xff]
        %v1307 = vld [vmem:[%s3 + $0x18] sm:$0xff]
        %v1308 = vld [vmem:[%s3 + $0x20] sm:$0xff]
        %v1309 = vld [vmem:[%s3 + $0x28] sm:$0xff]
        %v1310 = vld [vmem:[%s3 + $0x30] sm:$0xff]
        %v1311 = vld [vmem:[%s3 + $0x38] sm:$0xff]
        %v1312 = vld [vmem:[%s3 + $0x40] sm:$0xff]
        %v1313 = vld [vmem:[%s3 + $0x48] sm:$0xff]
        %v1314 = vld [vmem:[%s3 + $0x50] sm:$0xff]
        %v1315 = vld [vmem:[%s3 + $0x58] sm:$0xff]
        %v1316 = vld [vmem:[%s3 + $0x60] sm:$0xff]
        %v1317 = vld [vmem:[%s3 + $0x68] sm:$0xff]
        %v1318 = vld [vmem:[%s3 + $0x70] sm:$0xff]
        %v1319 = vld [vmem:[%s3 + $0x78] sm:$0xff]
        %v1320 = vld [vmem:[%s3 + $0x80] sm:$0xff]
        %v1321 = vld [vmem:[%s3 + $0x88] sm:$0xff]
        %v1322 = vld [vmem:[%s3 + $0x90] sm:$0xff]
        %v1323 = vld [vmem:[%s3 + $0x98] sm:$0xff]
        %v1324 = vld [vmem:[%s3 + $0xa0] sm:$0xff]
        %v1325 = vld [vmem:[%s3 + $0xa8] sm:$0xff]
        %v1326 = vld [vmem:[%s3 + $0xb0] sm:$0xff]
        %v1327 = vld [vmem:[%s3 + $0xb8] sm:$0xff]
        %v1328 = vld [vmem:[%s3 + $0xc0] sm:$0xff]
        %v1329 = vld [vmem:[%s3 + $0xc8] sm:$0xff]
        %v1330 = vld [vmem:[%s3 + $0xd0] sm:$0xff]
        %v1331 = vld [vmem:[%s3 + $0xd8] sm:$0xff]
        %v1332 = vld [vmem:[%s388] sm:$0xff]
        %v1333 = vld [vmem:[%s388 + $0x8] sm:$0xff]
        %v1334 = vld [vmem:[%s388 + $0x10] sm:$0xff]
        %v1335 = vld [vmem:[%s388 + $0x18] sm:$0xff]
        %v1336 = vld [vmem:[%s388 + $0x20] sm:$0xff]
        %v1337 = vld [vmem:[%s388 + $0x28] sm:$0xff]
        %v1338 = vld [vmem:[%s388 + $0x30] sm:$0xff]
        %s1339 = scalar_lea.vmem %s3, 224
        %v1340 = vld [vmem:[%s1339] sm:$0xff]
        %v1341 = vld [vmem:[%s1339 + $0x8] sm:$0xff]
        %v1342 = vld [vmem:[%s1339 + $0x10] sm:$0xff]
        %v1343 = vld [vmem:[%s1339 + $0x18] sm:$0xff]
        %v1344 = vld [vmem:[%s1339 + $0x20] sm:$0xff]
        %v1345 = vld [vmem:[%s1339 + $0x28] sm:$0xff]
        %v1346 = vld [vmem:[%s1339 + $0x30] sm:$0xff]
        %v1347 = vld [vmem:[%s1339 + $0x38] sm:$0xff]
        %v1348 = vld [vmem:[%s1339 + $0x40] sm:$0xff]
        %v1349 = vld [vmem:[%s1339 + $0x48] sm:$0xff]
        %v1350 = vld [vmem:[%s1339 + $0x50] sm:$0xff]
        %v1351 = vld [vmem:[%s1339 + $0x58] sm:$0xff]
        %v1352 = vld [vmem:[%s1339 + $0x60] sm:$0xff]
        %v1353 = vld [vmem:[%s1339 + $0x68] sm:$0xff]
        %v1354 = vld [vmem:[%s1339 + $0x70] sm:$0xff]
        %v1355 = vld [vmem:[%s1339 + $0x78] sm:$0xff]
        %v1356 = vld [vmem:[%s1339 + $0x80] sm:$0xff]
        %v1357 = vld [vmem:[%s1339 + $0x88] sm:$0xff]
        %v1358 = vld [vmem:[%s1339 + $0x90] sm:$0xff]
        %v1359 = vld [vmem:[%s1339 + $0x98] sm:$0xff]
        %v1360 = vld [vmem:[%s1339 + $0xa0] sm:$0xff]
        %v1361 = vld [vmem:[%s1339 + $0xa8] sm:$0xff]
        %v1362 = vld [vmem:[%s1339 + $0xb0] sm:$0xff]
        %v1363 = vld [vmem:[%s1339 + $0xb8] sm:$0xff]
        %v1364 = vld [vmem:[%s1339 + $0xc0] sm:$0xff]
        %v1365 = vld [vmem:[%s1339 + $0xc8] sm:$0xff]
        %v1366 = vld [vmem:[%s1339 + $0xd0] sm:$0xff]
        %v1367 = vld [vmem:[%s1339 + $0xd8] sm:$0xff]
        %v1375 = vunpack.c.l.b16 %v1332
        %v1376 = vunpack.c.h.b16 %v1332
        %v1377 = vunpack.c.l.b16 %v1333
        %v1378 = vunpack.c.h.b16 %v1333
        %v1379 = vunpack.c.l.b16 %v1334
        %v1380 = vunpack.c.h.b16 %v1334
        %v1381 = vunpack.c.l.b16 %v1335
        %v1382 = vunpack.c.h.b16 %v1335
        %v1383 = vunpack.c.l.b16 %v1336
        %v1384 = vunpack.c.h.b16 %v1336
        %v1385 = vunpack.c.l.b16 %v1337
        %v1386 = vunpack.c.h.b16 %v1337
        %v1387 = vunpack.c.l.b16 %v1338
        %v1388 = vunpack.c.h.b16 %v1338
        %v1389 = vpack.c.b16 %v1377, %v1375
        %v1390 = vpack.c.b16 %v1378, %v1376
        %v1391 = vpack.c.b16 %v1381, %v1379
        %v1392 = vpack.c.b16 %v1382, %v1380
        %v1393 = vpack.c.b16 %v1385, %v1383
        %v1394 = vpack.c.b16 %v1386, %v1384
        %v1395 = vpack.c.b16 %v1387, %v1387
        %v1396 = vpack.c.b16 %v1388, %v1388
        %v1429 = vunpack.c.l.b16 %v1340
        %v1430 = vunpack.c.h.b16 %v1340
        %v1431 = vunpack.c.l.b16 %v1341
        %v1432 = vunpack.c.h.b16 %v1341
        %v1433 = vunpack.c.l.b16 %v1342
        %v1434 = vunpack.c.h.b16 %v1342
        %v1435 = vunpack.c.l.b16 %v1343
        %v1436 = vunpack.c.h.b16 %v1343
        %v1437 = vunpack.c.l.b16 %v1344
        %v1438 = vunpack.c.h.b16 %v1344
        %v1439 = vunpack.c.l.b16 %v1345
        %v1440 = vunpack.c.h.b16 %v1345
        %v1441 = vunpack.c.l.b16 %v1346
        %v1442 = vunpack.c.h.b16 %v1346
        %v1443 = vunpack.c.l.b16 %v1347
        %v1444 = vunpack.c.h.b16 %v1347
        %v1445 = vunpack.c.l.b16 %v1348
        %v1446 = vunpack.c.h.b16 %v1348
        %v1447 = vunpack.c.l.b16 %v1349
        %v1448 = vunpack.c.h.b16 %v1349
        %v1449 = vunpack.c.l.b16 %v1350
        %v1450 = vunpack.c.h.b16 %v1350
        %v1451 = vunpack.c.l.b16 %v1351
        %v1452 = vunpack.c.h.b16 %v1351
        %v1453 = vunpack.c.l.b16 %v1352
        %v1454 = vunpack.c.h.b16 %v1352
        %v1455 = vunpack.c.l.b16 %v1353
        %v1456 = vunpack.c.h.b16 %v1353
        %v1457 = vunpack.c.l.b16 %v1354
        %v1458 = vunpack.c.h.b16 %v1354
        %v1459 = vunpack.c.l.b16 %v1355
        %v1460 = vunpack.c.h.b16 %v1355
        %v1461 = vunpack.c.l.b16 %v1356
        %v1462 = vunpack.c.h.b16 %v1356
        %v1463 = vunpack.c.l.b16 %v1357
        %v1464 = vunpack.c.h.b16 %v1357
        %v1465 = vunpack.c.l.b16 %v1358
        %v1466 = vunpack.c.h.b16 %v1358
        %v1467 = vunpack.c.l.b16 %v1359
        %v1468 = vunpack.c.h.b16 %v1359
        %v1469 = vunpack.c.l.b16 %v1360
        %v1470 = vunpack.c.h.b16 %v1360
        %v1471 = vunpack.c.l.b16 %v1361
        %v1472 = vunpack.c.h.b16 %v1361
        %v1473 = vunpack.c.l.b16 %v1362
        %v1474 = vunpack.c.h.b16 %v1362
        %v1475 = vunpack.c.l.b16 %v1363
        %v1476 = vunpack.c.h.b16 %v1363
        %v1477 = vunpack.c.l.b16 %v1364
        %v1478 = vunpack.c.h.b16 %v1364
        %v1479 = vunpack.c.l.b16 %v1365
        %v1480 = vunpack.c.h.b16 %v1365
        %v1481 = vunpack.c.l.b16 %v1366
        %v1482 = vunpack.c.h.b16 %v1366
        %v1483 = vunpack.c.l.b16 %v1367
        %v1484 = vunpack.c.h.b16 %v1367
        %v1485 = vpack.c.b16 %v1431, %v1429
        %v1486 = vpack.c.b16 %v1432, %v1430
        %v1487 = vpack.c.b16 %v1435, %v1433
        %v1488 = vpack.c.b16 %v1436, %v1434
        %v1489 = vpack.c.b16 %v1439, %v1437
        %v1490 = vpack.c.b16 %v1440, %v1438
        %v1491 = vpack.c.b16 %v1443, %v1441
        %v1492 = vpack.c.b16 %v1444, %v1442
        %v1493 = vpack.c.b16 %v1447, %v1445
        %v1494 = vpack.c.b16 %v1448, %v1446
        %v1495 = vpack.c.b16 %v1451, %v1449
        %v1496 = vpack.c.b16 %v1452, %v1450
        %v1497 = vpack.c.b16 %v1455, %v1453
        %v1498 = vpack.c.b16 %v1456, %v1454
        %v1499 = vpack.c.b16 %v1459, %v1457
        %v1500 = vpack.c.b16 %v1460, %v1458
        %v1501 = vpack.c.b16 %v1463, %v1461
        %v1502 = vpack.c.b16 %v1464, %v1462
        %v1503 = vpack.c.b16 %v1467, %v1465
        %v1504 = vpack.c.b16 %v1468, %v1466
        %v1505 = vpack.c.b16 %v1471, %v1469
        %v1506 = vpack.c.b16 %v1472, %v1470
        %v1507 = vpack.c.b16 %v1475, %v1473
        %v1508 = vpack.c.b16 %v1476, %v1474
        %v1509 = vpack.c.b16 %v1479, %v1477
        %v1510 = vpack.c.b16 %v1480, %v1478
        %v1511 = vpack.c.b16 %v1483, %v1481
        %v1512 = vpack.c.b16 %v1484, %v1482
        %vm1541 = vcmask 785408
        %v1543 = vsel %vm1541, %v1390, 0
        %v1546 = vsel %vm1541, %v1392, 0
        %v1549 = vsel %vm1541, %v1394, 0
        %v1552 = vsel %vm1541, %v1396, 0
        %1554 = vmatpush.bf16.msra.mxu0 %v1499
        %1555 = vmatpush.bf16.msra.mxu0 %v1497
        %1556 = vmatpush.bf16.msra.mxu0 %v1495
        %1557 = vmatpush.bf16.msra.mxu0 %v1493
        %1558 = vmatpush.bf16.msra.mxu0 %v1491
        %1559 = vmatpush.bf16.msra.mxu0 %v1489
        %1560 = vmatpush.bf16.msra.mxu0 %v1487
        %1561 = vmatpush.bf16.msra.mxu0 %v1485
        %1562 = vmatmul.bf16.gmra.mxu0 %v1389
        %v1563 = vpop.f32.mrf.mxu0
        %v1564 = vadd.f32 0.0, %v1563
        %v1565 = vpop.f32.mrf.mxu0
        %v1566 = vadd.f32 0.0, %v1565
        %1567 = vmatmul.bf16.gmra.mxu0 %v1391
        %v1568 = vpop.f32.mrf.mxu0
        %v1569 = vadd.f32 0.0, %v1568
        %v1570 = vpop.f32.mrf.mxu0
        %v1571 = vadd.f32 0.0, %v1570
        %1572 = vmatmul.bf16.gmra.mxu0 %v1393
        %v1573 = vpop.f32.mrf.mxu0
        %v1574 = vadd.f32 0.0, %v1573
        %v1575 = vpop.f32.mrf.mxu0
        %v1576 = vadd.f32 0.0, %v1575
        %1577 = vmatmul.bf16.gmra.mxu0 %v1395
        %v1578 = vpop.f32.mrf.mxu0
        %v1579 = vadd.f32 0.0, %v1578
        %v1580 = vpop.f32.mrf.mxu0
        %1581 = vdwg.mxu0
        %1582 = vmatpush.bf16.msra.mxu0 0
        %1583 = vmatpush.bf16.msra.mxu0 0
        %1584 = vmatpush.bf16.msra.mxu0 %v1511
        %1585 = vmatpush.bf16.msra.mxu0 %v1509
        %1586 = vmatpush.bf16.msra.mxu0 %v1507
        %1587 = vmatpush.bf16.msra.mxu0 %v1505
        %1588 = vmatpush.bf16.msra.mxu0 %v1503
        %1589 = vmatpush.bf16.msra.mxu0 %v1501
        %1590 = vmatmul.bf16.gmra.mxu0 %v1543
        %v1591 = vpop.f32.mrf.mxu0
        %v1592 = vadd.f32 %v1564, %v1591
        %v1593 = vpop.f32.mrf.mxu0
        %v1594 = vadd.f32 %v1566, %v1593
        %1595 = vmatmul.bf16.gmra.mxu0 %v1546
        %v1596 = vpop.f32.mrf.mxu0
        %v1597 = vadd.f32 %v1569, %v1596
        %v1598 = vpop.f32.mrf.mxu0
        %v1599 = vadd.f32 %v1571, %v1598
        %1600 = vmatmul.bf16.gmra.mxu0 %v1549
        %v1601 = vpop.f32.mrf.mxu0
        %v1602 = vadd.f32 %v1574, %v1601
        %v1603 = vpop.f32.mrf.mxu0
        %v1604 = vadd.f32 %v1576, %v1603
        %1605 = vmatmul.bf16.gmra.mxu0 %v1552
        %v1606 = vpop.f32.mrf.mxu0
        %v1607 = vadd.f32 %v1579, %v1606
        %v1608 = vpop.f32.mrf.mxu0
        %1609 = vdwg.mxu0
        %1610 = vmatpush.bf16.msra.mxu0 %v1500
        %1611 = vmatpush.bf16.msra.mxu0 %v1498
        %1612 = vmatpush.bf16.msra.mxu0 %v1496
        %1613 = vmatpush.bf16.msra.mxu0 %v1494
        %1614 = vmatpush.bf16.msra.mxu0 %v1492
        %1615 = vmatpush.bf16.msra.mxu0 %v1490
        %1616 = vmatpush.bf16.msra.mxu0 %v1488
        %1617 = vmatpush.bf16.msra.mxu0 %v1486
        %1618 = vmatmul.bf16.gmra.mxu0 %v1389
        %v1619 = vpop.f32.mrf.mxu0
        %v1620 = vadd.f32 0.0, %v1619
        %v1621 = vpop.f32.mrf.mxu0
        %v1622 = vadd.f32 0.0, %v1621
        %1623 = vmatmul.bf16.gmra.mxu0 %v1391
        %v1624 = vpop.f32.mrf.mxu0
        %v1625 = vadd.f32 0.0, %v1624
        %v1626 = vpop.f32.mrf.mxu0
        %v1627 = vadd.f32 0.0, %v1626
        %1628 = vmatmul.bf16.gmra.mxu0 %v1393
        %v1629 = vpop.f32.mrf.mxu0
        %v1630 = vadd.f32 0.0, %v1629
        %v1631 = vpop.f32.mrf.mxu0
        %v1632 = vadd.f32 0.0, %v1631
        %1633 = vmatmul.bf16.gmra.mxu0 %v1395
        %v1634 = vpop.f32.mrf.mxu0
        %v1635 = vadd.f32 0.0, %v1634
        %v1636 = vpop.f32.mrf.mxu0
        %1637 = vdwg.mxu0
        %1638 = vmatpush.bf16.msra.mxu0 0
        %1639 = vmatpush.bf16.msra.mxu0 0
        %1640 = vmatpush.bf16.msra.mxu0 %v1512
        %1641 = vmatpush.bf16.msra.mxu0 %v1510
        %1642 = vmatpush.bf16.msra.mxu0 %v1508
        %1643 = vmatpush.bf16.msra.mxu0 %v1506
        %1644 = vmatpush.bf16.msra.mxu0 %v1504
        %1645 = vmatpush.bf16.msra.mxu0 %v1502
        %1646 = vmatmul.bf16.gmra.mxu0 %v1543
        %v1647 = vpop.f32.mrf.mxu0
        %v1648 = vadd.f32 %v1620, %v1647
        %v1649 = vpop.f32.mrf.mxu0
        %v1650 = vadd.f32 %v1622, %v1649
        %1651 = vmatmul.bf16.gmra.mxu0 %v1546
        %v1652 = vpop.f32.mrf.mxu0
        %v1653 = vadd.f32 %v1625, %v1652
        %v1654 = vpop.f32.mrf.mxu0
        %v1655 = vadd.f32 %v1627, %v1654
        %1656 = vmatmul.bf16.gmra.mxu0 %v1549
        %v1657 = vpop.f32.mrf.mxu0
        %v1658 = vadd.f32 %v1630, %v1657
        %v1659 = vpop.f32.mrf.mxu0
        %v1660 = vadd.f32 %v1632, %v1659
        %1661 = vmatmul.bf16.gmra.mxu0 %v1552
        %v1662 = vpop.f32.mrf.mxu0
        %v1663 = vadd.f32 %v1635, %v1662
        %v1664 = vpop.f32.mrf.mxu0
        %1665 = vdwg.mxu0
        %v1673 = vunpack.c.l.b16 %v1297
        %v1674 = vunpack.c.h.b16 %v1297
        %v1675 = vunpack.c.l.b16 %v1298
        %v1676 = vunpack.c.h.b16 %v1298
        %v1677 = vunpack.c.l.b16 %v1299
        %v1678 = vunpack.c.h.b16 %v1299
        %v1679 = vunpack.c.l.b16 %v1300
        %v1680 = vunpack.c.h.b16 %v1300
        %v1681 = vunpack.c.l.b16 %v1301
        %v1682 = vunpack.c.h.b16 %v1301
        %v1683 = vunpack.c.l.b16 %v1302
        %v1684 = vunpack.c.h.b16 %v1302
        %v1685 = vunpack.c.l.b16 %v1303
        %v1686 = vunpack.c.h.b16 %v1303
        %v1687 = vpack.c.b16 %v1675, %v1673
        %v1688 = vpack.c.b16 %v1676, %v1674
        %v1689 = vpack.c.b16 %v1679, %v1677
        %v1690 = vpack.c.b16 %v1680, %v1678
        %v1691 = vpack.c.b16 %v1683, %v1681
        %v1692 = vpack.c.b16 %v1684, %v1682
        %v1693 = vpack.c.b16 %v1685, %v1685
        %v1694 = vpack.c.b16 %v1686, %v1686
        %v1727 = vunpack.c.l.b16 %v1304
        %v1728 = vunpack.c.h.b16 %v1304
        %v1729 = vunpack.c.l.b16 %v1305
        %v1730 = vunpack.c.h.b16 %v1305
        %v1731 = vunpack.c.l.b16 %v1306
        %v1732 = vunpack.c.h.b16 %v1306
        %v1733 = vunpack.c.l.b16 %v1307
        %v1734 = vunpack.c.h.b16 %v1307
        %v1735 = vunpack.c.l.b16 %v1308
        %v1736 = vunpack.c.h.b16 %v1308
        %v1737 = vunpack.c.l.b16 %v1309
        %v1738 = vunpack.c.h.b16 %v1309
        %v1739 = vunpack.c.l.b16 %v1310
        %v1740 = vunpack.c.h.b16 %v1310
        %v1741 = vunpack.c.l.b16 %v1311
        %v1742 = vunpack.c.h.b16 %v1311
        %v1743 = vunpack.c.l.b16 %v1312
        %v1744 = vunpack.c.h.b16 %v1312
        %v1745 = vunpack.c.l.b16 %v1313
        %v1746 = vunpack.c.h.b16 %v1313
        %v1747 = vunpack.c.l.b16 %v1314
        %v1748 = vunpack.c.h.b16 %v1314
        %v1749 = vunpack.c.l.b16 %v1315
        %v1750 = vunpack.c.h.b16 %v1315
        %v1751 = vunpack.c.l.b16 %v1316
        %v1752 = vunpack.c.h.b16 %v1316
        %v1753 = vunpack.c.l.b16 %v1317
        %v1754 = vunpack.c.h.b16 %v1317
        %v1755 = vunpack.c.l.b16 %v1318
        %v1756 = vunpack.c.h.b16 %v1318
        %v1757 = vunpack.c.l.b16 %v1319
        %v1758 = vunpack.c.h.b16 %v1319
        %v1759 = vunpack.c.l.b16 %v1320
        %v1760 = vunpack.c.h.b16 %v1320
        %v1761 = vunpack.c.l.b16 %v1321
        %v1762 = vunpack.c.h.b16 %v1321
        %v1763 = vunpack.c.l.b16 %v1322
        %v1764 = vunpack.c.h.b16 %v1322
        %v1765 = vunpack.c.l.b16 %v1323
        %v1766 = vunpack.c.h.b16 %v1323
        %v1767 = vunpack.c.l.b16 %v1324
        %v1768 = vunpack.c.h.b16 %v1324
        %v1769 = vunpack.c.l.b16 %v1325
        %v1770 = vunpack.c.h.b16 %v1325
        %v1771 = vunpack.c.l.b16 %v1326
        %v1772 = vunpack.c.h.b16 %v1326
        %v1773 = vunpack.c.l.b16 %v1327
        %v1774 = vunpack.c.h.b16 %v1327
        %v1775 = vunpack.c.l.b16 %v1328
        %v1776 = vunpack.c.h.b16 %v1328
        %v1777 = vunpack.c.l.b16 %v1329
        %v1778 = vunpack.c.h.b16 %v1329
        %v1779 = vunpack.c.l.b16 %v1330
        %v1780 = vunpack.c.h.b16 %v1330
        %v1781 = vunpack.c.l.b16 %v1331
        %v1782 = vunpack.c.h.b16 %v1331
        %v1783 = vpack.c.b16 %v1729, %v1727
        %v1784 = vpack.c.b16 %v1730, %v1728
        %v1785 = vpack.c.b16 %v1733, %v1731
        %v1786 = vpack.c.b16 %v1734, %v1732
        %v1787 = vpack.c.b16 %v1737, %v1735
        %v1788 = vpack.c.b16 %v1738, %v1736
        %v1789 = vpack.c.b16 %v1741, %v1739
        %v1790 = vpack.c.b16 %v1742, %v1740
        %v1791 = vpack.c.b16 %v1745, %v1743
        %v1792 = vpack.c.b16 %v1746, %v1744
        %v1793 = vpack.c.b16 %v1749, %v1747
        %v1794 = vpack.c.b16 %v1750, %v1748
        %v1795 = vpack.c.b16 %v1753, %v1751
        %v1796 = vpack.c.b16 %v1754, %v1752
        %v1797 = vpack.c.b16 %v1757, %v1755
        %v1798 = vpack.c.b16 %v1758, %v1756
        %v1799 = vpack.c.b16 %v1761, %v1759
        %v1800 = vpack.c.b16 %v1762, %v1760
        %v1801 = vpack.c.b16 %v1765, %v1763
        %v1802 = vpack.c.b16 %v1766, %v1764
        %v1803 = vpack.c.b16 %v1769, %v1767
        %v1804 = vpack.c.b16 %v1770, %v1768
        %v1805 = vpack.c.b16 %v1773, %v1771
        %v1806 = vpack.c.b16 %v1774, %v1772
        %v1807 = vpack.c.b16 %v1777, %v1775
        %v1808 = vpack.c.b16 %v1778, %v1776
        %v1809 = vpack.c.b16 %v1781, %v1779
        %v1810 = vpack.c.b16 %v1782, %v1780
        %v1840 = vsel %vm1541, %v1688, 0
        %v1843 = vsel %vm1541, %v1690, 0
        %v1846 = vsel %vm1541, %v1692, 0
        %v1849 = vsel %vm1541, %v1694, 0
        %1851 = vmatpush.bf16.msra.mxu0 %v1797
        %1852 = vmatpush.bf16.msra.mxu0 %v1795
        %1853 = vmatpush.bf16.msra.mxu0 %v1793
        %1854 = vmatpush.bf16.msra.mxu0 %v1791
        %1855 = vmatpush.bf16.msra.mxu0 %v1789
        %1856 = vmatpush.bf16.msra.mxu0 %v1787
        %1857 = vmatpush.bf16.msra.mxu0 %v1785
        %1858 = vmatpush.bf16.msra.mxu0 %v1783
        %1859 = vmatmul.bf16.gmra.mxu0 %v1687
        %v1860 = vpop.f32.mrf.mxu0
        %v1861 = vadd.f32 %v1592, %v1860
        %v1862 = vpop.f32.mrf.mxu0
        %v1863 = vadd.f32 %v1594, %v1862
        %1864 = vmatmul.bf16.gmra.mxu0 %v1689
        %v1865 = vpop.f32.mrf.mxu0
        %v1866 = vadd.f32 %v1597, %v1865
        %v1867 = vpop.f32.mrf.mxu0
        %v1868 = vadd.f32 %v1599, %v1867
        %1869 = vmatmul.bf16.gmra.mxu0 %v1691
        %v1870 = vpop.f32.mrf.mxu0
        %v1871 = vadd.f32 %v1602, %v1870
        %v1872 = vpop.f32.mrf.mxu0
        %v1873 = vadd.f32 %v1604, %v1872
        %1874 = vmatmul.bf16.gmra.mxu0 %v1693
        %v1875 = vpop.f32.mrf.mxu0
        %v1876 = vadd.f32 %v1607, %v1875
        %v1877 = vpop.f32.mrf.mxu0
        %1878 = vdwg.mxu0
        %1879 = vmatpush.bf16.msra.mxu0 0
        %1880 = vmatpush.bf16.msra.mxu0 0
        %1881 = vmatpush.bf16.msra.mxu0 %v1809
        %1882 = vmatpush.bf16.msra.mxu0 %v1807
        %1883 = vmatpush.bf16.msra.mxu0 %v1805
        %1884 = vmatpush.bf16.msra.mxu0 %v1803
        %1885 = vmatpush.bf16.msra.mxu0 %v1801
        %1886 = vmatpush.bf16.msra.mxu0 %v1799
        %1887 = vmatmul.bf16.gmra.mxu0 %v1840
        %v1888 = vpop.f32.mrf.mxu0
        %v1889 = vadd.f32 %v1861, %v1888
        %v1890 = vpop.f32.mrf.mxu0
        %v1891 = vadd.f32 %v1863, %v1890
        %1892 = vmatmul.bf16.gmra.mxu0 %v1843
        %v1893 = vpop.f32.mrf.mxu0
        %v1894 = vadd.f32 %v1866, %v1893
        %v1895 = vpop.f32.mrf.mxu0
        %v1896 = vadd.f32 %v1868, %v1895
        %1897 = vmatmul.bf16.gmra.mxu0 %v1846
        %v1898 = vpop.f32.mrf.mxu0
        %v1899 = vadd.f32 %v1871, %v1898
        %v1900 = vpop.f32.mrf.mxu0
        %v1901 = vadd.f32 %v1873, %v1900
        %1902 = vmatmul.bf16.gmra.mxu0 %v1849
        %v1903 = vpop.f32.mrf.mxu0
        %v1904 = vadd.f32 %v1876, %v1903
        %v1905 = vpop.f32.mrf.mxu0
        %1906 = vdwg.mxu0
        %1907 = vmatpush.bf16.msra.mxu0 %v1798
        %1908 = vmatpush.bf16.msra.mxu0 %v1796
        %1909 = vmatpush.bf16.msra.mxu0 %v1794
        %1910 = vmatpush.bf16.msra.mxu0 %v1792
        %1911 = vmatpush.bf16.msra.mxu0 %v1790
        %1912 = vmatpush.bf16.msra.mxu0 %v1788
        %1913 = vmatpush.bf16.msra.mxu0 %v1786
        %1914 = vmatpush.bf16.msra.mxu0 %v1784
        %1915 = vmatmul.bf16.gmra.mxu0 %v1687
        %v1916 = vpop.f32.mrf.mxu0
        %v1917 = vadd.f32 %v1648, %v1916
        %v1918 = vpop.f32.mrf.mxu0
        %v1919 = vadd.f32 %v1650, %v1918
        %1920 = vmatmul.bf16.gmra.mxu0 %v1689
        %v1921 = vpop.f32.mrf.mxu0
        %v1922 = vadd.f32 %v1653, %v1921
        %v1923 = vpop.f32.mrf.mxu0
        %v1924 = vadd.f32 %v1655, %v1923
        %1925 = vmatmul.bf16.gmra.mxu0 %v1691
        %v1926 = vpop.f32.mrf.mxu0
        %v1927 = vadd.f32 %v1658, %v1926
        %v1928 = vpop.f32.mrf.mxu0
        %v1929 = vadd.f32 %v1660, %v1928
        %1930 = vmatmul.bf16.gmra.mxu0 %v1693
        %v1931 = vpop.f32.mrf.mxu0
        %v1932 = vadd.f32 %v1663, %v1931
        %v1933 = vpop.f32.mrf.mxu0
        %1934 = vdwg.mxu0
        %1935 = vmatpush.bf16.msra.mxu0 0
        %1936 = vmatpush.bf16.msra.mxu0 0
        %1937 = vmatpush.bf16.msra.mxu0 %v1810
        %1938 = vmatpush.bf16.msra.mxu0 %v1808
        %1939 = vmatpush.bf16.msra.mxu0 %v1806
        %1940 = vmatpush.bf16.msra.mxu0 %v1804
        %1941 = vmatpush.bf16.msra.mxu0 %v1802
        %1942 = vmatpush.bf16.msra.mxu0 %v1800
        %1943 = vmatmul.bf16.gmra.mxu0 %v1840
        %v1944 = vpop.f32.mrf.mxu0
        %v1945 = vadd.f32 %v1917, %v1944
        %v1946 = vpop.f32.mrf.mxu0
        %v1947 = vadd.f32 %v1919, %v1946
        %1948 = vmatmul.bf16.gmra.mxu0 %v1843
        %v1949 = vpop.f32.mrf.mxu0
        %v1950 = vadd.f32 %v1922, %v1949
        %v1951 = vpop.f32.mrf.mxu0
        %v1952 = vadd.f32 %v1924, %v1951
        %1953 = vmatmul.bf16.gmra.mxu0 %v1846
        %v1954 = vpop.f32.mrf.mxu0
        %v1955 = vadd.f32 %v1927, %v1954
        %v1956 = vpop.f32.mrf.mxu0
        %v1957 = vadd.f32 %v1929, %v1956
        %1958 = vmatmul.bf16.gmra.mxu0 %v1849
        %v1959 = vpop.f32.mrf.mxu0
        %v1960 = vadd.f32 %v1932, %v1959
        %v1961 = vpop.f32.mrf.mxu0
        %1962 = vdwg.mxu0
        %v1964 = vperm.slane %v305, 0
        %v1965 = vperm.slane %v305, 1
        %v1968 = vadd.f32 %v1889, %v1964
        %v1969 = vadd.f32 %v1945, %v1965
        %v1970 = vadd.f32 %v1891, %v1964
        %v1971 = vadd.f32 %v1947, %v1965
        %v1972 = vadd.f32 %v1894, %v1964
        %v1973 = vadd.f32 %v1950, %v1965
        %v1974 = vadd.f32 %v1896, %v1964
        %v1975 = vadd.f32 %v1952, %v1965
        %v1976 = vadd.f32 %v1899, %v1964
        %v1977 = vadd.f32 %v1955, %v1965
        %v1978 = vadd.f32 %v1901, %v1964
        %v1979 = vadd.f32 %v1957, %v1965
        %v1980 = vadd.f32 %v1904, %v1964
        %v1981 = vadd.f32 %v1960, %v1965
        %v1982 = vmax.f32 %v1968, 0.0
        %v1983 = vmax.f32 %v1969, 0.0
        %v1984 = vmax.f32 %v1970, 0.0
        %v1985 = vmax.f32 %v1971, 0.0
        %v1986 = vmax.f32 %v1972, 0.0
        %v1987 = vmax.f32 %v1973, 0.0
        %v1988 = vmax.f32 %v1974, 0.0
        %v1989 = vmax.f32 %v1975, 0.0
        %v1990 = vmax.f32 %v1976, 0.0
        %v1991 = vmax.f32 %v1977, 0.0
        %v1992 = vmax.f32 %v1978, 0.0
        %v1993 = vmax.f32 %v1979, 0.0
        %v1994 = vmax.f32 %v1980, 0.0
        %v1995 = vmax.f32 %v1981, 0.0
        %v1996 = vpack.c.bf16 %v1984, %v1982
        %v1997 = vpack.c.bf16 %v1985, %v1983
        %v1998 = vpack.c.bf16 %v1988, %v1986
        %v1999 = vpack.c.bf16 %v1989, %v1987
        %v2000 = vpack.c.bf16 %v1992, %v1990
        %v2001 = vpack.c.bf16 %v1993, %v1991
        %v2002 = vpack.c.bf16 %v1994, %v1994
        %v2003 = vpack.c.bf16 %v1995, %v1995
        %s2004 = scalar_lea.vmem %s3, 448
        %v2005 = vld [vmem:[%s2004] sm:$0xff]
        %v2006 = vld [vmem:[%s2004 + $0x8] sm:$0xff]
        %v2007 = vld [vmem:[%s2004 + $0x10] sm:$0xff]
        %v2008 = vld [vmem:[%s2004 + $0x18] sm:$0xff]
        %v2009 = vld [vmem:[%s2004 + $0x20] sm:$0xff]
        %v2010 = vld [vmem:[%s2004 + $0x28] sm:$0xff]
        %v2011 = vld [vmem:[%s2004 + $0x30] sm:$0xff]
        %v2012 = vld [vmem:[%s2004 + $0x38] sm:$0xff]
        %v2013 = vld [vmem:[%s2004 + $0x40] sm:$0xff]
        %v2014 = vld [vmem:[%s2004 + $0x48] sm:$0xff]
        %v2015 = vld [vmem:[%s2004 + $0x50] sm:$0xff]
        %v2016 = vld [vmem:[%s2004 + $0x58] sm:$0xff]
        %v2017 = vld [vmem:[%s2004 + $0x60] sm:$0xff]
        %v2018 = vld [vmem:[%s2004 + $0x68] sm:$0xff]
        %v2019 = vld [vmem:[%s2004 + $0x70] sm:$0xff]
        %v2020 = vld [vmem:[%s2004 + $0x78] sm:$0xff]
        %v2021 = vld [vmem:[%s2004 + $0x80] sm:$0xff]
        %v2022 = vld [vmem:[%s2004 + $0x88] sm:$0xff]
        %v2023 = vld [vmem:[%s2004 + $0x90] sm:$0xff]
        %v2024 = vld [vmem:[%s2004 + $0x98] sm:$0xff]
        %v2025 = vld [vmem:[%s2004 + $0xa0] sm:$0xff]
        %v2026 = vld [vmem:[%s2004 + $0xa8] sm:$0xff]
        %v2027 = vld [vmem:[%s2004 + $0xb0] sm:$0xff]
        %v2028 = vld [vmem:[%s2004 + $0xb8] sm:$0xff]
        %v2029 = vld [vmem:[%s2004 + $0xc0] sm:$0xff]
        %v2030 = vld [vmem:[%s2004 + $0xc8] sm:$0xff]
        %v2031 = vld [vmem:[%s2004 + $0xd0] sm:$0xff]
        %v2032 = vld [vmem:[%s2004 + $0xd8] sm:$0xff]
        %v2033 = vld [vmem:[%s430] sm:$0xff]
        %v2034 = vld [vmem:[%s430 + $0x8] sm:$0xff]
        %v2035 = vld [vmem:[%s430 + $0x10] sm:$0xff]
        %v2036 = vld [vmem:[%s430 + $0x18] sm:$0xff]
        %v2037 = vld [vmem:[%s430 + $0x20] sm:$0xff]
        %v2038 = vld [vmem:[%s430 + $0x28] sm:$0xff]
        %v2039 = vld [vmem:[%s430 + $0x30] sm:$0xff]
        %s2040 = scalar_lea.vmem %s3, 672
        %v2041 = vld [vmem:[%s2040] sm:$0xff]
        %v2042 = vld [vmem:[%s2040 + $0x8] sm:$0xff]
        %v2043 = vld [vmem:[%s2040 + $0x10] sm:$0xff]
        %v2044 = vld [vmem:[%s2040 + $0x18] sm:$0xff]
        %v2045 = vld [vmem:[%s2040 + $0x20] sm:$0xff]
        %v2046 = vld [vmem:[%s2040 + $0x28] sm:$0xff]
        %v2047 = vld [vmem:[%s2040 + $0x30] sm:$0xff]
        %v2048 = vld [vmem:[%s2040 + $0x38] sm:$0xff]
        %v2049 = vld [vmem:[%s2040 + $0x40] sm:$0xff]
        %v2050 = vld [vmem:[%s2040 + $0x48] sm:$0xff]
        %v2051 = vld [vmem:[%s2040 + $0x50] sm:$0xff]
        %v2052 = vld [vmem:[%s2040 + $0x58] sm:$0xff]
        %v2053 = vld [vmem:[%s2040 + $0x60] sm:$0xff]
        %v2054 = vld [vmem:[%s2040 + $0x68] sm:$0xff]
        %v2055 = vld [vmem:[%s2040 + $0x70] sm:$0xff]
        %v2056 = vld [vmem:[%s2040 + $0x78] sm:$0xff]
        %v2057 = vld [vmem:[%s2040 + $0x80] sm:$0xff]
        %v2058 = vld [vmem:[%s2040 + $0x88] sm:$0xff]
        %v2059 = vld [vmem:[%s2040 + $0x90] sm:$0xff]
        %v2060 = vld [vmem:[%s2040 + $0x98] sm:$0xff]
        %v2061 = vld [vmem:[%s2040 + $0xa0] sm:$0xff]
        %v2062 = vld [vmem:[%s2040 + $0xa8] sm:$0xff]
        %v2063 = vld [vmem:[%s2040 + $0xb0] sm:$0xff]
        %v2064 = vld [vmem:[%s2040 + $0xb8] sm:$0xff]
        %v2065 = vld [vmem:[%s2040 + $0xc0] sm:$0xff]
        %v2066 = vld [vmem:[%s2040 + $0xc8] sm:$0xff]
        %v2067 = vld [vmem:[%s2040 + $0xd0] sm:$0xff]
        %v2068 = vld [vmem:[%s2040 + $0xd8] sm:$0xff]
        %v2076 = vunpack.c.l.b16 %v2033
        %v2077 = vunpack.c.h.b16 %v2033
        %v2078 = vunpack.c.l.b16 %v2034
        %v2079 = vunpack.c.h.b16 %v2034
        %v2080 = vunpack.c.l.b16 %v2035
        %v2081 = vunpack.c.h.b16 %v2035
        %v2082 = vunpack.c.l.b16 %v2036
        %v2083 = vunpack.c.h.b16 %v2036
        %v2084 = vunpack.c.l.b16 %v2037
        %v2085 = vunpack.c.h.b16 %v2037
        %v2086 = vunpack.c.l.b16 %v2038
        %v2087 = vunpack.c.h.b16 %v2038
        %v2088 = vunpack.c.l.b16 %v2039
        %v2089 = vunpack.c.h.b16 %v2039
        %v2090 = vpack.c.b16 %v2078, %v2076
        %v2091 = vpack.c.b16 %v2079, %v2077
        %v2092 = vpack.c.b16 %v2082, %v2080
        %v2093 = vpack.c.b16 %v2083, %v2081
        %v2094 = vpack.c.b16 %v2086, %v2084
        %v2095 = vpack.c.b16 %v2087, %v2085
        %v2096 = vpack.c.b16 %v2088, %v2088
        %v2097 = vpack.c.b16 %v2089, %v2089
        %v2130 = vunpack.c.l.b16 %v2041
        %v2131 = vunpack.c.h.b16 %v2041
        %v2132 = vunpack.c.l.b16 %v2042
        %v2133 = vunpack.c.h.b16 %v2042
        %v2134 = vunpack.c.l.b16 %v2043
        %v2135 = vunpack.c.h.b16 %v2043
        %v2136 = vunpack.c.l.b16 %v2044
        %v2137 = vunpack.c.h.b16 %v2044
        %v2138 = vunpack.c.l.b16 %v2045
        %v2139 = vunpack.c.h.b16 %v2045
        %v2140 = vunpack.c.l.b16 %v2046
        %v2141 = vunpack.c.h.b16 %v2046
        %v2142 = vunpack.c.l.b16 %v2047
        %v2143 = vunpack.c.h.b16 %v2047
        %v2144 = vunpack.c.l.b16 %v2048
        %v2145 = vunpack.c.h.b16 %v2048
        %v2146 = vunpack.c.l.b16 %v2049
        %v2147 = vunpack.c.h.b16 %v2049
        %v2148 = vunpack.c.l.b16 %v2050
        %v2149 = vunpack.c.h.b16 %v2050
        %v2150 = vunpack.c.l.b16 %v2051
        %v2151 = vunpack.c.h.b16 %v2051
        %v2152 = vunpack.c.l.b16 %v2052
        %v2153 = vunpack.c.h.b16 %v2052
        %v2154 = vunpack.c.l.b16 %v2053
        %v2155 = vunpack.c.h.b16 %v2053
        %v2156 = vunpack.c.l.b16 %v2054
        %v2157 = vunpack.c.h.b16 %v2054
        %v2158 = vunpack.c.l.b16 %v2055
        %v2159 = vunpack.c.h.b16 %v2055
        %v2160 = vunpack.c.l.b16 %v2056
        %v2161 = vunpack.c.h.b16 %v2056
        %v2162 = vunpack.c.l.b16 %v2057
        %v2163 = vunpack.c.h.b16 %v2057
        %v2164 = vunpack.c.l.b16 %v2058
        %v2165 = vunpack.c.h.b16 %v2058
        %v2166 = vunpack.c.l.b16 %v2059
        %v2167 = vunpack.c.h.b16 %v2059
        %v2168 = vunpack.c.l.b16 %v2060
        %v2169 = vunpack.c.h.b16 %v2060
        %v2170 = vunpack.c.l.b16 %v2061
        %v2171 = vunpack.c.h.b16 %v2061
        %v2172 = vunpack.c.l.b16 %v2062
        %v2173 = vunpack.c.h.b16 %v2062
        %v2174 = vunpack.c.l.b16 %v2063
        %v2175 = vunpack.c.h.b16 %v2063
        %v2176 = vunpack.c.l.b16 %v2064
        %v2177 = vunpack.c.h.b16 %v2064
        %v2178 = vunpack.c.l.b16 %v2065
        %v2179 = vunpack.c.h.b16 %v2065
        %v2180 = vunpack.c.l.b16 %v2066
        %v2181 = vunpack.c.h.b16 %v2066
        %v2182 = vunpack.c.l.b16 %v2067
        %v2183 = vunpack.c.h.b16 %v2067
        %v2184 = vunpack.c.l.b16 %v2068
        %v2185 = vunpack.c.h.b16 %v2068
        %v2186 = vpack.c.b16 %v2132, %v2130
        %v2187 = vpack.c.b16 %v2133, %v2131
        %v2188 = vpack.c.b16 %v2136, %v2134
        %v2189 = vpack.c.b16 %v2137, %v2135
        %v2190 = vpack.c.b16 %v2140, %v2138
        %v2191 = vpack.c.b16 %v2141, %v2139
        %v2192 = vpack.c.b16 %v2144, %v2142
        %v2193 = vpack.c.b16 %v2145, %v2143
        %v2194 = vpack.c.b16 %v2148, %v2146
        %v2195 = vpack.c.b16 %v2149, %v2147
        %v2196 = vpack.c.b16 %v2152, %v2150
        %v2197 = vpack.c.b16 %v2153, %v2151
        %v2198 = vpack.c.b16 %v2156, %v2154
        %v2199 = vpack.c.b16 %v2157, %v2155
        %v2200 = vpack.c.b16 %v2160, %v2158
        %v2201 = vpack.c.b16 %v2161, %v2159
        %v2202 = vpack.c.b16 %v2164, %v2162
        %v2203 = vpack.c.b16 %v2165, %v2163
        %v2204 = vpack.c.b16 %v2168, %v2166
        %v2205 = vpack.c.b16 %v2169, %v2167
        %v2206 = vpack.c.b16 %v2172, %v2170
        %v2207 = vpack.c.b16 %v2173, %v2171
        %v2208 = vpack.c.b16 %v2176, %v2174
        %v2209 = vpack.c.b16 %v2177, %v2175
        %v2210 = vpack.c.b16 %v2180, %v2178
        %v2211 = vpack.c.b16 %v2181, %v2179
        %v2212 = vpack.c.b16 %v2184, %v2182
        %v2213 = vpack.c.b16 %v2185, %v2183
        %v2243 = vsel %vm1541, %v2091, 0
        %v2246 = vsel %vm1541, %v2093, 0
        %v2249 = vsel %vm1541, %v2095, 0
        %v2252 = vsel %vm1541, %v2097, 0
        %2254 = vmatpush.bf16.msra.mxu0 %v2200
        %2255 = vmatpush.bf16.msra.mxu0 %v2198
        %2256 = vmatpush.bf16.msra.mxu0 %v2196
        %2257 = vmatpush.bf16.msra.mxu0 %v2194
        %2258 = vmatpush.bf16.msra.mxu0 %v2192
        %2259 = vmatpush.bf16.msra.mxu0 %v2190
        %2260 = vmatpush.bf16.msra.mxu0 %v2188
        %2261 = vmatpush.bf16.msra.mxu0 %v2186
        %2262 = vmatmul.bf16.gmra.mxu0 %v2090
        %v2263 = vpop.f32.mrf.mxu0
        %v2264 = vadd.f32 0.0, %v2263
        %v2265 = vpop.f32.mrf.mxu0
        %v2266 = vadd.f32 0.0, %v2265
        %2267 = vmatmul.bf16.gmra.mxu0 %v2092
        %v2268 = vpop.f32.mrf.mxu0
        %v2269 = vadd.f32 0.0, %v2268
        %v2270 = vpop.f32.mrf.mxu0
        %v2271 = vadd.f32 0.0, %v2270
        %2272 = vmatmul.bf16.gmra.mxu0 %v2094
        %v2273 = vpop.f32.mrf.mxu0
        %v2274 = vadd.f32 0.0, %v2273
        %v2275 = vpop.f32.mrf.mxu0
        %v2276 = vadd.f32 0.0, %v2275
        %2277 = vmatmul.bf16.gmra.mxu0 %v2096
        %v2278 = vpop.f32.mrf.mxu0
        %v2279 = vadd.f32 0.0, %v2278
        %v2280 = vpop.f32.mrf.mxu0
        %2281 = vdwg.mxu0
        %2282 = vmatpush.bf16.msra.mxu0 0
        %2283 = vmatpush.bf16.msra.mxu0 0
        %2284 = vmatpush.bf16.msra.mxu0 %v2212
        %2285 = vmatpush.bf16.msra.mxu0 %v2210
        %2286 = vmatpush.bf16.msra.mxu0 %v2208
        %2287 = vmatpush.bf16.msra.mxu0 %v2206
        %2288 = vmatpush.bf16.msra.mxu0 %v2204
        %2289 = vmatpush.bf16.msra.mxu0 %v2202
        %2290 = vmatmul.bf16.gmra.mxu0 %v2243
        %v2291 = vpop.f32.mrf.mxu0
        %v2292 = vadd.f32 %v2264, %v2291
        %v2293 = vpop.f32.mrf.mxu0
        %v2294 = vadd.f32 %v2266, %v2293
        %2295 = vmatmul.bf16.gmra.mxu0 %v2246
        %v2296 = vpop.f32.mrf.mxu0
        %v2297 = vadd.f32 %v2269, %v2296
        %v2298 = vpop.f32.mrf.mxu0
        %v2299 = vadd.f32 %v2271, %v2298
        %2300 = vmatmul.bf16.gmra.mxu0 %v2249
        %v2301 = vpop.f32.mrf.mxu0
        %v2302 = vadd.f32 %v2274, %v2301
        %v2303 = vpop.f32.mrf.mxu0
        %v2304 = vadd.f32 %v2276, %v2303
        %2305 = vmatmul.bf16.gmra.mxu0 %v2252
        %v2306 = vpop.f32.mrf.mxu0
        %v2307 = vadd.f32 %v2279, %v2306
        %v2308 = vpop.f32.mrf.mxu0
        %2309 = vdwg.mxu0
        %2310 = vmatpush.bf16.msra.mxu0 %v2201
        %2311 = vmatpush.bf16.msra.mxu0 %v2199
        %2312 = vmatpush.bf16.msra.mxu0 %v2197
        %2313 = vmatpush.bf16.msra.mxu0 %v2195
        %2314 = vmatpush.bf16.msra.mxu0 %v2193
        %2315 = vmatpush.bf16.msra.mxu0 %v2191
        %2316 = vmatpush.bf16.msra.mxu0 %v2189
        %2317 = vmatpush.bf16.msra.mxu0 %v2187
        %2318 = vmatmul.bf16.gmra.mxu0 %v2090
        %v2319 = vpop.f32.mrf.mxu0
        %v2320 = vadd.f32 0.0, %v2319
        %v2321 = vpop.f32.mrf.mxu0
        %v2322 = vadd.f32 0.0, %v2321
        %2323 = vmatmul.bf16.gmra.mxu0 %v2092
        %v2324 = vpop.f32.mrf.mxu0
        %v2325 = vadd.f32 0.0, %v2324
        %v2326 = vpop.f32.mrf.mxu0
        %v2327 = vadd.f32 0.0, %v2326
        %2328 = vmatmul.bf16.gmra.mxu0 %v2094
        %v2329 = vpop.f32.mrf.mxu0
        %v2330 = vadd.f32 0.0, %v2329
        %v2331 = vpop.f32.mrf.mxu0
        %v2332 = vadd.f32 0.0, %v2331
        %2333 = vmatmul.bf16.gmra.mxu0 %v2096
        %v2334 = vpop.f32.mrf.mxu0
        %v2335 = vadd.f32 0.0, %v2334
        %v2336 = vpop.f32.mrf.mxu0
        %2337 = vdwg.mxu0
        %2338 = vmatpush.bf16.msra.mxu0 0
        %2339 = vmatpush.bf16.msra.mxu0 0
        %2340 = vmatpush.bf16.msra.mxu0 %v2213
        %2341 = vmatpush.bf16.msra.mxu0 %v2211
        %2342 = vmatpush.bf16.msra.mxu0 %v2209
        %2343 = vmatpush.bf16.msra.mxu0 %v2207
        %2344 = vmatpush.bf16.msra.mxu0 %v2205
        %2345 = vmatpush.bf16.msra.mxu0 %v2203
        %2346 = vmatmul.bf16.gmra.mxu0 %v2243
        %v2347 = vpop.f32.mrf.mxu0
        %v2348 = vadd.f32 %v2320, %v2347
        %v2349 = vpop.f32.mrf.mxu0
        %v2350 = vadd.f32 %v2322, %v2349
        %2351 = vmatmul.bf16.gmra.mxu0 %v2246
        %v2352 = vpop.f32.mrf.mxu0
        %v2353 = vadd.f32 %v2325, %v2352
        %v2354 = vpop.f32.mrf.mxu0
        %v2355 = vadd.f32 %v2327, %v2354
        %2356 = vmatmul.bf16.gmra.mxu0 %v2249
        %v2357 = vpop.f32.mrf.mxu0
        %v2358 = vadd.f32 %v2330, %v2357
        %v2359 = vpop.f32.mrf.mxu0
        %v2360 = vadd.f32 %v2332, %v2359
        %2361 = vmatmul.bf16.gmra.mxu0 %v2252
        %v2362 = vpop.f32.mrf.mxu0
        %v2363 = vadd.f32 %v2335, %v2362
        %v2364 = vpop.f32.mrf.mxu0
        %2365 = vdwg.mxu0
        %v2394 = vunpack.c.l.b16 %v2005
        %v2395 = vunpack.c.h.b16 %v2005
        %v2396 = vunpack.c.l.b16 %v2006
        %v2397 = vunpack.c.h.b16 %v2006
        %v2398 = vunpack.c.l.b16 %v2007
        %v2399 = vunpack.c.h.b16 %v2007
        %v2400 = vunpack.c.l.b16 %v2008
        %v2401 = vunpack.c.h.b16 %v2008
        %v2402 = vunpack.c.l.b16 %v2009
        %v2403 = vunpack.c.h.b16 %v2009
        %v2404 = vunpack.c.l.b16 %v2010
        %v2405 = vunpack.c.h.b16 %v2010
        %v2406 = vunpack.c.l.b16 %v2011
        %v2407 = vunpack.c.h.b16 %v2011
        %v2408 = vunpack.c.l.b16 %v2012
        %v2409 = vunpack.c.h.b16 %v2012
        %v2410 = vunpack.c.l.b16 %v2013
        %v2411 = vunpack.c.h.b16 %v2013
        %v2412 = vunpack.c.l.b16 %v2014
        %v2413 = vunpack.c.h.b16 %v2014
        %v2414 = vunpack.c.l.b16 %v2015
        %v2415 = vunpack.c.h.b16 %v2015
        %v2416 = vunpack.c.l.b16 %v2016
        %v2417 = vunpack.c.h.b16 %v2016
        %v2418 = vunpack.c.l.b16 %v2017
        %v2419 = vunpack.c.h.b16 %v2017
        %v2420 = vunpack.c.l.b16 %v2018
        %v2421 = vunpack.c.h.b16 %v2018
        %v2422 = vunpack.c.l.b16 %v2019
        %v2423 = vunpack.c.h.b16 %v2019
        %v2424 = vunpack.c.l.b16 %v2020
        %v2425 = vunpack.c.h.b16 %v2020
        %v2426 = vunpack.c.l.b16 %v2021
        %v2427 = vunpack.c.h.b16 %v2021
        %v2428 = vunpack.c.l.b16 %v2022
        %v2429 = vunpack.c.h.b16 %v2022
        %v2430 = vunpack.c.l.b16 %v2023
        %v2431 = vunpack.c.h.b16 %v2023
        %v2432 = vunpack.c.l.b16 %v2024
        %v2433 = vunpack.c.h.b16 %v2024
        %v2434 = vunpack.c.l.b16 %v2025
        %v2435 = vunpack.c.h.b16 %v2025
        %v2436 = vunpack.c.l.b16 %v2026
        %v2437 = vunpack.c.h.b16 %v2026
        %v2438 = vunpack.c.l.b16 %v2027
        %v2439 = vunpack.c.h.b16 %v2027
        %v2440 = vunpack.c.l.b16 %v2028
        %v2441 = vunpack.c.h.b16 %v2028
        %v2442 = vunpack.c.l.b16 %v2029
        %v2443 = vunpack.c.h.b16 %v2029
        %v2444 = vunpack.c.l.b16 %v2030
        %v2445 = vunpack.c.h.b16 %v2030
        %v2446 = vunpack.c.l.b16 %v2031
        %v2447 = vunpack.c.h.b16 %v2031
        %v2448 = vunpack.c.l.b16 %v2032
        %v2449 = vunpack.c.h.b16 %v2032
        %v2450 = vpack.c.b16 %v2396, %v2394
        %v2451 = vpack.c.b16 %v2397, %v2395
        %v2452 = vpack.c.b16 %v2400, %v2398
        %v2453 = vpack.c.b16 %v2401, %v2399
        %v2454 = vpack.c.b16 %v2404, %v2402
        %v2455 = vpack.c.b16 %v2405, %v2403
        %v2456 = vpack.c.b16 %v2408, %v2406
        %v2457 = vpack.c.b16 %v2409, %v2407
        %v2458 = vpack.c.b16 %v2412, %v2410
        %v2459 = vpack.c.b16 %v2413, %v2411
        %v2460 = vpack.c.b16 %v2416, %v2414
        %v2461 = vpack.c.b16 %v2417, %v2415
        %v2462 = vpack.c.b16 %v2420, %v2418
        %v2463 = vpack.c.b16 %v2421, %v2419
        %v2464 = vpack.c.b16 %v2424, %v2422
        %v2465 = vpack.c.b16 %v2425, %v2423
        %v2466 = vpack.c.b16 %v2428, %v2426
        %v2467 = vpack.c.b16 %v2429, %v2427
        %v2468 = vpack.c.b16 %v2432, %v2430
        %v2469 = vpack.c.b16 %v2433, %v2431
        %v2470 = vpack.c.b16 %v2436, %v2434
        %v2471 = vpack.c.b16 %v2437, %v2435
        %v2472 = vpack.c.b16 %v2440, %v2438
        %v2473 = vpack.c.b16 %v2441, %v2439
        %v2474 = vpack.c.b16 %v2444, %v2442
        %v2475 = vpack.c.b16 %v2445, %v2443
        %v2476 = vpack.c.b16 %v2448, %v2446
        %v2477 = vpack.c.b16 %v2449, %v2447
        %2506 = vmatpush.bf16.msra.mxu0 %v2464
        %2507 = vmatpush.bf16.msra.mxu0 %v2462
        %2508 = vmatpush.bf16.msra.mxu0 %v2460
        %2509 = vmatpush.bf16.msra.mxu0 %v2458
        %2510 = vmatpush.bf16.msra.mxu0 %v2456
        %2511 = vmatpush.bf16.msra.mxu0 %v2454
        %2512 = vmatpush.bf16.msra.mxu0 %v2452
        %2513 = vmatpush.bf16.msra.mxu0 %v2450
        %2514 = vmatmul.bf16.gmra.mxu0 %v1389
        %v2515 = vpop.f32.mrf.mxu0
        %v2516 = vadd.f32 %v2292, %v2515
        %v2517 = vpop.f32.mrf.mxu0
        %v2518 = vadd.f32 %v2294, %v2517
        %2519 = vmatmul.bf16.gmra.mxu0 %v1391
        %v2520 = vpop.f32.mrf.mxu0
        %v2521 = vadd.f32 %v2297, %v2520
        %v2522 = vpop.f32.mrf.mxu0
        %v2523 = vadd.f32 %v2299, %v2522
        %2524 = vmatmul.bf16.gmra.mxu0 %v1393
        %v2525 = vpop.f32.mrf.mxu0
        %v2526 = vadd.f32 %v2302, %v2525
        %v2527 = vpop.f32.mrf.mxu0
        %v2528 = vadd.f32 %v2304, %v2527
        %2529 = vmatmul.bf16.gmra.mxu0 %v1395
        %v2530 = vpop.f32.mrf.mxu0
        %v2531 = vadd.f32 %v2307, %v2530
        %v2532 = vpop.f32.mrf.mxu0
        %2533 = vdwg.mxu0
        %2534 = vmatpush.bf16.msra.mxu0 0
        %2535 = vmatpush.bf16.msra.mxu0 0
        %2536 = vmatpush.bf16.msra.mxu0 %v2476
        %2537 = vmatpush.bf16.msra.mxu0 %v2474
        %2538 = vmatpush.bf16.msra.mxu0 %v2472
        %2539 = vmatpush.bf16.msra.mxu0 %v2470
        %2540 = vmatpush.bf16.msra.mxu0 %v2468
        %2541 = vmatpush.bf16.msra.mxu0 %v2466
        %2542 = vmatmul.bf16.gmra.mxu0 %v1543
        %v2543 = vpop.f32.mrf.mxu0
        %v2544 = vadd.f32 %v2516, %v2543
        %v2545 = vpop.f32.mrf.mxu0
        %v2546 = vadd.f32 %v2518, %v2545
        %2547 = vmatmul.bf16.gmra.mxu0 %v1546
        %v2548 = vpop.f32.mrf.mxu0
        %v2549 = vadd.f32 %v2521, %v2548
        %v2550 = vpop.f32.mrf.mxu0
        %v2551 = vadd.f32 %v2523, %v2550
        %2552 = vmatmul.bf16.gmra.mxu0 %v1549
        %v2553 = vpop.f32.mrf.mxu0
        %v2554 = vadd.f32 %v2526, %v2553
        %v2555 = vpop.f32.mrf.mxu0
        %v2556 = vadd.f32 %v2528, %v2555
        %2557 = vmatmul.bf16.gmra.mxu0 %v1552
        %v2558 = vpop.f32.mrf.mxu0
        %v2559 = vadd.f32 %v2531, %v2558
        %v2560 = vpop.f32.mrf.mxu0
        %2561 = vdwg.mxu0
        %2562 = vmatpush.bf16.msra.mxu0 %v2465
        %2563 = vmatpush.bf16.msra.mxu0 %v2463
        %2564 = vmatpush.bf16.msra.mxu0 %v2461
        %2565 = vmatpush.bf16.msra.mxu0 %v2459
        %2566 = vmatpush.bf16.msra.mxu0 %v2457
        %2567 = vmatpush.bf16.msra.mxu0 %v2455
        %2568 = vmatpush.bf16.msra.mxu0 %v2453
        %2569 = vmatpush.bf16.msra.mxu0 %v2451
        %2570 = vmatmul.bf16.gmra.mxu0 %v1389
        %v2571 = vpop.f32.mrf.mxu0
        %v2572 = vadd.f32 %v2348, %v2571
        %v2573 = vpop.f32.mrf.mxu0
        %v2574 = vadd.f32 %v2350, %v2573
        %2575 = vmatmul.bf16.gmra.mxu0 %v1391
        %v2576 = vpop.f32.mrf.mxu0
        %v2577 = vadd.f32 %v2353, %v2576
        %v2578 = vpop.f32.mrf.mxu0
        %v2579 = vadd.f32 %v2355, %v2578
        %2580 = vmatmul.bf16.gmra.mxu0 %v1393
        %v2581 = vpop.f32.mrf.mxu0
        %v2582 = vadd.f32 %v2358, %v2581
        %v2583 = vpop.f32.mrf.mxu0
        %v2584 = vadd.f32 %v2360, %v2583
        %2585 = vmatmul.bf16.gmra.mxu0 %v1395
        %v2586 = vpop.f32.mrf.mxu0
        %v2587 = vadd.f32 %v2363, %v2586
        %v2588 = vpop.f32.mrf.mxu0
        %2589 = vdwg.mxu0
        %2590 = vmatpush.bf16.msra.mxu0 0
        %2591 = vmatpush.bf16.msra.mxu0 0
        %2592 = vmatpush.bf16.msra.mxu0 %v2477
        %2593 = vmatpush.bf16.msra.mxu0 %v2475
        %2594 = vmatpush.bf16.msra.mxu0 %v2473
        %2595 = vmatpush.bf16.msra.mxu0 %v2471
        %2596 = vmatpush.bf16.msra.mxu0 %v2469
        %2597 = vmatpush.bf16.msra.mxu0 %v2467
        %2598 = vmatmul.bf16.gmra.mxu0 %v1543
        %v2599 = vpop.f32.mrf.mxu0
        %v2600 = vadd.f32 %v2572, %v2599
        %v2601 = vpop.f32.mrf.mxu0
        %v2602 = vadd.f32 %v2574, %v2601
        %2603 = vmatmul.bf16.gmra.mxu0 %v1546
        %v2604 = vpop.f32.mrf.mxu0
        %v2605 = vadd.f32 %v2577, %v2604
        %v2606 = vpop.f32.mrf.mxu0
        %v2607 = vadd.f32 %v2579, %v2606
        %2608 = vmatmul.bf16.gmra.mxu0 %v1549
        %v2609 = vpop.f32.mrf.mxu0
        %v2610 = vadd.f32 %v2582, %v2609
        %v2611 = vpop.f32.mrf.mxu0
        %v2612 = vadd.f32 %v2584, %v2611
        %2613 = vmatmul.bf16.gmra.mxu0 %v1552
        %v2614 = vpop.f32.mrf.mxu0
        %v2615 = vadd.f32 %v2587, %v2614
        %v2616 = vpop.f32.mrf.mxu0
        %2617 = vdwg.mxu0
        %v2618 = vadd.f32 %v2544, %v1964
        %v2619 = vadd.f32 %v2600, %v1965
        %v2620 = vadd.f32 %v2546, %v1964
        %v2621 = vadd.f32 %v2602, %v1965
        %v2622 = vadd.f32 %v2549, %v1964
        %v2623 = vadd.f32 %v2605, %v1965
        %v2624 = vadd.f32 %v2551, %v1964
        %v2625 = vadd.f32 %v2607, %v1965
        %v2626 = vadd.f32 %v2554, %v1964
        %v2627 = vadd.f32 %v2610, %v1965
        %v2628 = vadd.f32 %v2556, %v1964
        %v2629 = vadd.f32 %v2612, %v1965
        %v2630 = vadd.f32 %v2559, %v1964
        %v2631 = vadd.f32 %v2615, %v1965
        %v2632 = vmax.f32 %v2618, 0.0
        %v2633 = vmax.f32 %v2619, 0.0
        %v2634 = vmax.f32 %v2620, 0.0
        %v2635 = vmax.f32 %v2621, 0.0
        %v2636 = vmax.f32 %v2622, 0.0
        %v2637 = vmax.f32 %v2623, 0.0
        %v2638 = vmax.f32 %v2624, 0.0
        %v2639 = vmax.f32 %v2625, 0.0
        %v2640 = vmax.f32 %v2626, 0.0
        %v2641 = vmax.f32 %v2627, 0.0
        %v2642 = vmax.f32 %v2628, 0.0
        %v2643 = vmax.f32 %v2629, 0.0
        %v2644 = vmax.f32 %v2630, 0.0
        %v2645 = vmax.f32 %v2631, 0.0
        %v2646 = vpack.c.bf16 %v2634, %v2632
        %v2647 = vpack.c.bf16 %v2635, %v2633
        %v2648 = vpack.c.bf16 %v2638, %v2636
        %v2649 = vpack.c.bf16 %v2639, %v2637
        %v2650 = vpack.c.bf16 %v2642, %v2640
        %v2651 = vpack.c.bf16 %v2643, %v2641
        %v2652 = vpack.c.bf16 %v2644, %v2644
        %v2653 = vpack.c.bf16 %v2645, %v2645
        %v2654 = vld [vmem:[%s7] sm:$0xf]
        %v2655 = vld [vmem:[%s7 + $0x4] sm:$0xf]
        %v2656 = vld [vmem:[%s7 + $0x8] sm:$0xf]
        %v2657 = vld [vmem:[%s7 + $0xc] sm:$0xf]
        %v2658 = vld [vmem:[%s7 + $0x10] sm:$0xf]
        %v2659 = vld [vmem:[%s7 + $0x14] sm:$0xf]
        %v2660 = vld [vmem:[%s7 + $0x18] sm:$0xf]
        %v2661 = vld [vmem:[%s7 + $0x1c] sm:$0xf]
        %v2662 = vld [vmem:[%s7 + $0x20] sm:$0xf]
        %v2663 = vld [vmem:[%s7 + $0x24] sm:$0xf]
        %v2664 = vld [vmem:[%s7 + $0x28] sm:$0xf]
        %v2665 = vld [vmem:[%s7 + $0x2c] sm:$0xf]
        %v2666 = vld [vmem:[%s7 + $0x30] sm:$0xf]
        %v2667 = vld [vmem:[%s7 + $0x34] sm:$0xf]
        %s2668 = scalar_lea.vmem %s7, 56
        %v2669 = vld [vmem:[%s2668] sm:$0xf]
        %v2670 = vld [vmem:[%s2668 + $0x4] sm:$0xf]
        %v2671 = vld [vmem:[%s2668 + $0x8] sm:$0xf]
        %v2672 = vld [vmem:[%s2668 + $0xc] sm:$0xf]
        %v2673 = vld [vmem:[%s2668 + $0x10] sm:$0xf]
        %v2674 = vld [vmem:[%s2668 + $0x14] sm:$0xf]
        %v2675 = vld [vmem:[%s2668 + $0x18] sm:$0xf]
        %v2676 = vld [vmem:[%s2668 + $0x1c] sm:$0xf]
        %v2677 = vld [vmem:[%s2668 + $0x20] sm:$0xf]
        %v2678 = vld [vmem:[%s2668 + $0x24] sm:$0xf]
        %v2679 = vld [vmem:[%s2668 + $0x28] sm:$0xf]
        %v2680 = vld [vmem:[%s2668 + $0x2c] sm:$0xf]
        %v2681 = vld [vmem:[%s2668 + $0x30] sm:$0xf]
        %v2682 = vld [vmem:[%s2668 + $0x34] sm:$0xf]
        %v2697 = vunpack.c.l.b16 %v2669
        %v2698 = vunpack.c.l.b16 %v2670
        %v2699 = vunpack.c.l.b16 %v2671
        %v2700 = vunpack.c.l.b16 %v2672
        %v2701 = vunpack.c.l.b16 %v2673
        %v2702 = vunpack.c.l.b16 %v2674
        %v2703 = vunpack.c.l.b16 %v2675
        %v2704 = vunpack.c.l.b16 %v2676
        %v2705 = vunpack.c.l.b16 %v2677
        %v2706 = vunpack.c.l.b16 %v2678
        %v2707 = vunpack.c.l.b16 %v2679
        %v2708 = vunpack.c.l.b16 %v2680
        %v2709 = vunpack.c.l.b16 %v2681
        %v2710 = vunpack.c.l.b16 %v2682
        %v2711 = vpack.c.b16 %v2698, %v2697
        %v2712 = vpack.c.b16 %v2700, %v2699
        %v2713 = vpack.c.b16 %v2702, %v2701
        %v2714 = vpack.c.b16 %v2704, %v2703
        %v2715 = vpack.c.b16 %v2706, %v2705
        %v2716 = vpack.c.b16 %v2708, %v2707
        %v2717 = vpack.c.b16 %v2710, %v2709
        %vm2718 = vcmask 457728
        %v2720 = vsel %vm2718, %v2711, 0
        %v2723 = vsel %vm2718, %v2712, 0
        %v2726 = vsel %vm2718, %v2713, 0
        %v2729 = vsel %vm2718, %v2714, 0
        %v2732 = vsel %vm2718, %v2715, 0
        %v2735 = vsel %vm2718, %v2716, 0
        %v2738 = vsel %vm2718, %v2717, 0
        %vm2740 = vcmask 1043456
        %v2742 = vsel %vm2740, %v2652, 0
        %v2745 = vsel %vm2740, %v2653, 0
        %2747 = vmatpush.bf16.msra.mxu0 0
        %2748 = vmatpush.bf16.msra.mxu0 0
        %2749 = vmatpush.bf16.msra.mxu0 0
        %2750 = vmatpush.bf16.msra.mxu0 0
        %2751 = vmatpush.bf16.msra.mxu0 %v2742
        %2752 = vmatpush.bf16.msra.mxu0 %v2650
        %2753 = vmatpush.bf16.msra.mxu0 %v2648
        %2754 = vmatpush.bf16.msra.mxu0 %v2646
        %2755 = vmatmul.bf16.gmra.mxu0 %v2720
        %v2756 = vpop.f32.mrf.mxu0
        %v2757 = vadd.f32 0.0, %v2756
        %v2758 = vpop.f32.mrf.mxu0
        %v2759 = vadd.f32 0.0, %v2758
        %2760 = vmatmul.bf16.gmra.mxu0 %v2723
        %v2761 = vpop.f32.mrf.mxu0
        %v2762 = vadd.f32 0.0, %v2761
        %v2763 = vpop.f32.mrf.mxu0
        %v2764 = vadd.f32 0.0, %v2763
        %2765 = vmatmul.bf16.gmra.mxu0 %v2726
        %v2766 = vpop.f32.mrf.mxu0
        %v2767 = vadd.f32 0.0, %v2766
        %v2768 = vpop.f32.mrf.mxu0
        %v2769 = vadd.f32 0.0, %v2768
        %2770 = vmatmul.bf16.gmra.mxu0 %v2729
        %v2771 = vpop.f32.mrf.mxu0
        %v2772 = vadd.f32 0.0, %v2771
        %v2773 = vpop.f32.mrf.mxu0
        %v2774 = vadd.f32 0.0, %v2773
        %2775 = vmatmul.bf16.gmra.mxu0 %v2732
        %v2776 = vpop.f32.mrf.mxu0
        %v2777 = vadd.f32 0.0, %v2776
        %v2778 = vpop.f32.mrf.mxu0
        %v2779 = vadd.f32 0.0, %v2778
        %2780 = vmatmul.bf16.gmra.mxu0 %v2735
        %v2781 = vpop.f32.mrf.mxu0
        %v2782 = vadd.f32 0.0, %v2781
        %v2783 = vpop.f32.mrf.mxu0
        %v2784 = vadd.f32 0.0, %v2783
        %2785 = vmatmul.bf16.gmra.mxu0 %v2738
        %v2786 = vpop.f32.mrf.mxu0
        %v2787 = vadd.f32 0.0, %v2786
        %v2788 = vpop.f32.mrf.mxu0
        %v2789 = vadd.f32 0.0, %v2788
        %2790 = vdwg.mxu0
        %2791 = vmatpush.bf16.msra.mxu0 0
        %2792 = vmatpush.bf16.msra.mxu0 0
        %2793 = vmatpush.bf16.msra.mxu0 0
        %2794 = vmatpush.bf16.msra.mxu0 0
        %2795 = vmatpush.bf16.msra.mxu0 %v2745
        %2796 = vmatpush.bf16.msra.mxu0 %v2651
        %2797 = vmatpush.bf16.msra.mxu0 %v2649
        %2798 = vmatpush.bf16.msra.mxu0 %v2647
        %2799 = vmatmul.bf16.gmra.mxu0 %v2720
        %v2800 = vpop.f32.mrf.mxu0
        %v2801 = vadd.f32 0.0, %v2800
        %v2802 = vpop.f32.mrf.mxu0
        %v2803 = vadd.f32 0.0, %v2802
        %2804 = vmatmul.bf16.gmra.mxu0 %v2723
        %v2805 = vpop.f32.mrf.mxu0
        %v2806 = vadd.f32 0.0, %v2805
        %v2807 = vpop.f32.mrf.mxu0
        %v2808 = vadd.f32 0.0, %v2807
        %2809 = vmatmul.bf16.gmra.mxu0 %v2726
        %v2810 = vpop.f32.mrf.mxu0
        %v2811 = vadd.f32 0.0, %v2810
        %v2812 = vpop.f32.mrf.mxu0
        %v2813 = vadd.f32 0.0, %v2812
        %2814 = vmatmul.bf16.gmra.mxu0 %v2729
        %v2815 = vpop.f32.mrf.mxu0
        %v2816 = vadd.f32 0.0, %v2815
        %v2817 = vpop.f32.mrf.mxu0
        %v2818 = vadd.f32 0.0, %v2817
        %2819 = vmatmul.bf16.gmra.mxu0 %v2732
        %v2820 = vpop.f32.mrf.mxu0
        %v2821 = vadd.f32 0.0, %v2820
        %v2822 = vpop.f32.mrf.mxu0
        %v2823 = vadd.f32 0.0, %v2822
        %2824 = vmatmul.bf16.gmra.mxu0 %v2735
        %v2825 = vpop.f32.mrf.mxu0
        %v2826 = vadd.f32 0.0, %v2825
        %v2827 = vpop.f32.mrf.mxu0
        %v2828 = vadd.f32 0.0, %v2827
        %2829 = vmatmul.bf16.gmra.mxu0 %v2738
        %v2830 = vpop.f32.mrf.mxu0
        %v2831 = vadd.f32 0.0, %v2830
        %v2832 = vpop.f32.mrf.mxu0
        %v2833 = vadd.f32 0.0, %v2832
        %2834 = vdwg.mxu0
        %v2849 = vunpack.c.l.b16 %v2654
        %v2850 = vunpack.c.l.b16 %v2655
        %v2851 = vunpack.c.l.b16 %v2656
        %v2852 = vunpack.c.l.b16 %v2657
        %v2853 = vunpack.c.l.b16 %v2658
        %v2854 = vunpack.c.l.b16 %v2659
        %v2855 = vunpack.c.l.b16 %v2660
        %v2856 = vunpack.c.l.b16 %v2661
        %v2857 = vunpack.c.l.b16 %v2662
        %v2858 = vunpack.c.l.b16 %v2663
        %v2859 = vunpack.c.l.b16 %v2664
        %v2860 = vunpack.c.l.b16 %v2665
        %v2861 = vunpack.c.l.b16 %v2666
        %v2862 = vunpack.c.l.b16 %v2667
        %v2863 = vpack.c.b16 %v2850, %v2849
        %v2864 = vpack.c.b16 %v2852, %v2851
        %v2865 = vpack.c.b16 %v2854, %v2853
        %v2866 = vpack.c.b16 %v2856, %v2855
        %v2867 = vpack.c.b16 %v2858, %v2857
        %v2868 = vpack.c.b16 %v2860, %v2859
        %v2869 = vpack.c.b16 %v2862, %v2861
        %v2871 = vsel %vm2718, %v2863, 0
        %v2874 = vsel %vm2718, %v2864, 0
        %v2877 = vsel %vm2718, %v2865, 0
        %v2880 = vsel %vm2718, %v2866, 0
        %v2883 = vsel %vm2718, %v2867, 0
        %v2886 = vsel %vm2718, %v2868, 0
        %v2889 = vsel %vm2718, %v2869, 0
        %v2892 = vsel %vm2740, %v2002, 0
        %v2895 = vsel %vm2740, %v2003, 0
        %2897 = vmatpush.bf16.msra.mxu0 0
        %2898 = vmatpush.bf16.msra.mxu0 0
        %2899 = vmatpush.bf16.msra.mxu0 0
        %2900 = vmatpush.bf16.msra.mxu0 0
        %2901 = vmatpush.bf16.msra.mxu0 %v2892
        %2902 = vmatpush.bf16.msra.mxu0 %v2000
        %2903 = vmatpush.bf16.msra.mxu0 %v1998
        %2904 = vmatpush.bf16.msra.mxu0 %v1996
        %2905 = vmatmul.bf16.gmra.mxu0 %v2871
        %v2906 = vpop.f32.mrf.mxu0
        %v2907 = vadd.f32 %v2757, %v2906
        %v2908 = vpop.f32.mrf.mxu0
        %v2909 = vadd.f32 %v2759, %v2908
        %2910 = vmatmul.bf16.gmra.mxu0 %v2874
        %v2911 = vpop.f32.mrf.mxu0
        %v2912 = vadd.f32 %v2762, %v2911
        %v2913 = vpop.f32.mrf.mxu0
        %v2914 = vadd.f32 %v2764, %v2913
        %2915 = vmatmul.bf16.gmra.mxu0 %v2877
        %v2916 = vpop.f32.mrf.mxu0
        %v2917 = vadd.f32 %v2767, %v2916
        %v2918 = vpop.f32.mrf.mxu0
        %v2919 = vadd.f32 %v2769, %v2918
        %2920 = vmatmul.bf16.gmra.mxu0 %v2880
        %v2921 = vpop.f32.mrf.mxu0
        %v2922 = vadd.f32 %v2772, %v2921
        %v2923 = vpop.f32.mrf.mxu0
        %v2924 = vadd.f32 %v2774, %v2923
        %2925 = vmatmul.bf16.gmra.mxu0 %v2883
        %v2926 = vpop.f32.mrf.mxu0
        %v2927 = vadd.f32 %v2777, %v2926
        %v2928 = vpop.f32.mrf.mxu0
        %v2929 = vadd.f32 %v2779, %v2928
        %2930 = vmatmul.bf16.gmra.mxu0 %v2886
        %v2931 = vpop.f32.mrf.mxu0
        %v2932 = vadd.f32 %v2782, %v2931
        %v2933 = vpop.f32.mrf.mxu0
        %v2934 = vadd.f32 %v2784, %v2933
        %2935 = vmatmul.bf16.gmra.mxu0 %v2889
        %v2936 = vpop.f32.mrf.mxu0
        %v2937 = vadd.f32 %v2787, %v2936
        %v2938 = vpop.f32.mrf.mxu0
        %v2939 = vadd.f32 %v2789, %v2938
        %2940 = vdwg.mxu0
        %2941 = vmatpush.bf16.msra.mxu0 0
        %2942 = vmatpush.bf16.msra.mxu0 0
        %2943 = vmatpush.bf16.msra.mxu0 0
        %2944 = vmatpush.bf16.msra.mxu0 0
        %2945 = vmatpush.bf16.msra.mxu0 %v2895
        %2946 = vmatpush.bf16.msra.mxu0 %v2001
        %2947 = vmatpush.bf16.msra.mxu0 %v1999
        %2948 = vmatpush.bf16.msra.mxu0 %v1997
        %2949 = vmatmul.bf16.gmra.mxu0 %v2871
        %v2950 = vpop.f32.mrf.mxu0
        %v2951 = vadd.f32 %v2801, %v2950
        %v2952 = vpop.f32.mrf.mxu0
        %v2953 = vadd.f32 %v2803, %v2952
        %2954 = vmatmul.bf16.gmra.mxu0 %v2874
        %v2955 = vpop.f32.mrf.mxu0
        %v2956 = vadd.f32 %v2806, %v2955
        %v2957 = vpop.f32.mrf.mxu0
        %v2958 = vadd.f32 %v2808, %v2957
        %2959 = vmatmul.bf16.gmra.mxu0 %v2877
        %v2960 = vpop.f32.mrf.mxu0
        %v2961 = vadd.f32 %v2811, %v2960
        %v2962 = vpop.f32.mrf.mxu0
        %v2963 = vadd.f32 %v2813, %v2962
        %2964 = vmatmul.bf16.gmra.mxu0 %v2880
        %v2965 = vpop.f32.mrf.mxu0
        %v2966 = vadd.f32 %v2816, %v2965
        %v2967 = vpop.f32.mrf.mxu0
        %v2968 = vadd.f32 %v2818, %v2967
        %2969 = vmatmul.bf16.gmra.mxu0 %v2883
        %v2970 = vpop.f32.mrf.mxu0
        %v2971 = vadd.f32 %v2821, %v2970
        %v2972 = vpop.f32.mrf.mxu0
        %v2973 = vadd.f32 %v2823, %v2972
        %2974 = vmatmul.bf16.gmra.mxu0 %v2886
        %v2975 = vpop.f32.mrf.mxu0
        %v2976 = vadd.f32 %v2826, %v2975
        %v2977 = vpop.f32.mrf.mxu0
        %v2978 = vadd.f32 %v2828, %v2977
        %2979 = vmatmul.bf16.gmra.mxu0 %v2889
        %v2980 = vpop.f32.mrf.mxu0
        %v2981 = vadd.f32 %v2831, %v2980
        %v2982 = vpop.f32.mrf.mxu0
        %v2983 = vadd.f32 %v2833, %v2982
        %2984 = vdwg.mxu0
        %v2985 = vpack.c.bf16 %v2909, %v2907
        %v2986 = vpack.c.bf16 %v2953, %v2951
        %v2987 = vpack.c.bf16 %v2914, %v2912
        %v2988 = vpack.c.bf16 %v2958, %v2956
        %v2989 = vpack.c.bf16 %v2919, %v2917
        %v2990 = vpack.c.bf16 %v2963, %v2961
        %v2991 = vpack.c.bf16 %v2924, %v2922
        %v2992 = vpack.c.bf16 %v2968, %v2966
        %v2993 = vpack.c.bf16 %v2929, %v2927
        %v2994 = vpack.c.bf16 %v2973, %v2971
        %v2995 = vpack.c.bf16 %v2934, %v2932
        %v2996 = vpack.c.bf16 %v2978, %v2976
        %v2997 = vpack.c.bf16 %v2939, %v2937
        %v2998 = vpack.c.bf16 %v2983, %v2981
        %v2999 = vld [vmem:[%s5] sm:$0xf]
        %v3000 = vld [vmem:[%s5 + $0x4] sm:$0xf]
        %v3001 = vld [vmem:[%s5 + $0x8] sm:$0xf]
        %v3002 = vld [vmem:[%s5 + $0xc] sm:$0xf]
        %v3003 = vld [vmem:[%s5 + $0x10] sm:$0xf]
        %v3004 = vld [vmem:[%s5 + $0x14] sm:$0xf]
        %v3005 = vld [vmem:[%s5 + $0x18] sm:$0xf]
        %v3006 = vld [vmem:[%s5 + $0x1c] sm:$0xf]
        %v3007 = vld [vmem:[%s5 + $0x20] sm:$0xf]
        %v3008 = vld [vmem:[%s5 + $0x24] sm:$0xf]
        %v3009 = vld [vmem:[%s5 + $0x28] sm:$0xf]
        %v3010 = vld [vmem:[%s5 + $0x2c] sm:$0xf]
        %v3011 = vld [vmem:[%s5 + $0x30] sm:$0xf]
        %v3012 = vld [vmem:[%s5 + $0x34] sm:$0xf]
        %v3013 = vld [vmem:[%s5 + $0x38] sm:$0xf]
        %v3014 = vld [vmem:[%s5 + $0x3c] sm:$0xf]
        %v3015 = vld [vmem:[%s5 + $0x40] sm:$0xf]
        %v3016 = vld [vmem:[%s5 + $0x44] sm:$0xf]
        %v3017 = vld [vmem:[%s5 + $0x48] sm:$0xf]
        %v3018 = vld [vmem:[%s5 + $0x4c] sm:$0xf]
        %v3019 = vld [vmem:[%s5 + $0x50] sm:$0xf]
        %v3020 = vld [vmem:[%s5 + $0x54] sm:$0xf]
        %v3021 = vld [vmem:[%s5 + $0x58] sm:$0xf]
        %v3022 = vld [vmem:[%s5 + $0x5c] sm:$0xf]
        %v3023 = vld [vmem:[%s5 + $0x60] sm:$0xf]
        %v3024 = vld [vmem:[%s5 + $0x64] sm:$0xf]
        %v3025 = vld [vmem:[%s5 + $0x68] sm:$0xf]
        %v3026 = vld [vmem:[%s5 + $0x6c] sm:$0xf]
        %s3027 = scalar_lea.vmem %s7, 112
        %v3028 = vld [vmem:[%s3027] sm:$0xf]
        %v3029 = vld [vmem:[%s3027 + $0x4] sm:$0xf]
        %v3030 = vld [vmem:[%s3027 + $0x8] sm:$0xf]
        %v3031 = vld [vmem:[%s3027 + $0xc] sm:$0xf]
        %v3032 = vld [vmem:[%s3027 + $0x10] sm:$0xf]
        %v3033 = vld [vmem:[%s3027 + $0x14] sm:$0xf]
        %v3034 = vld [vmem:[%s3027 + $0x18] sm:$0xf]
        %v3035 = vld [vmem:[%s3027 + $0x1c] sm:$0xf]
        %v3036 = vld [vmem:[%s3027 + $0x20] sm:$0xf]
        %v3037 = vld [vmem:[%s3027 + $0x24] sm:$0xf]
        %v3038 = vld [vmem:[%s3027 + $0x28] sm:$0xf]
        %v3039 = vld [vmem:[%s3027 + $0x2c] sm:$0xf]
        %v3040 = vld [vmem:[%s3027 + $0x30] sm:$0xf]
        %v3041 = vld [vmem:[%s3027 + $0x34] sm:$0xf]
        %s3042 = scalar_lea.vmem %s7, 168
        %v3043 = vld [vmem:[%s3042] sm:$0xf]
        %v3044 = vld [vmem:[%s3042 + $0x4] sm:$0xf]
        %v3045 = vld [vmem:[%s3042 + $0x8] sm:$0xf]
        %v3046 = vld [vmem:[%s3042 + $0xc] sm:$0xf]
        %v3047 = vld [vmem:[%s3042 + $0x10] sm:$0xf]
        %v3048 = vld [vmem:[%s3042 + $0x14] sm:$0xf]
        %v3049 = vld [vmem:[%s3042 + $0x18] sm:$0xf]
        %v3050 = vld [vmem:[%s3042 + $0x1c] sm:$0xf]
        %v3051 = vld [vmem:[%s3042 + $0x20] sm:$0xf]
        %v3052 = vld [vmem:[%s3042 + $0x24] sm:$0xf]
        %v3053 = vld [vmem:[%s3042 + $0x28] sm:$0xf]
        %v3054 = vld [vmem:[%s3042 + $0x2c] sm:$0xf]
        %v3055 = vld [vmem:[%s3042 + $0x30] sm:$0xf]
        %v3056 = vld [vmem:[%s3042 + $0x34] sm:$0xf]
        %v3071 = vunpack.c.l.b16 %v3043
        %v3072 = vunpack.c.l.b16 %v3044
        %v3073 = vunpack.c.l.b16 %v3045
        %v3074 = vunpack.c.l.b16 %v3046
        %v3075 = vunpack.c.l.b16 %v3047
        %v3076 = vunpack.c.l.b16 %v3048
        %v3077 = vunpack.c.l.b16 %v3049
        %v3078 = vunpack.c.l.b16 %v3050
        %v3079 = vunpack.c.l.b16 %v3051
        %v3080 = vunpack.c.l.b16 %v3052
        %v3081 = vunpack.c.l.b16 %v3053
        %v3082 = vunpack.c.l.b16 %v3054
        %v3083 = vunpack.c.l.b16 %v3055
        %v3084 = vunpack.c.l.b16 %v3056
        %v3085 = vpack.c.b16 %v3072, %v3071
        %v3086 = vpack.c.b16 %v3074, %v3073
        %v3087 = vpack.c.b16 %v3076, %v3075
        %v3088 = vpack.c.b16 %v3078, %v3077
        %v3089 = vpack.c.b16 %v3080, %v3079
        %v3090 = vpack.c.b16 %v3082, %v3081
        %v3091 = vpack.c.b16 %v3084, %v3083
        %v3093 = vsel %vm2718, %v3085, 0
        %v3096 = vsel %vm2718, %v3086, 0
        %v3099 = vsel %vm2718, %v3087, 0
        %v3102 = vsel %vm2718, %v3088, 0
        %v3105 = vsel %vm2718, %v3089, 0
        %v3108 = vsel %vm2718, %v3090, 0
        %v3111 = vsel %vm2718, %v3091, 0
        %3113 = vmatpush.bf16.msra.mxu0 0
        %3114 = vmatpush.bf16.msra.mxu0 0
        %3115 = vmatpush.bf16.msra.mxu0 0
        %3116 = vmatpush.bf16.msra.mxu0 0
        %3117 = vmatpush.bf16.msra.mxu0 %v2742
        %3118 = vmatpush.bf16.msra.mxu0 %v2650
        %3119 = vmatpush.bf16.msra.mxu0 %v2648
        %3120 = vmatpush.bf16.msra.mxu0 %v2646
        %3121 = vmatmul.bf16.gmra.mxu0 %v3093
        %v3122 = vpop.f32.mrf.mxu0
        %v3123 = vadd.f32 0.0, %v3122
        %v3124 = vpop.f32.mrf.mxu0
        %v3125 = vadd.f32 0.0, %v3124
        %3126 = vmatmul.bf16.gmra.mxu0 %v3096
        %v3127 = vpop.f32.mrf.mxu0
        %v3128 = vadd.f32 0.0, %v3127
        %v3129 = vpop.f32.mrf.mxu0
        %v3130 = vadd.f32 0.0, %v3129
        %3131 = vmatmul.bf16.gmra.mxu0 %v3099
        %v3132 = vpop.f32.mrf.mxu0
        %v3133 = vadd.f32 0.0, %v3132
        %v3134 = vpop.f32.mrf.mxu0
        %v3135 = vadd.f32 0.0, %v3134
        %3136 = vmatmul.bf16.gmra.mxu0 %v3102
        %v3137 = vpop.f32.mrf.mxu0
        %v3138 = vadd.f32 0.0, %v3137
        %v3139 = vpop.f32.mrf.mxu0
        %v3140 = vadd.f32 0.0, %v3139
        %3141 = vmatmul.bf16.gmra.mxu0 %v3105
        %v3142 = vpop.f32.mrf.mxu0
        %v3143 = vadd.f32 0.0, %v3142
        %v3144 = vpop.f32.mrf.mxu0
        %v3145 = vadd.f32 0.0, %v3144
        %3146 = vmatmul.bf16.gmra.mxu0 %v3108
        %v3147 = vpop.f32.mrf.mxu0
        %v3148 = vadd.f32 0.0, %v3147
        %v3149 = vpop.f32.mrf.mxu0
        %v3150 = vadd.f32 0.0, %v3149
        %3151 = vmatmul.bf16.gmra.mxu0 %v3111
        %v3152 = vpop.f32.mrf.mxu0
        %v3153 = vadd.f32 0.0, %v3152
        %v3154 = vpop.f32.mrf.mxu0
        %v3155 = vadd.f32 0.0, %v3154
        %3156 = vdwg.mxu0
        %3157 = vmatpush.bf16.msra.mxu0 0
        %3158 = vmatpush.bf16.msra.mxu0 0
        %3159 = vmatpush.bf16.msra.mxu0 0
        %3160 = vmatpush.bf16.msra.mxu0 0
        %3161 = vmatpush.bf16.msra.mxu0 %v2745
        %3162 = vmatpush.bf16.msra.mxu0 %v2651
        %3163 = vmatpush.bf16.msra.mxu0 %v2649
        %3164 = vmatpush.bf16.msra.mxu0 %v2647
        %3165 = vmatmul.bf16.gmra.mxu0 %v3093
        %v3166 = vpop.f32.mrf.mxu0
        %v3167 = vadd.f32 0.0, %v3166
        %v3168 = vpop.f32.mrf.mxu0
        %v3169 = vadd.f32 0.0, %v3168
        %3170 = vmatmul.bf16.gmra.mxu0 %v3096
        %v3171 = vpop.f32.mrf.mxu0
        %v3172 = vadd.f32 0.0, %v3171
        %v3173 = vpop.f32.mrf.mxu0
        %v3174 = vadd.f32 0.0, %v3173
        %3175 = vmatmul.bf16.gmra.mxu0 %v3099
        %v3176 = vpop.f32.mrf.mxu0
        %v3177 = vadd.f32 0.0, %v3176
        %v3178 = vpop.f32.mrf.mxu0
        %v3179 = vadd.f32 0.0, %v3178
        %3180 = vmatmul.bf16.gmra.mxu0 %v3102
        %v3181 = vpop.f32.mrf.mxu0
        %v3182 = vadd.f32 0.0, %v3181
        %v3183 = vpop.f32.mrf.mxu0
        %v3184 = vadd.f32 0.0, %v3183
        %3185 = vmatmul.bf16.gmra.mxu0 %v3105
        %v3186 = vpop.f32.mrf.mxu0
        %v3187 = vadd.f32 0.0, %v3186
        %v3188 = vpop.f32.mrf.mxu0
        %v3189 = vadd.f32 0.0, %v3188
        %3190 = vmatmul.bf16.gmra.mxu0 %v3108
        %v3191 = vpop.f32.mrf.mxu0
        %v3192 = vadd.f32 0.0, %v3191
        %v3193 = vpop.f32.mrf.mxu0
        %v3194 = vadd.f32 0.0, %v3193
        %3195 = vmatmul.bf16.gmra.mxu0 %v3111
        %v3196 = vpop.f32.mrf.mxu0
        %v3197 = vadd.f32 0.0, %v3196
        %v3198 = vpop.f32.mrf.mxu0
        %v3199 = vadd.f32 0.0, %v3198
        %3200 = vdwg.mxu0
        %v3215 = vunpack.c.l.b16 %v3028
        %v3216 = vunpack.c.l.b16 %v3029
        %v3217 = vunpack.c.l.b16 %v3030
        %v3218 = vunpack.c.l.b16 %v3031
        %v3219 = vunpack.c.l.b16 %v3032
        %v3220 = vunpack.c.l.b16 %v3033
        %v3221 = vunpack.c.l.b16 %v3034
        %v3222 = vunpack.c.l.b16 %v3035
        %v3223 = vunpack.c.l.b16 %v3036
        %v3224 = vunpack.c.l.b16 %v3037
        %v3225 = vunpack.c.l.b16 %v3038
        %v3226 = vunpack.c.l.b16 %v3039
        %v3227 = vunpack.c.l.b16 %v3040
        %v3228 = vunpack.c.l.b16 %v3041
        %v3229 = vpack.c.b16 %v3216, %v3215
        %v3230 = vpack.c.b16 %v3218, %v3217
        %v3231 = vpack.c.b16 %v3220, %v3219
        %v3232 = vpack.c.b16 %v3222, %v3221
        %v3233 = vpack.c.b16 %v3224, %v3223
        %v3234 = vpack.c.b16 %v3226, %v3225
        %v3235 = vpack.c.b16 %v3228, %v3227
        %v3237 = vsel %vm2718, %v3229, 0
        %v3240 = vsel %vm2718, %v3230, 0
        %v3243 = vsel %vm2718, %v3231, 0
        %v3246 = vsel %vm2718, %v3232, 0
        %v3249 = vsel %vm2718, %v3233, 0
        %v3252 = vsel %vm2718, %v3234, 0
        %v3255 = vsel %vm2718, %v3235, 0
        %3257 = vmatpush.bf16.msra.mxu0 0
        %3258 = vmatpush.bf16.msra.mxu0 0
        %3259 = vmatpush.bf16.msra.mxu0 0
        %3260 = vmatpush.bf16.msra.mxu0 0
        %3261 = vmatpush.bf16.msra.mxu0 %v2892
        %3262 = vmatpush.bf16.msra.mxu0 %v2000
        %3263 = vmatpush.bf16.msra.mxu0 %v1998
        %3264 = vmatpush.bf16.msra.mxu0 %v1996
        %3265 = vmatmul.bf16.gmra.mxu0 %v3237
        %v3266 = vpop.f32.mrf.mxu0
        %v3267 = vadd.f32 %v3123, %v3266
        %v3268 = vpop.f32.mrf.mxu0
        %v3269 = vadd.f32 %v3125, %v3268
        %3270 = vmatmul.bf16.gmra.mxu0 %v3240
        %v3271 = vpop.f32.mrf.mxu0
        %v3272 = vadd.f32 %v3128, %v3271
        %v3273 = vpop.f32.mrf.mxu0
        %v3274 = vadd.f32 %v3130, %v3273
        %3275 = vmatmul.bf16.gmra.mxu0 %v3243
        %v3276 = vpop.f32.mrf.mxu0
        %v3277 = vadd.f32 %v3133, %v3276
        %v3278 = vpop.f32.mrf.mxu0
        %v3279 = vadd.f32 %v3135, %v3278
        %3280 = vmatmul.bf16.gmra.mxu0 %v3246
        %v3281 = vpop.f32.mrf.mxu0
        %v3282 = vadd.f32 %v3138, %v3281
        %v3283 = vpop.f32.mrf.mxu0
        %v3284 = vadd.f32 %v3140, %v3283
        %3285 = vmatmul.bf16.gmra.mxu0 %v3249
        %v3286 = vpop.f32.mrf.mxu0
        %v3287 = vadd.f32 %v3143, %v3286
        %v3288 = vpop.f32.mrf.mxu0
        %v3289 = vadd.f32 %v3145, %v3288
        %3290 = vmatmul.bf16.gmra.mxu0 %v3252
        %v3291 = vpop.f32.mrf.mxu0
        %v3292 = vadd.f32 %v3148, %v3291
        %v3293 = vpop.f32.mrf.mxu0
        %v3294 = vadd.f32 %v3150, %v3293
        %3295 = vmatmul.bf16.gmra.mxu0 %v3255
        %v3296 = vpop.f32.mrf.mxu0
        %v3297 = vadd.f32 %v3153, %v3296
        %v3298 = vpop.f32.mrf.mxu0
        %v3299 = vadd.f32 %v3155, %v3298
        %3300 = vdwg.mxu0
        %3301 = vmatpush.bf16.msra.mxu0 0
        %3302 = vmatpush.bf16.msra.mxu0 0
        %3303 = vmatpush.bf16.msra.mxu0 0
        %3304 = vmatpush.bf16.msra.mxu0 0
        %3305 = vmatpush.bf16.msra.mxu0 %v2895
        %3306 = vmatpush.bf16.msra.mxu0 %v2001
        %3307 = vmatpush.bf16.msra.mxu0 %v1999
        %3308 = vmatpush.bf16.msra.mxu0 %v1997
        %3309 = vmatmul.bf16.gmra.mxu0 %v3237
        %v3310 = vpop.f32.mrf.mxu0
        %v3311 = vadd.f32 %v3167, %v3310
        %v3312 = vpop.f32.mrf.mxu0
        %v3313 = vadd.f32 %v3169, %v3312
        %3314 = vmatmul.bf16.gmra.mxu0 %v3240
        %v3315 = vpop.f32.mrf.mxu0
        %v3316 = vadd.f32 %v3172, %v3315
        %v3317 = vpop.f32.mrf.mxu0
        %v3318 = vadd.f32 %v3174, %v3317
        %3319 = vmatmul.bf16.gmra.mxu0 %v3243
        %v3320 = vpop.f32.mrf.mxu0
        %v3321 = vadd.f32 %v3177, %v3320
        %v3322 = vpop.f32.mrf.mxu0
        %v3323 = vadd.f32 %v3179, %v3322
        %3324 = vmatmul.bf16.gmra.mxu0 %v3246
        %v3325 = vpop.f32.mrf.mxu0
        %v3326 = vadd.f32 %v3182, %v3325
        %v3327 = vpop.f32.mrf.mxu0
        %v3328 = vadd.f32 %v3184, %v3327
        %3329 = vmatmul.bf16.gmra.mxu0 %v3249
        %v3330 = vpop.f32.mrf.mxu0
        %v3331 = vadd.f32 %v3187, %v3330
        %v3332 = vpop.f32.mrf.mxu0
        %v3333 = vadd.f32 %v3189, %v3332
        %3334 = vmatmul.bf16.gmra.mxu0 %v3252
        %v3335 = vpop.f32.mrf.mxu0
        %v3336 = vadd.f32 %v3192, %v3335
        %v3337 = vpop.f32.mrf.mxu0
        %v3338 = vadd.f32 %v3194, %v3337
        %3339 = vmatmul.bf16.gmra.mxu0 %v3255
        %v3340 = vpop.f32.mrf.mxu0
        %v3341 = vadd.f32 %v3197, %v3340
        %v3342 = vpop.f32.mrf.mxu0
        %v3343 = vadd.f32 %v3199, %v3342
        %3344 = vdwg.mxu0
        %v3345 = vpack.c.bf16 %v3269, %v3267
        %v3346 = vpack.c.bf16 %v3313, %v3311
        %v3347 = vpack.c.bf16 %v3274, %v3272
        %v3348 = vpack.c.bf16 %v3318, %v3316
        %v3349 = vpack.c.bf16 %v3279, %v3277
        %v3350 = vpack.c.bf16 %v3323, %v3321
        %v3351 = vpack.c.bf16 %v3284, %v3282
        %v3352 = vpack.c.bf16 %v3328, %v3326
        %v3353 = vpack.c.bf16 %v3289, %v3287
        %v3354 = vpack.c.bf16 %v3333, %v3331
        %v3355 = vpack.c.bf16 %v3294, %v3292
        %v3356 = vpack.c.bf16 %v3338, %v3336
        %v3357 = vpack.c.bf16 %v3299, %v3297
        %v3358 = vpack.c.bf16 %v3343, %v3341
        %s3359 = scalar_lea.vmem %s5, 112
        %v3360 = vld [vmem:[%s3359] sm:$0xf]
        %v3361 = vld [vmem:[%s3359 + $0x4] sm:$0xf]
        %v3362 = vld [vmem:[%s3359 + $0x8] sm:$0xf]
        %v3363 = vld [vmem:[%s3359 + $0xc] sm:$0xf]
        %v3364 = vld [vmem:[%s3359 + $0x10] sm:$0xf]
        %v3365 = vld [vmem:[%s3359 + $0x14] sm:$0xf]
        %v3366 = vld [vmem:[%s3359 + $0x18] sm:$0xf]
        %v3367 = vld [vmem:[%s3359 + $0x1c] sm:$0xf]
        %v3368 = vld [vmem:[%s3359 + $0x20] sm:$0xf]
        %v3369 = vld [vmem:[%s3359 + $0x24] sm:$0xf]
        %v3370 = vld [vmem:[%s3359 + $0x28] sm:$0xf]
        %v3371 = vld [vmem:[%s3359 + $0x2c] sm:$0xf]
        %v3372 = vld [vmem:[%s3359 + $0x30] sm:$0xf]
        %v3373 = vld [vmem:[%s3359 + $0x34] sm:$0xf]
        %v3374 = vld [vmem:[%s3359 + $0x38] sm:$0xf]
        %v3375 = vld [vmem:[%s3359 + $0x3c] sm:$0xf]
        %v3376 = vld [vmem:[%s3359 + $0x40] sm:$0xf]
        %v3377 = vld [vmem:[%s3359 + $0x44] sm:$0xf]
        %v3378 = vld [vmem:[%s3359 + $0x48] sm:$0xf]
        %v3379 = vld [vmem:[%s3359 + $0x4c] sm:$0xf]
        %v3380 = vld [vmem:[%s3359 + $0x50] sm:$0xf]
        %v3381 = vld [vmem:[%s3359 + $0x54] sm:$0xf]
        %v3382 = vld [vmem:[%s3359 + $0x58] sm:$0xf]
        %v3383 = vld [vmem:[%s3359 + $0x5c] sm:$0xf]
        %v3384 = vld [vmem:[%s3359 + $0x60] sm:$0xf]
        %v3385 = vld [vmem:[%s3359 + $0x64] sm:$0xf]
        %v3386 = vld [vmem:[%s3359 + $0x68] sm:$0xf]
        %v3387 = vld [vmem:[%s3359 + $0x6c] sm:$0xf]
        %v3416 = vunpack.c.l.b16 %v3360
        %v3417 = vunpack.c.l.b16 %v3361
        %v3418 = vunpack.c.l.b16 %v3362
        %v3419 = vunpack.c.l.b16 %v3363
        %v3420 = vunpack.c.l.b16 %v3364
        %v3421 = vunpack.c.l.b16 %v3365
        %v3422 = vunpack.c.l.b16 %v3366
        %v3423 = vunpack.c.l.b16 %v3367
        %v3424 = vunpack.c.l.b16 %v3368
        %v3425 = vunpack.c.l.b16 %v3369
        %v3426 = vunpack.c.l.b16 %v3370
        %v3427 = vunpack.c.l.b16 %v3371
        %v3428 = vunpack.c.l.b16 %v3372
        %v3429 = vunpack.c.l.b16 %v3373
        %v3430 = vunpack.c.l.b16 %v3374
        %v3431 = vunpack.c.l.b16 %v3375
        %v3432 = vunpack.c.l.b16 %v3376
        %v3433 = vunpack.c.l.b16 %v3377
        %v3434 = vunpack.c.l.b16 %v3378
        %v3435 = vunpack.c.l.b16 %v3379
        %v3436 = vunpack.c.l.b16 %v3380
        %v3437 = vunpack.c.l.b16 %v3381
        %v3438 = vunpack.c.l.b16 %v3382
        %v3439 = vunpack.c.l.b16 %v3383
        %v3440 = vunpack.c.l.b16 %v3384
        %v3441 = vunpack.c.l.b16 %v3385
        %v3442 = vunpack.c.l.b16 %v3386
        %v3443 = vunpack.c.l.b16 %v3387
        %v3444 = vpack.c.b16 %v3417, %v3416
        %v3445 = vpack.c.b16 %v3419, %v3418
        %v3446 = vpack.c.b16 %v3421, %v3420
        %v3447 = vpack.c.b16 %v3423, %v3422
        %v3448 = vpack.c.b16 %v3425, %v3424
        %v3449 = vpack.c.b16 %v3427, %v3426
        %v3450 = vpack.c.b16 %v3429, %v3428
        %v3451 = vpack.c.b16 %v3431, %v3430
        %v3452 = vpack.c.b16 %v3433, %v3432
        %v3453 = vpack.c.b16 %v3435, %v3434
        %v3454 = vpack.c.b16 %v3437, %v3436
        %v3455 = vpack.c.b16 %v3439, %v3438
        %v3456 = vpack.c.b16 %v3441, %v3440
        %v3457 = vpack.c.b16 %v3443, %v3442
        %v3473 = vsel %vm1541, %v3346, 0
        %v3476 = vsel %vm1541, %v3348, 0
        %v3479 = vsel %vm1541, %v3350, 0
        %v3482 = vsel %vm1541, %v3352, 0
        %v3485 = vsel %vm1541, %v3354, 0
        %v3488 = vsel %vm1541, %v3356, 0
        %v3491 = vsel %vm1541, %v3358, 0
        %3493 = vmatpush.bf16.msra.mxu0 %v3451
        %3494 = vmatpush.bf16.msra.mxu0 %v3450
        %3495 = vmatpush.bf16.msra.mxu0 %v3449
        %3496 = vmatpush.bf16.msra.mxu0 %v3448
        %3497 = vmatpush.bf16.msra.mxu0 %v3447
        %3498 = vmatpush.bf16.msra.mxu0 %v3446
        %3499 = vmatpush.bf16.msra.mxu0 %v3445
        %3500 = vmatpush.bf16.msra.mxu0 %v3444
        %3501 = vmatmul.bf16.gmra.mxu0 %v3345
        %v3502 = vpop.f32.mrf.mxu0
        %v3503 = vadd.f32 0.0, %v3502
        %v3504 = vpop.f32.mrf.mxu0
        %v3505 = vadd.f32 0.0, %v3504
        %3506 = vmatmul.bf16.gmra.mxu0 %v3347
        %v3507 = vpop.f32.mrf.mxu0
        %v3508 = vadd.f32 0.0, %v3507
        %v3509 = vpop.f32.mrf.mxu0
        %v3510 = vadd.f32 0.0, %v3509
        %3511 = vmatmul.bf16.gmra.mxu0 %v3349
        %v3512 = vpop.f32.mrf.mxu0
        %v3513 = vadd.f32 0.0, %v3512
        %v3514 = vpop.f32.mrf.mxu0
        %v3515 = vadd.f32 0.0, %v3514
        %3516 = vmatmul.bf16.gmra.mxu0 %v3351
        %v3517 = vpop.f32.mrf.mxu0
        %v3518 = vadd.f32 0.0, %v3517
        %v3519 = vpop.f32.mrf.mxu0
        %v3520 = vadd.f32 0.0, %v3519
        %3521 = vmatmul.bf16.gmra.mxu0 %v3353
        %v3522 = vpop.f32.mrf.mxu0
        %v3523 = vadd.f32 0.0, %v3522
        %v3524 = vpop.f32.mrf.mxu0
        %v3525 = vadd.f32 0.0, %v3524
        %3526 = vmatmul.bf16.gmra.mxu0 %v3355
        %v3527 = vpop.f32.mrf.mxu0
        %v3528 = vadd.f32 0.0, %v3527
        %v3529 = vpop.f32.mrf.mxu0
        %v3530 = vadd.f32 0.0, %v3529
        %3531 = vmatmul.bf16.gmra.mxu0 %v3357
        %v3532 = vpop.f32.mrf.mxu0
        %v3533 = vadd.f32 0.0, %v3532
        %v3534 = vpop.f32.mrf.mxu0
        %v3535 = vadd.f32 0.0, %v3534
        %3536 = vdwg.mxu0
        %3537 = vmatpush.bf16.msra.mxu0 0
        %3538 = vmatpush.bf16.msra.mxu0 0
        %3539 = vmatpush.bf16.msra.mxu0 %v3457
        %3540 = vmatpush.bf16.msra.mxu0 %v3456
        %3541 = vmatpush.bf16.msra.mxu0 %v3455
        %3542 = vmatpush.bf16.msra.mxu0 %v3454
        %3543 = vmatpush.bf16.msra.mxu0 %v3453
        %3544 = vmatpush.bf16.msra.mxu0 %v3452
        %3545 = vmatmul.bf16.gmra.mxu0 %v3473
        %v3546 = vpop.f32.mrf.mxu0
        %v3547 = vadd.f32 %v3503, %v3546
        %v3548 = vpop.f32.mrf.mxu0
        %v3549 = vadd.f32 %v3505, %v3548
        %3550 = vmatmul.bf16.gmra.mxu0 %v3476
        %v3551 = vpop.f32.mrf.mxu0
        %v3552 = vadd.f32 %v3508, %v3551
        %v3553 = vpop.f32.mrf.mxu0
        %v3554 = vadd.f32 %v3510, %v3553
        %3555 = vmatmul.bf16.gmra.mxu0 %v3479
        %v3556 = vpop.f32.mrf.mxu0
        %v3557 = vadd.f32 %v3513, %v3556
        %v3558 = vpop.f32.mrf.mxu0
        %v3559 = vadd.f32 %v3515, %v3558
        %3560 = vmatmul.bf16.gmra.mxu0 %v3482
        %v3561 = vpop.f32.mrf.mxu0
        %v3562 = vadd.f32 %v3518, %v3561
        %v3563 = vpop.f32.mrf.mxu0
        %v3564 = vadd.f32 %v3520, %v3563
        %3565 = vmatmul.bf16.gmra.mxu0 %v3485
        %v3566 = vpop.f32.mrf.mxu0
        %v3567 = vadd.f32 %v3523, %v3566
        %v3568 = vpop.f32.mrf.mxu0
        %v3569 = vadd.f32 %v3525, %v3568
        %3570 = vmatmul.bf16.gmra.mxu0 %v3488
        %v3571 = vpop.f32.mrf.mxu0
        %v3572 = vadd.f32 %v3528, %v3571
        %v3573 = vpop.f32.mrf.mxu0
        %v3574 = vadd.f32 %v3530, %v3573
        %3575 = vmatmul.bf16.gmra.mxu0 %v3491
        %v3576 = vpop.f32.mrf.mxu0
        %v3577 = vadd.f32 %v3533, %v3576
        %v3578 = vpop.f32.mrf.mxu0
        %v3579 = vadd.f32 %v3535, %v3578
        %3580 = vdwg.mxu0
        %v3609 = vunpack.c.l.b16 %v2999
        %v3610 = vunpack.c.l.b16 %v3000
        %v3611 = vunpack.c.l.b16 %v3001
        %v3612 = vunpack.c.l.b16 %v3002
        %v3613 = vunpack.c.l.b16 %v3003
        %v3614 = vunpack.c.l.b16 %v3004
        %v3615 = vunpack.c.l.b16 %v3005
        %v3616 = vunpack.c.l.b16 %v3006
        %v3617 = vunpack.c.l.b16 %v3007
        %v3618 = vunpack.c.l.b16 %v3008
        %v3619 = vunpack.c.l.b16 %v3009
        %v3620 = vunpack.c.l.b16 %v3010
        %v3621 = vunpack.c.l.b16 %v3011
        %v3622 = vunpack.c.l.b16 %v3012
        %v3623 = vunpack.c.l.b16 %v3013
        %v3624 = vunpack.c.l.b16 %v3014
        %v3625 = vunpack.c.l.b16 %v3015
        %v3626 = vunpack.c.l.b16 %v3016
        %v3627 = vunpack.c.l.b16 %v3017
        %v3628 = vunpack.c.l.b16 %v3018
        %v3629 = vunpack.c.l.b16 %v3019
        %v3630 = vunpack.c.l.b16 %v3020
        %v3631 = vunpack.c.l.b16 %v3021
        %v3632 = vunpack.c.l.b16 %v3022
        %v3633 = vunpack.c.l.b16 %v3023
        %v3634 = vunpack.c.l.b16 %v3024
        %v3635 = vunpack.c.l.b16 %v3025
        %v3636 = vunpack.c.l.b16 %v3026
        %v3637 = vpack.c.b16 %v3610, %v3609
        %v3638 = vpack.c.b16 %v3612, %v3611
        %v3639 = vpack.c.b16 %v3614, %v3613
        %v3640 = vpack.c.b16 %v3616, %v3615
        %v3641 = vpack.c.b16 %v3618, %v3617
        %v3642 = vpack.c.b16 %v3620, %v3619
        %v3643 = vpack.c.b16 %v3622, %v3621
        %v3644 = vpack.c.b16 %v3624, %v3623
        %v3645 = vpack.c.b16 %v3626, %v3625
        %v3646 = vpack.c.b16 %v3628, %v3627
        %v3647 = vpack.c.b16 %v3630, %v3629
        %v3648 = vpack.c.b16 %v3632, %v3631
        %v3649 = vpack.c.b16 %v3634, %v3633
        %v3650 = vpack.c.b16 %v3636, %v3635
        %v3666 = vsel %vm1541, %v2986, 0
        %v3669 = vsel %vm1541, %v2988, 0
        %v3672 = vsel %vm1541, %v2990, 0
        %v3675 = vsel %vm1541, %v2992, 0
        %v3678 = vsel %vm1541, %v2994, 0
        %v3681 = vsel %vm1541, %v2996, 0
        %v3684 = vsel %vm1541, %v2998, 0
        %3686 = vmatpush.bf16.msra.mxu0 %v3644
        %3687 = vmatpush.bf16.msra.mxu0 %v3643
        %3688 = vmatpush.bf16.msra.mxu0 %v3642
        %3689 = vmatpush.bf16.msra.mxu0 %v3641
        %3690 = vmatpush.bf16.msra.mxu0 %v3640
        %3691 = vmatpush.bf16.msra.mxu0 %v3639
        %3692 = vmatpush.bf16.msra.mxu0 %v3638
        %3693 = vmatpush.bf16.msra.mxu0 %v3637
        %3694 = vmatmul.bf16.gmra.mxu0 %v2985
        %v3695 = vpop.f32.mrf.mxu0
        %v3696 = vadd.f32 %v3547, %v3695
        %v3697 = vpop.f32.mrf.mxu0
        %v3698 = vadd.f32 %v3549, %v3697
        %3699 = vmatmul.bf16.gmra.mxu0 %v2987
        %v3700 = vpop.f32.mrf.mxu0
        %v3701 = vadd.f32 %v3552, %v3700
        %v3702 = vpop.f32.mrf.mxu0
        %v3703 = vadd.f32 %v3554, %v3702
        %3704 = vmatmul.bf16.gmra.mxu0 %v2989
        %v3705 = vpop.f32.mrf.mxu0
        %v3706 = vadd.f32 %v3557, %v3705
        %v3707 = vpop.f32.mrf.mxu0
        %v3708 = vadd.f32 %v3559, %v3707
        %3709 = vmatmul.bf16.gmra.mxu0 %v2991
        %v3710 = vpop.f32.mrf.mxu0
        %v3711 = vadd.f32 %v3562, %v3710
        %v3712 = vpop.f32.mrf.mxu0
        %v3713 = vadd.f32 %v3564, %v3712
        %3714 = vmatmul.bf16.gmra.mxu0 %v2993
        %v3715 = vpop.f32.mrf.mxu0
        %v3716 = vadd.f32 %v3567, %v3715
        %v3717 = vpop.f32.mrf.mxu0
        %v3718 = vadd.f32 %v3569, %v3717
        %3719 = vmatmul.bf16.gmra.mxu0 %v2995
        %v3720 = vpop.f32.mrf.mxu0
        %v3721 = vadd.f32 %v3572, %v3720
        %v3722 = vpop.f32.mrf.mxu0
        %v3723 = vadd.f32 %v3574, %v3722
        %3724 = vmatmul.bf16.gmra.mxu0 %v2997
        %v3725 = vpop.f32.mrf.mxu0
        %v3726 = vadd.f32 %v3577, %v3725
        %v3727 = vpop.f32.mrf.mxu0
        %v3728 = vadd.f32 %v3579, %v3727
        %3729 = vdwg.mxu0
        %3730 = vmatpush.bf16.msra.mxu0 0
        %3731 = vmatpush.bf16.msra.mxu0 0
        %3732 = vmatpush.bf16.msra.mxu0 %v3650
        %3733 = vmatpush.bf16.msra.mxu0 %v3649
        %3734 = vmatpush.bf16.msra.mxu0 %v3648
        %3735 = vmatpush.bf16.msra.mxu0 %v3647
        %3736 = vmatpush.bf16.msra.mxu0 %v3646
        %3737 = vmatpush.bf16.msra.mxu0 %v3645
        %3738 = vmatmul.bf16.gmra.mxu0 %v3666
        %v3739 = vpop.f32.mrf.mxu0
        %v3740 = vadd.f32 %v3696, %v3739
        %v3741 = vpop.f32.mrf.mxu0
        %v3742 = vadd.f32 %v3698, %v3741
        %3743 = vmatmul.bf16.gmra.mxu0 %v3669
        %v3744 = vpop.f32.mrf.mxu0
        %v3745 = vadd.f32 %v3701, %v3744
        %v3746 = vpop.f32.mrf.mxu0
        %v3747 = vadd.f32 %v3703, %v3746
        %3748 = vmatmul.bf16.gmra.mxu0 %v3672
        %v3749 = vpop.f32.mrf.mxu0
        %v3750 = vadd.f32 %v3706, %v3749
        %v3751 = vpop.f32.mrf.mxu0
        %v3752 = vadd.f32 %v3708, %v3751
        %3753 = vmatmul.bf16.gmra.mxu0 %v3675
        %v3754 = vpop.f32.mrf.mxu0
        %v3755 = vadd.f32 %v3711, %v3754
        %v3756 = vpop.f32.mrf.mxu0
        %v3757 = vadd.f32 %v3713, %v3756
        %3758 = vmatmul.bf16.gmra.mxu0 %v3678
        %v3759 = vpop.f32.mrf.mxu0
        %v3760 = vadd.f32 %v3716, %v3759
        %v3761 = vpop.f32.mrf.mxu0
        %v3762 = vadd.f32 %v3718, %v3761
        %3763 = vmatmul.bf16.gmra.mxu0 %v3681
        %v3764 = vpop.f32.mrf.mxu0
        %v3765 = vadd.f32 %v3721, %v3764
        %v3766 = vpop.f32.mrf.mxu0
        %v3767 = vadd.f32 %v3723, %v3766
        %3768 = vmatmul.bf16.gmra.mxu0 %v3684
        %v3769 = vpop.f32.mrf.mxu0
        %v3770 = vadd.f32 %v3726, %v3769
        %v3771 = vpop.f32.mrf.mxu0
        %v3772 = vadd.f32 %v3728, %v3771
        %3773 = vdwg.mxu0
        %s3774 = scalar_lea.vmem %s5, 224
        %v3775 = vld [vmem:[%s3774] sm:$0xf]
        %v3776 = vld [vmem:[%s3774 + $0x4] sm:$0xf]
        %v3777 = vld [vmem:[%s3774 + $0x8] sm:$0xf]
        %v3778 = vld [vmem:[%s3774 + $0xc] sm:$0xf]
        %v3779 = vld [vmem:[%s3774 + $0x10] sm:$0xf]
        %v3780 = vld [vmem:[%s3774 + $0x14] sm:$0xf]
        %v3781 = vld [vmem:[%s3774 + $0x18] sm:$0xf]
        %v3782 = vld [vmem:[%s3774 + $0x1c] sm:$0xf]
        %v3783 = vld [vmem:[%s3774 + $0x20] sm:$0xf]
        %v3784 = vld [vmem:[%s3774 + $0x24] sm:$0xf]
        %v3785 = vld [vmem:[%s3774 + $0x28] sm:$0xf]
        %v3786 = vld [vmem:[%s3774 + $0x2c] sm:$0xf]
        %v3787 = vld [vmem:[%s3774 + $0x30] sm:$0xf]
        %v3788 = vld [vmem:[%s3774 + $0x34] sm:$0xf]
        %v3789 = vld [vmem:[%s3774 + $0x38] sm:$0xf]
        %v3790 = vld [vmem:[%s3774 + $0x3c] sm:$0xf]
        %v3791 = vld [vmem:[%s3774 + $0x40] sm:$0xf]
        %v3792 = vld [vmem:[%s3774 + $0x44] sm:$0xf]
        %v3793 = vld [vmem:[%s3774 + $0x48] sm:$0xf]
        %v3794 = vld [vmem:[%s3774 + $0x4c] sm:$0xf]
        %v3795 = vld [vmem:[%s3774 + $0x50] sm:$0xf]
        %v3796 = vld [vmem:[%s3774 + $0x54] sm:$0xf]
        %v3797 = vld [vmem:[%s3774 + $0x58] sm:$0xf]
        %v3798 = vld [vmem:[%s3774 + $0x5c] sm:$0xf]
        %v3799 = vld [vmem:[%s3774 + $0x60] sm:$0xf]
        %v3800 = vld [vmem:[%s3774 + $0x64] sm:$0xf]
        %v3801 = vld [vmem:[%s3774 + $0x68] sm:$0xf]
        %v3802 = vld [vmem:[%s3774 + $0x6c] sm:$0xf]
        %s3803 = scalar_lea.vmem %s7, 224
        %v3804 = vld [vmem:[%s3803] sm:$0xf]
        %v3805 = vld [vmem:[%s3803 + $0x4] sm:$0xf]
        %v3806 = vld [vmem:[%s3803 + $0x8] sm:$0xf]
        %v3807 = vld [vmem:[%s3803 + $0xc] sm:$0xf]
        %v3808 = vld [vmem:[%s3803 + $0x10] sm:$0xf]
        %v3809 = vld [vmem:[%s3803 + $0x14] sm:$0xf]
        %v3810 = vld [vmem:[%s3803 + $0x18] sm:$0xf]
        %v3811 = vld [vmem:[%s3803 + $0x1c] sm:$0xf]
        %v3812 = vld [vmem:[%s3803 + $0x20] sm:$0xf]
        %v3813 = vld [vmem:[%s3803 + $0x24] sm:$0xf]
        %v3814 = vld [vmem:[%s3803 + $0x28] sm:$0xf]
        %v3815 = vld [vmem:[%s3803 + $0x2c] sm:$0xf]
        %v3816 = vld [vmem:[%s3803 + $0x30] sm:$0xf]
        %v3817 = vld [vmem:[%s3803 + $0x34] sm:$0xf]
        %s3818 = scalar_lea.vmem %s7, 280
        %v3819 = vld [vmem:[%s3818] sm:$0xf]
        %v3820 = vld [vmem:[%s3818 + $0x4] sm:$0xf]
        %v3821 = vld [vmem:[%s3818 + $0x8] sm:$0xf]
        %v3822 = vld [vmem:[%s3818 + $0xc] sm:$0xf]
        %v3823 = vld [vmem:[%s3818 + $0x10] sm:$0xf]
        %v3824 = vld [vmem:[%s3818 + $0x14] sm:$0xf]
        %v3825 = vld [vmem:[%s3818 + $0x18] sm:$0xf]
        %v3826 = vld [vmem:[%s3818 + $0x1c] sm:$0xf]
        %v3827 = vld [vmem:[%s3818 + $0x20] sm:$0xf]
        %v3828 = vld [vmem:[%s3818 + $0x24] sm:$0xf]
        %v3829 = vld [vmem:[%s3818 + $0x28] sm:$0xf]
        %v3830 = vld [vmem:[%s3818 + $0x2c] sm:$0xf]
        %v3831 = vld [vmem:[%s3818 + $0x30] sm:$0xf]
        %v3832 = vld [vmem:[%s3818 + $0x34] sm:$0xf]
        %v3847 = vunpack.c.l.b16 %v3819
        %v3848 = vunpack.c.l.b16 %v3820
        %v3849 = vunpack.c.l.b16 %v3821
        %v3850 = vunpack.c.l.b16 %v3822
        %v3851 = vunpack.c.l.b16 %v3823
        %v3852 = vunpack.c.l.b16 %v3824
        %v3853 = vunpack.c.l.b16 %v3825
        %v3854 = vunpack.c.l.b16 %v3826
        %v3855 = vunpack.c.l.b16 %v3827
        %v3856 = vunpack.c.l.b16 %v3828
        %v3857 = vunpack.c.l.b16 %v3829
        %v3858 = vunpack.c.l.b16 %v3830
        %v3859 = vunpack.c.l.b16 %v3831
        %v3860 = vunpack.c.l.b16 %v3832
        %v3861 = vpack.c.b16 %v3848, %v3847
        %v3862 = vpack.c.b16 %v3850, %v3849
        %v3863 = vpack.c.b16 %v3852, %v3851
        %v3864 = vpack.c.b16 %v3854, %v3853
        %v3865 = vpack.c.b16 %v3856, %v3855
        %v3866 = vpack.c.b16 %v3858, %v3857
        %v3867 = vpack.c.b16 %v3860, %v3859
        %v3869 = vsel %vm2718, %v3861, 0
        %v3872 = vsel %vm2718, %v3862, 0
        %v3875 = vsel %vm2718, %v3863, 0
        %v3878 = vsel %vm2718, %v3864, 0
        %v3881 = vsel %vm2718, %v3865, 0
        %v3884 = vsel %vm2718, %v3866, 0
        %v3887 = vsel %vm2718, %v3867, 0
        %3889 = vmatpush.bf16.msra.mxu0 0
        %3890 = vmatpush.bf16.msra.mxu0 0
        %3891 = vmatpush.bf16.msra.mxu0 0
        %3892 = vmatpush.bf16.msra.mxu0 0
        %3893 = vmatpush.bf16.msra.mxu0 %v2742
        %3894 = vmatpush.bf16.msra.mxu0 %v2650
        %3895 = vmatpush.bf16.msra.mxu0 %v2648
        %3896 = vmatpush.bf16.msra.mxu0 %v2646
        %3897 = vmatmul.bf16.gmra.mxu0 %v3869
        %v3898 = vpop.f32.mrf.mxu0
        %v3899 = vadd.f32 0.0, %v3898
        %v3900 = vpop.f32.mrf.mxu0
        %v3901 = vadd.f32 0.0, %v3900
        %3902 = vmatmul.bf16.gmra.mxu0 %v3872
        %v3903 = vpop.f32.mrf.mxu0
        %v3904 = vadd.f32 0.0, %v3903
        %v3905 = vpop.f32.mrf.mxu0
        %v3906 = vadd.f32 0.0, %v3905
        %3907 = vmatmul.bf16.gmra.mxu0 %v3875
        %v3908 = vpop.f32.mrf.mxu0
        %v3909 = vadd.f32 0.0, %v3908
        %v3910 = vpop.f32.mrf.mxu0
        %v3911 = vadd.f32 0.0, %v3910
        %3912 = vmatmul.bf16.gmra.mxu0 %v3878
        %v3913 = vpop.f32.mrf.mxu0
        %v3914 = vadd.f32 0.0, %v3913
        %v3915 = vpop.f32.mrf.mxu0
        %v3916 = vadd.f32 0.0, %v3915
        %3917 = vmatmul.bf16.gmra.mxu0 %v3881
        %v3918 = vpop.f32.mrf.mxu0
        %v3919 = vadd.f32 0.0, %v3918
        %v3920 = vpop.f32.mrf.mxu0
        %v3921 = vadd.f32 0.0, %v3920
        %3922 = vmatmul.bf16.gmra.mxu0 %v3884
        %v3923 = vpop.f32.mrf.mxu0
        %v3924 = vadd.f32 0.0, %v3923
        %v3925 = vpop.f32.mrf.mxu0
        %v3926 = vadd.f32 0.0, %v3925
        %3927 = vmatmul.bf16.gmra.mxu0 %v3887
        %v3928 = vpop.f32.mrf.mxu0
        %v3929 = vadd.f32 0.0, %v3928
        %v3930 = vpop.f32.mrf.mxu0
        %v3931 = vadd.f32 0.0, %v3930
        %3932 = vdwg.mxu0
        %3933 = vmatpush.bf16.msra.mxu0 0
        %3934 = vmatpush.bf16.msra.mxu0 0
        %3935 = vmatpush.bf16.msra.mxu0 0
        %3936 = vmatpush.bf16.msra.mxu0 0
        %3937 = vmatpush.bf16.msra.mxu0 %v2745
        %3938 = vmatpush.bf16.msra.mxu0 %v2651
        %3939 = vmatpush.bf16.msra.mxu0 %v2649
        %3940 = vmatpush.bf16.msra.mxu0 %v2647
        %3941 = vmatmul.bf16.gmra.mxu0 %v3869
        %v3942 = vpop.f32.mrf.mxu0
        %v3943 = vadd.f32 0.0, %v3942
        %v3944 = vpop.f32.mrf.mxu0
        %v3945 = vadd.f32 0.0, %v3944
        %3946 = vmatmul.bf16.gmra.mxu0 %v3872
        %v3947 = vpop.f32.mrf.mxu0
        %v3948 = vadd.f32 0.0, %v3947
        %v3949 = vpop.f32.mrf.mxu0
        %v3950 = vadd.f32 0.0, %v3949
        %3951 = vmatmul.bf16.gmra.mxu0 %v3875
        %v3952 = vpop.f32.mrf.mxu0
        %v3953 = vadd.f32 0.0, %v3952
        %v3954 = vpop.f32.mrf.mxu0
        %v3955 = vadd.f32 0.0, %v3954
        %3956 = vmatmul.bf16.gmra.mxu0 %v3878
        %v3957 = vpop.f32.mrf.mxu0
        %v3958 = vadd.f32 0.0, %v3957
        %v3959 = vpop.f32.mrf.mxu0
        %v3960 = vadd.f32 0.0, %v3959
        %3961 = vmatmul.bf16.gmra.mxu0 %v3881
        %v3962 = vpop.f32.mrf.mxu0
        %v3963 = vadd.f32 0.0, %v3962
        %v3964 = vpop.f32.mrf.mxu0
        %v3965 = vadd.f32 0.0, %v3964
        %3966 = vmatmul.bf16.gmra.mxu0 %v3884
        %v3967 = vpop.f32.mrf.mxu0
        %v3968 = vadd.f32 0.0, %v3967
        %v3969 = vpop.f32.mrf.mxu0
        %v3970 = vadd.f32 0.0, %v3969
        %3971 = vmatmul.bf16.gmra.mxu0 %v3887
        %v3972 = vpop.f32.mrf.mxu0
        %v3973 = vadd.f32 0.0, %v3972
        %v3974 = vpop.f32.mrf.mxu0
        %v3975 = vadd.f32 0.0, %v3974
        %3976 = vdwg.mxu0
        %v3991 = vunpack.c.l.b16 %v3804
        %v3992 = vunpack.c.l.b16 %v3805
        %v3993 = vunpack.c.l.b16 %v3806
        %v3994 = vunpack.c.l.b16 %v3807
        %v3995 = vunpack.c.l.b16 %v3808
        %v3996 = vunpack.c.l.b16 %v3809
        %v3997 = vunpack.c.l.b16 %v3810
        %v3998 = vunpack.c.l.b16 %v3811
        %v3999 = vunpack.c.l.b16 %v3812
        %v4000 = vunpack.c.l.b16 %v3813
        %v4001 = vunpack.c.l.b16 %v3814
        %v4002 = vunpack.c.l.b16 %v3815
        %v4003 = vunpack.c.l.b16 %v3816
        %v4004 = vunpack.c.l.b16 %v3817
        %v4005 = vpack.c.b16 %v3992, %v3991
        %v4006 = vpack.c.b16 %v3994, %v3993
        %v4007 = vpack.c.b16 %v3996, %v3995
        %v4008 = vpack.c.b16 %v3998, %v3997
        %v4009 = vpack.c.b16 %v4000, %v3999
        %v4010 = vpack.c.b16 %v4002, %v4001
        %v4011 = vpack.c.b16 %v4004, %v4003
        %v4013 = vsel %vm2718, %v4005, 0
        %v4016 = vsel %vm2718, %v4006, 0
        %v4019 = vsel %vm2718, %v4007, 0
        %v4022 = vsel %vm2718, %v4008, 0
        %v4025 = vsel %vm2718, %v4009, 0
        %v4028 = vsel %vm2718, %v4010, 0
        %v4031 = vsel %vm2718, %v4011, 0
        %4033 = vmatpush.bf16.msra.mxu0 0
        %4034 = vmatpush.bf16.msra.mxu0 0
        %4035 = vmatpush.bf16.msra.mxu0 0
        %4036 = vmatpush.bf16.msra.mxu0 0
        %4037 = vmatpush.bf16.msra.mxu0 %v2892
        %4038 = vmatpush.bf16.msra.mxu0 %v2000
        %4039 = vmatpush.bf16.msra.mxu0 %v1998
        %4040 = vmatpush.bf16.msra.mxu0 %v1996
        %4041 = vmatmul.bf16.gmra.mxu0 %v4013
        %v4042 = vpop.f32.mrf.mxu0
        %v4043 = vadd.f32 %v3899, %v4042
        %v4044 = vpop.f32.mrf.mxu0
        %v4045 = vadd.f32 %v3901, %v4044
        %4046 = vmatmul.bf16.gmra.mxu0 %v4016
        %v4047 = vpop.f32.mrf.mxu0
        %v4048 = vadd.f32 %v3904, %v4047
        %v4049 = vpop.f32.mrf.mxu0
        %v4050 = vadd.f32 %v3906, %v4049
        %4051 = vmatmul.bf16.gmra.mxu0 %v4019
        %v4052 = vpop.f32.mrf.mxu0
        %v4053 = vadd.f32 %v3909, %v4052
        %v4054 = vpop.f32.mrf.mxu0
        %v4055 = vadd.f32 %v3911, %v4054
        %4056 = vmatmul.bf16.gmra.mxu0 %v4022
        %v4057 = vpop.f32.mrf.mxu0
        %v4058 = vadd.f32 %v3914, %v4057
        %v4059 = vpop.f32.mrf.mxu0
        %v4060 = vadd.f32 %v3916, %v4059
        %4061 = vmatmul.bf16.gmra.mxu0 %v4025
        %v4062 = vpop.f32.mrf.mxu0
        %v4063 = vadd.f32 %v3919, %v4062
        %v4064 = vpop.f32.mrf.mxu0
        %v4065 = vadd.f32 %v3921, %v4064
        %4066 = vmatmul.bf16.gmra.mxu0 %v4028
        %v4067 = vpop.f32.mrf.mxu0
        %v4068 = vadd.f32 %v3924, %v4067
        %v4069 = vpop.f32.mrf.mxu0
        %v4070 = vadd.f32 %v3926, %v4069
        %4071 = vmatmul.bf16.gmra.mxu0 %v4031
        %v4072 = vpop.f32.mrf.mxu0
        %v4073 = vadd.f32 %v3929, %v4072
        %v4074 = vpop.f32.mrf.mxu0
        %v4075 = vadd.f32 %v3931, %v4074
        %4076 = vdwg.mxu0
        %4077 = vmatpush.bf16.msra.mxu0 0
        %4078 = vmatpush.bf16.msra.mxu0 0
        %4079 = vmatpush.bf16.msra.mxu0 0
        %4080 = vmatpush.bf16.msra.mxu0 0
        %4081 = vmatpush.bf16.msra.mxu0 %v2895
        %4082 = vmatpush.bf16.msra.mxu0 %v2001
        %4083 = vmatpush.bf16.msra.mxu0 %v1999
        %4084 = vmatpush.bf16.msra.mxu0 %v1997
        %4085 = vmatmul.bf16.gmra.mxu0 %v4013
        %v4086 = vpop.f32.mrf.mxu0
        %v4087 = vadd.f32 %v3943, %v4086
        %v4088 = vpop.f32.mrf.mxu0
        %v4089 = vadd.f32 %v3945, %v4088
        %4090 = vmatmul.bf16.gmra.mxu0 %v4016
        %v4091 = vpop.f32.mrf.mxu0
        %v4092 = vadd.f32 %v3948, %v4091
        %v4093 = vpop.f32.mrf.mxu0
        %v4094 = vadd.f32 %v3950, %v4093
        %4095 = vmatmul.bf16.gmra.mxu0 %v4019
        %v4096 = vpop.f32.mrf.mxu0
        %v4097 = vadd.f32 %v3953, %v4096
        %v4098 = vpop.f32.mrf.mxu0
        %v4099 = vadd.f32 %v3955, %v4098
        %4100 = vmatmul.bf16.gmra.mxu0 %v4022
        %v4101 = vpop.f32.mrf.mxu0
        %v4102 = vadd.f32 %v3958, %v4101
        %v4103 = vpop.f32.mrf.mxu0
        %v4104 = vadd.f32 %v3960, %v4103
        %4105 = vmatmul.bf16.gmra.mxu0 %v4025
        %v4106 = vpop.f32.mrf.mxu0
        %v4107 = vadd.f32 %v3963, %v4106
        %v4108 = vpop.f32.mrf.mxu0
        %v4109 = vadd.f32 %v3965, %v4108
        %4110 = vmatmul.bf16.gmra.mxu0 %v4028
        %v4111 = vpop.f32.mrf.mxu0
        %v4112 = vadd.f32 %v3968, %v4111
        %v4113 = vpop.f32.mrf.mxu0
        %v4114 = vadd.f32 %v3970, %v4113
        %4115 = vmatmul.bf16.gmra.mxu0 %v4031
        %v4116 = vpop.f32.mrf.mxu0
        %v4117 = vadd.f32 %v3973, %v4116
        %v4118 = vpop.f32.mrf.mxu0
        %v4119 = vadd.f32 %v3975, %v4118
        %4120 = vdwg.mxu0
        %v4121 = vpack.c.bf16 %v4045, %v4043
        %v4122 = vpack.c.bf16 %v4089, %v4087
        %v4123 = vpack.c.bf16 %v4050, %v4048
        %v4124 = vpack.c.bf16 %v4094, %v4092
        %v4125 = vpack.c.bf16 %v4055, %v4053
        %v4126 = vpack.c.bf16 %v4099, %v4097
        %v4127 = vpack.c.bf16 %v4060, %v4058
        %v4128 = vpack.c.bf16 %v4104, %v4102
        %v4129 = vpack.c.bf16 %v4065, %v4063
        %v4130 = vpack.c.bf16 %v4109, %v4107
        %v4131 = vpack.c.bf16 %v4070, %v4068
        %v4132 = vpack.c.bf16 %v4114, %v4112
        %v4133 = vpack.c.bf16 %v4075, %v4073
        %v4134 = vpack.c.bf16 %v4119, %v4117
        %s4135 = scalar_lea.vmem %s5, 336
        %v4136 = vld [vmem:[%s4135] sm:$0xf]
        %v4137 = vld [vmem:[%s4135 + $0x4] sm:$0xf]
        %v4138 = vld [vmem:[%s4135 + $0x8] sm:$0xf]
        %v4139 = vld [vmem:[%s4135 + $0xc] sm:$0xf]
        %v4140 = vld [vmem:[%s4135 + $0x10] sm:$0xf]
        %v4141 = vld [vmem:[%s4135 + $0x14] sm:$0xf]
        %v4142 = vld [vmem:[%s4135 + $0x18] sm:$0xf]
        %v4143 = vld [vmem:[%s4135 + $0x1c] sm:$0xf]
        %v4144 = vld [vmem:[%s4135 + $0x20] sm:$0xf]
        %v4145 = vld [vmem:[%s4135 + $0x24] sm:$0xf]
        %v4146 = vld [vmem:[%s4135 + $0x28] sm:$0xf]
        %v4147 = vld [vmem:[%s4135 + $0x2c] sm:$0xf]
        %v4148 = vld [vmem:[%s4135 + $0x30] sm:$0xf]
        %v4149 = vld [vmem:[%s4135 + $0x34] sm:$0xf]
        %v4150 = vld [vmem:[%s4135 + $0x38] sm:$0xf]
        %v4151 = vld [vmem:[%s4135 + $0x3c] sm:$0xf]
        %v4152 = vld [vmem:[%s4135 + $0x40] sm:$0xf]
        %v4153 = vld [vmem:[%s4135 + $0x44] sm:$0xf]
        %v4154 = vld [vmem:[%s4135 + $0x48] sm:$0xf]
        %v4155 = vld [vmem:[%s4135 + $0x4c] sm:$0xf]
        %v4156 = vld [vmem:[%s4135 + $0x50] sm:$0xf]
        %v4157 = vld [vmem:[%s4135 + $0x54] sm:$0xf]
        %v4158 = vld [vmem:[%s4135 + $0x58] sm:$0xf]
        %v4159 = vld [vmem:[%s4135 + $0x5c] sm:$0xf]
        %v4160 = vld [vmem:[%s4135 + $0x60] sm:$0xf]
        %v4161 = vld [vmem:[%s4135 + $0x64] sm:$0xf]
        %v4162 = vld [vmem:[%s4135 + $0x68] sm:$0xf]
        %v4163 = vld [vmem:[%s4135 + $0x6c] sm:$0xf]
        %v4192 = vunpack.c.l.b16 %v4136
        %v4193 = vunpack.c.l.b16 %v4137
        %v4194 = vunpack.c.l.b16 %v4138
        %v4195 = vunpack.c.l.b16 %v4139
        %v4196 = vunpack.c.l.b16 %v4140
        %v4197 = vunpack.c.l.b16 %v4141
        %v4198 = vunpack.c.l.b16 %v4142
        %v4199 = vunpack.c.l.b16 %v4143
        %v4200 = vunpack.c.l.b16 %v4144
        %v4201 = vunpack.c.l.b16 %v4145
        %v4202 = vunpack.c.l.b16 %v4146
        %v4203 = vunpack.c.l.b16 %v4147
        %v4204 = vunpack.c.l.b16 %v4148
        %v4205 = vunpack.c.l.b16 %v4149
        %v4206 = vunpack.c.l.b16 %v4150
        %v4207 = vunpack.c.l.b16 %v4151
        %v4208 = vunpack.c.l.b16 %v4152
        %v4209 = vunpack.c.l.b16 %v4153
        %v4210 = vunpack.c.l.b16 %v4154
        %v4211 = vunpack.c.l.b16 %v4155
        %v4212 = vunpack.c.l.b16 %v4156
        %v4213 = vunpack.c.l.b16 %v4157
        %v4214 = vunpack.c.l.b16 %v4158
        %v4215 = vunpack.c.l.b16 %v4159
        %v4216 = vunpack.c.l.b16 %v4160
        %v4217 = vunpack.c.l.b16 %v4161
        %v4218 = vunpack.c.l.b16 %v4162
        %v4219 = vunpack.c.l.b16 %v4163
        %v4220 = vpack.c.b16 %v4193, %v4192
        %v4221 = vpack.c.b16 %v4195, %v4194
        %v4222 = vpack.c.b16 %v4197, %v4196
        %v4223 = vpack.c.b16 %v4199, %v4198
        %v4224 = vpack.c.b16 %v4201, %v4200
        %v4225 = vpack.c.b16 %v4203, %v4202
        %v4226 = vpack.c.b16 %v4205, %v4204
        %v4227 = vpack.c.b16 %v4207, %v4206
        %v4228 = vpack.c.b16 %v4209, %v4208
        %v4229 = vpack.c.b16 %v4211, %v4210
        %v4230 = vpack.c.b16 %v4213, %v4212
        %v4231 = vpack.c.b16 %v4215, %v4214
        %v4232 = vpack.c.b16 %v4217, %v4216
        %v4233 = vpack.c.b16 %v4219, %v4218
        %v4249 = vsel %vm1541, %v4122, 0
        %v4252 = vsel %vm1541, %v4124, 0
        %v4255 = vsel %vm1541, %v4126, 0
        %v4258 = vsel %vm1541, %v4128, 0
        %v4261 = vsel %vm1541, %v4130, 0
        %v4264 = vsel %vm1541, %v4132, 0
        %v4267 = vsel %vm1541, %v4134, 0
        %4269 = vmatpush.bf16.msra.mxu0 %v4227
        %4270 = vmatpush.bf16.msra.mxu0 %v4226
        %4271 = vmatpush.bf16.msra.mxu0 %v4225
        %4272 = vmatpush.bf16.msra.mxu0 %v4224
        %4273 = vmatpush.bf16.msra.mxu0 %v4223
        %4274 = vmatpush.bf16.msra.mxu0 %v4222
        %4275 = vmatpush.bf16.msra.mxu0 %v4221
        %4276 = vmatpush.bf16.msra.mxu0 %v4220
        %4277 = vmatmul.bf16.gmra.mxu0 %v4121
        %v4278 = vpop.f32.mrf.mxu0
        %v4279 = vadd.f32 0.0, %v4278
        %v4280 = vpop.f32.mrf.mxu0
        %v4281 = vadd.f32 0.0, %v4280
        %4282 = vmatmul.bf16.gmra.mxu0 %v4123
        %v4283 = vpop.f32.mrf.mxu0
        %v4284 = vadd.f32 0.0, %v4283
        %v4285 = vpop.f32.mrf.mxu0
        %v4286 = vadd.f32 0.0, %v4285
        %4287 = vmatmul.bf16.gmra.mxu0 %v4125
        %v4288 = vpop.f32.mrf.mxu0
        %v4289 = vadd.f32 0.0, %v4288
        %v4290 = vpop.f32.mrf.mxu0
        %v4291 = vadd.f32 0.0, %v4290
        %4292 = vmatmul.bf16.gmra.mxu0 %v4127
        %v4293 = vpop.f32.mrf.mxu0
        %v4294 = vadd.f32 0.0, %v4293
        %v4295 = vpop.f32.mrf.mxu0
        %v4296 = vadd.f32 0.0, %v4295
        %4297 = vmatmul.bf16.gmra.mxu0 %v4129
        %v4298 = vpop.f32.mrf.mxu0
        %v4299 = vadd.f32 0.0, %v4298
        %v4300 = vpop.f32.mrf.mxu0
        %v4301 = vadd.f32 0.0, %v4300
        %4302 = vmatmul.bf16.gmra.mxu0 %v4131
        %v4303 = vpop.f32.mrf.mxu0
        %v4304 = vadd.f32 0.0, %v4303
        %v4305 = vpop.f32.mrf.mxu0
        %v4306 = vadd.f32 0.0, %v4305
        %4307 = vmatmul.bf16.gmra.mxu0 %v4133
        %v4308 = vpop.f32.mrf.mxu0
        %v4309 = vadd.f32 0.0, %v4308
        %v4310 = vpop.f32.mrf.mxu0
        %v4311 = vadd.f32 0.0, %v4310
        %4312 = vdwg.mxu0
        %4313 = vmatpush.bf16.msra.mxu0 0
        %4314 = vmatpush.bf16.msra.mxu0 0
        %4315 = vmatpush.bf16.msra.mxu0 %v4233
        %4316 = vmatpush.bf16.msra.mxu0 %v4232
        %4317 = vmatpush.bf16.msra.mxu0 %v4231
        %4318 = vmatpush.bf16.msra.mxu0 %v4230
        %4319 = vmatpush.bf16.msra.mxu0 %v4229
        %4320 = vmatpush.bf16.msra.mxu0 %v4228
        %4321 = vmatmul.bf16.gmra.mxu0 %v4249
        %v4322 = vpop.f32.mrf.mxu0
        %v4323 = vadd.f32 %v4279, %v4322
        %v4324 = vpop.f32.mrf.mxu0
        %v4325 = vadd.f32 %v4281, %v4324
        %4326 = vmatmul.bf16.gmra.mxu0 %v4252
        %v4327 = vpop.f32.mrf.mxu0
        %v4328 = vadd.f32 %v4284, %v4327
        %v4329 = vpop.f32.mrf.mxu0
        %v4330 = vadd.f32 %v4286, %v4329
        %4331 = vmatmul.bf16.gmra.mxu0 %v4255
        %v4332 = vpop.f32.mrf.mxu0
        %v4333 = vadd.f32 %v4289, %v4332
        %v4334 = vpop.f32.mrf.mxu0
        %v4335 = vadd.f32 %v4291, %v4334
        %4336 = vmatmul.bf16.gmra.mxu0 %v4258
        %v4337 = vpop.f32.mrf.mxu0
        %v4338 = vadd.f32 %v4294, %v4337
        %v4339 = vpop.f32.mrf.mxu0
        %v4340 = vadd.f32 %v4296, %v4339
        %4341 = vmatmul.bf16.gmra.mxu0 %v4261
        %v4342 = vpop.f32.mrf.mxu0
        %v4343 = vadd.f32 %v4299, %v4342
        %v4344 = vpop.f32.mrf.mxu0
        %v4345 = vadd.f32 %v4301, %v4344
        %4346 = vmatmul.bf16.gmra.mxu0 %v4264
        %v4347 = vpop.f32.mrf.mxu0
        %v4348 = vadd.f32 %v4304, %v4347
        %v4349 = vpop.f32.mrf.mxu0
        %v4350 = vadd.f32 %v4306, %v4349
        %4351 = vmatmul.bf16.gmra.mxu0 %v4267
        %v4352 = vpop.f32.mrf.mxu0
        %v4353 = vadd.f32 %v4309, %v4352
        %v4354 = vpop.f32.mrf.mxu0
        %v4355 = vadd.f32 %v4311, %v4354
        %4356 = vdwg.mxu0
        %v4385 = vunpack.c.l.b16 %v3775
        %v4386 = vunpack.c.l.b16 %v3776
        %v4387 = vunpack.c.l.b16 %v3777
        %v4388 = vunpack.c.l.b16 %v3778
        %v4389 = vunpack.c.l.b16 %v3779
        %v4390 = vunpack.c.l.b16 %v3780
        %v4391 = vunpack.c.l.b16 %v3781
        %v4392 = vunpack.c.l.b16 %v3782
        %v4393 = vunpack.c.l.b16 %v3783
        %v4394 = vunpack.c.l.b16 %v3784
        %v4395 = vunpack.c.l.b16 %v3785
        %v4396 = vunpack.c.l.b16 %v3786
        %v4397 = vunpack.c.l.b16 %v3787
        %v4398 = vunpack.c.l.b16 %v3788
        %v4399 = vunpack.c.l.b16 %v3789
        %v4400 = vunpack.c.l.b16 %v3790
        %v4401 = vunpack.c.l.b16 %v3791
        %v4402 = vunpack.c.l.b16 %v3792
        %v4403 = vunpack.c.l.b16 %v3793
        %v4404 = vunpack.c.l.b16 %v3794
        %v4405 = vunpack.c.l.b16 %v3795
        %v4406 = vunpack.c.l.b16 %v3796
        %v4407 = vunpack.c.l.b16 %v3797
        %v4408 = vunpack.c.l.b16 %v3798
        %v4409 = vunpack.c.l.b16 %v3799
        %v4410 = vunpack.c.l.b16 %v3800
        %v4411 = vunpack.c.l.b16 %v3801
        %v4412 = vunpack.c.l.b16 %v3802
        %v4413 = vpack.c.b16 %v4386, %v4385
        %v4414 = vpack.c.b16 %v4388, %v4387
        %v4415 = vpack.c.b16 %v4390, %v4389
        %v4416 = vpack.c.b16 %v4392, %v4391
        %v4417 = vpack.c.b16 %v4394, %v4393
        %v4418 = vpack.c.b16 %v4396, %v4395
        %v4419 = vpack.c.b16 %v4398, %v4397
        %v4420 = vpack.c.b16 %v4400, %v4399
        %v4421 = vpack.c.b16 %v4402, %v4401
        %v4422 = vpack.c.b16 %v4404, %v4403
        %v4423 = vpack.c.b16 %v4406, %v4405
        %v4424 = vpack.c.b16 %v4408, %v4407
        %v4425 = vpack.c.b16 %v4410, %v4409
        %v4426 = vpack.c.b16 %v4412, %v4411
        %4441 = vmatpush.bf16.msra.mxu0 %v4420
        %4442 = vmatpush.bf16.msra.mxu0 %v4419
        %4443 = vmatpush.bf16.msra.mxu0 %v4418
        %4444 = vmatpush.bf16.msra.mxu0 %v4417
        %4445 = vmatpush.bf16.msra.mxu0 %v4416
        %4446 = vmatpush.bf16.msra.mxu0 %v4415
        %4447 = vmatpush.bf16.msra.mxu0 %v4414
        %4448 = vmatpush.bf16.msra.mxu0 %v4413
        %4449 = vmatmul.bf16.gmra.mxu0 %v3345
        %v4450 = vpop.f32.mrf.mxu0
        %v4451 = vadd.f32 %v4323, %v4450
        %v4452 = vpop.f32.mrf.mxu0
        %v4453 = vadd.f32 %v4325, %v4452
        %4454 = vmatmul.bf16.gmra.mxu0 %v3347
        %v4455 = vpop.f32.mrf.mxu0
        %v4456 = vadd.f32 %v4328, %v4455
        %v4457 = vpop.f32.mrf.mxu0
        %v4458 = vadd.f32 %v4330, %v4457
        %4459 = vmatmul.bf16.gmra.mxu0 %v3349
        %v4460 = vpop.f32.mrf.mxu0
        %v4461 = vadd.f32 %v4333, %v4460
        %v4462 = vpop.f32.mrf.mxu0
        %v4463 = vadd.f32 %v4335, %v4462
        %4464 = vmatmul.bf16.gmra.mxu0 %v3351
        %v4465 = vpop.f32.mrf.mxu0
        %v4466 = vadd.f32 %v4338, %v4465
        %v4467 = vpop.f32.mrf.mxu0
        %v4468 = vadd.f32 %v4340, %v4467
        %4469 = vmatmul.bf16.gmra.mxu0 %v3353
        %v4470 = vpop.f32.mrf.mxu0
        %v4471 = vadd.f32 %v4343, %v4470
        %v4472 = vpop.f32.mrf.mxu0
        %v4473 = vadd.f32 %v4345, %v4472
        %4474 = vmatmul.bf16.gmra.mxu0 %v3355
        %v4475 = vpop.f32.mrf.mxu0
        %v4476 = vadd.f32 %v4348, %v4475
        %v4477 = vpop.f32.mrf.mxu0
        %v4478 = vadd.f32 %v4350, %v4477
        %4479 = vmatmul.bf16.gmra.mxu0 %v3357
        %v4480 = vpop.f32.mrf.mxu0
        %v4481 = vadd.f32 %v4353, %v4480
        %v4482 = vpop.f32.mrf.mxu0
        %v4483 = vadd.f32 %v4355, %v4482
        %4484 = vdwg.mxu0
        %4485 = vmatpush.bf16.msra.mxu0 0
        %4486 = vmatpush.bf16.msra.mxu0 0
        %4487 = vmatpush.bf16.msra.mxu0 %v4426
        %4488 = vmatpush.bf16.msra.mxu0 %v4425
        %4489 = vmatpush.bf16.msra.mxu0 %v4424
        %4490 = vmatpush.bf16.msra.mxu0 %v4423
        %4491 = vmatpush.bf16.msra.mxu0 %v4422
        %4492 = vmatpush.bf16.msra.mxu0 %v4421
        %4493 = vmatmul.bf16.gmra.mxu0 %v3473
        %v4494 = vpop.f32.mrf.mxu0
        %v4495 = vadd.f32 %v4451, %v4494
        %v4496 = vpop.f32.mrf.mxu0
        %v4497 = vadd.f32 %v4453, %v4496
        %4498 = vmatmul.bf16.gmra.mxu0 %v3476
        %v4499 = vpop.f32.mrf.mxu0
        %v4500 = vadd.f32 %v4456, %v4499
        %v4501 = vpop.f32.mrf.mxu0
        %v4502 = vadd.f32 %v4458, %v4501
        %4503 = vmatmul.bf16.gmra.mxu0 %v3479
        %v4504 = vpop.f32.mrf.mxu0
        %v4505 = vadd.f32 %v4461, %v4504
        %v4506 = vpop.f32.mrf.mxu0
        %v4507 = vadd.f32 %v4463, %v4506
        %4508 = vmatmul.bf16.gmra.mxu0 %v3482
        %v4509 = vpop.f32.mrf.mxu0
        %v4510 = vadd.f32 %v4466, %v4509
        %v4511 = vpop.f32.mrf.mxu0
        %v4512 = vadd.f32 %v4468, %v4511
        %4513 = vmatmul.bf16.gmra.mxu0 %v3485
        %v4514 = vpop.f32.mrf.mxu0
        %v4515 = vadd.f32 %v4471, %v4514
        %v4516 = vpop.f32.mrf.mxu0
        %v4517 = vadd.f32 %v4473, %v4516
        %4518 = vmatmul.bf16.gmra.mxu0 %v3488
        %v4519 = vpop.f32.mrf.mxu0
        %v4520 = vadd.f32 %v4476, %v4519
        %v4521 = vpop.f32.mrf.mxu0
        %v4522 = vadd.f32 %v4478, %v4521
        %4523 = vmatmul.bf16.gmra.mxu0 %v3491
        %v4524 = vpop.f32.mrf.mxu0
        %v4525 = vadd.f32 %v4481, %v4524
        %v4526 = vpop.f32.mrf.mxu0
        %v4527 = vadd.f32 %v4483, %v4526
        %4528 = vdwg.mxu0
        %4543 = vrot.lane.b32.xlu0 %v4495, 28
        %v4544 = vpop.permute.xlu0 %4543
        %4545 = vrot.lane.b32.xlu0 %v4497, 28
        %v4546 = vpop.permute.xlu0 %4545
        %4547 = vrot.lane.b32.xlu0 %v4500, 28
        %v4548 = vpop.permute.xlu0 %4547
        %4549 = vrot.lane.b32.xlu0 %v4502, 28
        %v4550 = vpop.permute.xlu0 %4549
        %4551 = vrot.lane.b32.xlu0 %v4505, 28
        %v4552 = vpop.permute.xlu0 %4551
        %4553 = vrot.lane.b32.xlu0 %v4507, 28
        %v4554 = vpop.permute.xlu0 %4553
        %4555 = vrot.lane.b32.xlu0 %v4510, 28
        %v4556 = vpop.permute.xlu0 %4555
        %4557 = vrot.lane.b32.xlu0 %v4512, 28
        %v4558 = vpop.permute.xlu0 %4557
        %4559 = vrot.lane.b32.xlu0 %v4515, 28
        %v4560 = vpop.permute.xlu0 %4559
        %4561 = vrot.lane.b32.xlu0 %v4517, 28
        %v4562 = vpop.permute.xlu0 %4561
        %4563 = vrot.lane.b32.xlu0 %v4520, 28
        %v4564 = vpop.permute.xlu0 %4563
        %4565 = vrot.lane.b32.xlu0 %v4522, 28
        %v4566 = vpop.permute.xlu0 %4565
        %4567 = vrot.lane.b32.xlu0 %v4525, 28
        %v4568 = vpop.permute.xlu0 %4567
        %4569 = vrot.lane.b32.xlu0 %v4527, 28
        %v4570 = vpop.permute.xlu0 %4569
        %vm4585 = vcmask 228352
        %v4586 = vsel %vm4585, %v3740, %v4544
        %v4587 = vsel %vm4585, %v3742, %v4546
        %v4588 = vsel %vm4585, %v3745, %v4548
        %v4589 = vsel %vm4585, %v3747, %v4550
        %v4590 = vsel %vm4585, %v3750, %v4552
        %v4591 = vsel %vm4585, %v3752, %v4554
        %v4592 = vsel %vm4585, %v3755, %v4556
        %v4593 = vsel %vm4585, %v3757, %v4558
        %v4594 = vsel %vm4585, %v3760, %v4560
        %v4595 = vsel %vm4585, %v3762, %v4562
        %v4596 = vsel %vm4585, %v3765, %v4564
        %v4597 = vsel %vm4585, %v3767, %v4566
        %v4598 = vsel %vm4585, %v3770, %v4568
        %v4599 = vsel %vm4585, %v3772, %v4570
        %s4600 = sld [smem:[#allocation3]]
        %v4601 = vstv %s4600
        %v4602 = vadd.f32 %v4586, %v4601
        %v4603 = vadd.f32 %v4587, %v4601
        %v4604 = vadd.f32 %v4588, %v4601
        %v4605 = vadd.f32 %v4589, %v4601
        %v4606 = vadd.f32 %v4590, %v4601
        %v4607 = vadd.f32 %v4591, %v4601
        %v4608 = vadd.f32 %v4592, %v4601
        %v4609 = vadd.f32 %v4593, %v4601
        %v4610 = vadd.f32 %v4594, %v4601
        %v4611 = vadd.f32 %v4595, %v4601
        %v4612 = vadd.f32 %v4596, %v4601
        %v4613 = vadd.f32 %v4597, %v4601
        %v4614 = vadd.f32 %v4598, %v4601
        %v4615 = vadd.f32 %v4599, %v4601
        %v4616 = vxor.u32 %v4602, 2147483648
        %v4617 = vxor.u32 %v4603, 2147483648
        %v4618 = vxor.u32 %v4604, 2147483648
        %v4619 = vxor.u32 %v4605, 2147483648
        %v4620 = vxor.u32 %v4606, 2147483648
        %v4621 = vxor.u32 %v4607, 2147483648
        %v4622 = vxor.u32 %v4608, 2147483648
        %v4623 = vxor.u32 %v4609, 2147483648
        %v4624 = vxor.u32 %v4610, 2147483648
        %v4625 = vxor.u32 %v4611, 2147483648
        %v4626 = vxor.u32 %v4612, 2147483648
        %v4627 = vxor.u32 %v4613, 2147483648
        %v4628 = vxor.u32 %v4614, 2147483648
        %v4629 = vxor.u32 %v4615, 2147483648
        %v4630 = vmul.f32 %v4616, 1.442695
        %v4631 = vpow.pop %v4630
        %v4632 = vmul.f32 %v4617, 1.442695
        %v4633 = vpow.pop %v4632
        %v4634 = vmul.f32 %v4618, 1.442695
        %v4635 = vpow.pop %v4634
        %v4636 = vmul.f32 %v4619, 1.442695
        %v4637 = vpow.pop %v4636
        %v4638 = vmul.f32 %v4620, 1.442695
        %v4639 = vpow.pop %v4638
        %v4640 = vmul.f32 %v4621, 1.442695
        %v4641 = vpow.pop %v4640
        %v4642 = vmul.f32 %v4622, 1.442695
        %v4643 = vpow.pop %v4642
        %v4644 = vmul.f32 %v4623, 1.442695
        %v4645 = vpow.pop %v4644
        %v4646 = vmul.f32 %v4624, 1.442695
        %v4647 = vpow.pop %v4646
        %v4648 = vmul.f32 %v4625, 1.442695
        %v4649 = vpow.pop %v4648
        %v4650 = vmul.f32 %v4626, 1.442695
        %v4651 = vpow.pop %v4650
        %v4652 = vmul.f32 %v4627, 1.442695
        %v4653 = vpow.pop %v4652
        %v4654 = vmul.f32 %v4628, 1.442695
        %v4655 = vpow.pop %v4654
        %v4656 = vmul.f32 %v4629, 1.442695
        %v4657 = vpow.pop %v4656
        %v4658 = vadd.f32 %v4631, 1.0
        %v4659 = vadd.f32 %v4633, 1.0
        %v4660 = vadd.f32 %v4635, 1.0
        %v4661 = vadd.f32 %v4637, 1.0
        %v4662 = vadd.f32 %v4639, 1.0
        %v4663 = vadd.f32 %v4641, 1.0
        %v4664 = vadd.f32 %v4643, 1.0
        %v4665 = vadd.f32 %v4645, 1.0
        %v4666 = vadd.f32 %v4647, 1.0
        %v4667 = vadd.f32 %v4649, 1.0
        %v4668 = vadd.f32 %v4651, 1.0
        %v4669 = vadd.f32 %v4653, 1.0
        %v4670 = vadd.f32 %v4655, 1.0
        %v4671 = vadd.f32 %v4657, 1.0
        %v4672 = vrcp.pop %v4658
        %v4673 = vmul.f32 %v4658, %v4672
        %v4674 = vsub.f32 1.0, %v4673
        %v4675 = vmul.f32 %v4672, %v4674
        %v4676 = vadd.f32 %v4672, %v4675
        %vm4677 = vweird.f32 %v4658
        %vm4678 = vweird.f32 %v4672
        %vm4679 = vmor %vm4677, %vm4678
        %v4680 = vsel %vm4679, %v4672, %v4676
        %v4681 = vand.u32 2147483647, %v4658
        %vm4682 = vcmp.eq.f32.partialorder %v4681, 8.507059e+37
        %v4683 = vand.u32 %v4658, 2147483648
        %v4684 = vor.u32 1.1754944e-38, %v4683
        %v4685 = vsel %vm4682, %v4684, %v4680
        %v4686 = vmul.f32 1.0, %v4685
        %v4687 = vrcp.pop %v4659
        %v4688 = vmul.f32 %v4659, %v4687
        %v4689 = vsub.f32 1.0, %v4688
        %v4690 = vmul.f32 %v4687, %v4689
        %v4691 = vadd.f32 %v4687, %v4690
        %vm4692 = vweird.f32 %v4659
        %vm4693 = vweird.f32 %v4687
        %vm4694 = vmor %vm4692, %vm4693
        %v4695 = vsel %vm4694, %v4687, %v4691
        %v4696 = vand.u32 2147483647, %v4659
        %vm4697 = vcmp.eq.f32.partialorder %v4696, 8.507059e+37
        %v4698 = vand.u32 %v4659, 2147483648
        %v4699 = vor.u32 1.1754944e-38, %v4698
        %v4700 = vsel %vm4697, %v4699, %v4695
        %v4701 = vmul.f32 1.0, %v4700
        %v4702 = vrcp.pop %v4660
        %v4703 = vmul.f32 %v4660, %v4702
        %v4704 = vsub.f32 1.0, %v4703
        %v4705 = vmul.f32 %v4702, %v4704
        %v4706 = vadd.f32 %v4702, %v4705
        %vm4707 = vweird.f32 %v4660
        %vm4708 = vweird.f32 %v4702
        %vm4709 = vmor %vm4707, %vm4708
        %v4710 = vsel %vm4709, %v4702, %v4706
        %v4711 = vand.u32 2147483647, %v4660
        %vm4712 = vcmp.eq.f32.partialorder %v4711, 8.507059e+37
        %v4713 = vand.u32 %v4660, 2147483648
        %v4714 = vor.u32 1.1754944e-38, %v4713
        %v4715 = vsel %vm4712, %v4714, %v4710
        %v4716 = vmul.f32 1.0, %v4715
        %v4717 = vrcp.pop %v4661
        %v4718 = vmul.f32 %v4661, %v4717
        %v4719 = vsub.f32 1.0, %v4718
        %v4720 = vmul.f32 %v4717, %v4719
        %v4721 = vadd.f32 %v4717, %v4720
        %vm4722 = vweird.f32 %v4661
        %vm4723 = vweird.f32 %v4717
        %vm4724 = vmor %vm4722, %vm4723
        %v4725 = vsel %vm4724, %v4717, %v4721
        %v4726 = vand.u32 2147483647, %v4661
        %vm4727 = vcmp.eq.f32.partialorder %v4726, 8.507059e+37
        %v4728 = vand.u32 %v4661, 2147483648
        %v4729 = vor.u32 1.1754944e-38, %v4728
        %v4730 = vsel %vm4727, %v4729, %v4725
        %v4731 = vmul.f32 1.0, %v4730
        %v4732 = vrcp.pop %v4662
        %v4733 = vmul.f32 %v4662, %v4732
        %v4734 = vsub.f32 1.0, %v4733
        %v4735 = vmul.f32 %v4732, %v4734
        %v4736 = vadd.f32 %v4732, %v4735
        %vm4737 = vweird.f32 %v4662
        %vm4738 = vweird.f32 %v4732
        %vm4739 = vmor %vm4737, %vm4738
        %v4740 = vsel %vm4739, %v4732, %v4736
        %v4741 = vand.u32 2147483647, %v4662
        %vm4742 = vcmp.eq.f32.partialorder %v4741, 8.507059e+37
        %v4743 = vand.u32 %v4662, 2147483648
        %v4744 = vor.u32 1.1754944e-38, %v4743
        %v4745 = vsel %vm4742, %v4744, %v4740
        %v4746 = vmul.f32 1.0, %v4745
        %v4747 = vrcp.pop %v4663
        %v4748 = vmul.f32 %v4663, %v4747
        %v4749 = vsub.f32 1.0, %v4748
        %v4750 = vmul.f32 %v4747, %v4749
        %v4751 = vadd.f32 %v4747, %v4750
        %vm4752 = vweird.f32 %v4663
        %vm4753 = vweird.f32 %v4747
        %vm4754 = vmor %vm4752, %vm4753
        %v4755 = vsel %vm4754, %v4747, %v4751
        %v4756 = vand.u32 2147483647, %v4663
        %vm4757 = vcmp.eq.f32.partialorder %v4756, 8.507059e+37
        %v4758 = vand.u32 %v4663, 2147483648
        %v4759 = vor.u32 1.1754944e-38, %v4758
        %v4760 = vsel %vm4757, %v4759, %v4755
        %v4761 = vmul.f32 1.0, %v4760
        %v4762 = vrcp.pop %v4664
        %v4763 = vmul.f32 %v4664, %v4762
        %v4764 = vsub.f32 1.0, %v4763
        %v4765 = vmul.f32 %v4762, %v4764
        %v4766 = vadd.f32 %v4762, %v4765
        %vm4767 = vweird.f32 %v4664
        %vm4768 = vweird.f32 %v4762
        %vm4769 = vmor %vm4767, %vm4768
        %v4770 = vsel %vm4769, %v4762, %v4766
        %v4771 = vand.u32 2147483647, %v4664
        %vm4772 = vcmp.eq.f32.partialorder %v4771, 8.507059e+37
        %v4773 = vand.u32 %v4664, 2147483648
        %v4774 = vor.u32 1.1754944e-38, %v4773
        %v4775 = vsel %vm4772, %v4774, %v4770
        %v4776 = vmul.f32 1.0, %v4775
        %v4777 = vrcp.pop %v4665
        %v4778 = vmul.f32 %v4665, %v4777
        %v4779 = vsub.f32 1.0, %v4778
        %v4780 = vmul.f32 %v4777, %v4779
        %v4781 = vadd.f32 %v4777, %v4780
        %vm4782 = vweird.f32 %v4665
        %vm4783 = vweird.f32 %v4777
        %vm4784 = vmor %vm4782, %vm4783
        %v4785 = vsel %vm4784, %v4777, %v4781
        %v4786 = vand.u32 2147483647, %v4665
        %vm4787 = vcmp.eq.f32.partialorder %v4786, 8.507059e+37
        %v4788 = vand.u32 %v4665, 2147483648
        %v4789 = vor.u32 1.1754944e-38, %v4788
        %v4790 = vsel %vm4787, %v4789, %v4785
        %v4791 = vmul.f32 1.0, %v4790
        %v4792 = vrcp.pop %v4666
        %v4793 = vmul.f32 %v4666, %v4792
        %v4794 = vsub.f32 1.0, %v4793
        %v4795 = vmul.f32 %v4792, %v4794
        %v4796 = vadd.f32 %v4792, %v4795
        %vm4797 = vweird.f32 %v4666
        %vm4798 = vweird.f32 %v4792
        %vm4799 = vmor %vm4797, %vm4798
        %v4800 = vsel %vm4799, %v4792, %v4796
        %v4801 = vand.u32 2147483647, %v4666
        %vm4802 = vcmp.eq.f32.partialorder %v4801, 8.507059e+37
        %v4803 = vand.u32 %v4666, 2147483648
        %v4804 = vor.u32 1.1754944e-38, %v4803
        %v4805 = vsel %vm4802, %v4804, %v4800
        %v4806 = vmul.f32 1.0, %v4805
        %v4807 = vrcp.pop %v4667
        %v4808 = vmul.f32 %v4667, %v4807
        %v4809 = vsub.f32 1.0, %v4808
        %v4810 = vmul.f32 %v4807, %v4809
        %v4811 = vadd.f32 %v4807, %v4810
        %vm4812 = vweird.f32 %v4667
        %vm4813 = vweird.f32 %v4807
        %vm4814 = vmor %vm4812, %vm4813
        %v4815 = vsel %vm4814, %v4807, %v4811
        %v4816 = vand.u32 2147483647, %v4667
        %vm4817 = vcmp.eq.f32.partialorder %v4816, 8.507059e+37
        %v4818 = vand.u32 %v4667, 2147483648
        %v4819 = vor.u32 1.1754944e-38, %v4818
        %v4820 = vsel %vm4817, %v4819, %v4815
        %v4821 = vmul.f32 1.0, %v4820
        %v4822 = vrcp.pop %v4668
        %v4823 = vmul.f32 %v4668, %v4822
        %v4824 = vsub.f32 1.0, %v4823
        %v4825 = vmul.f32 %v4822, %v4824
        %v4826 = vadd.f32 %v4822, %v4825
        %vm4827 = vweird.f32 %v4668
        %vm4828 = vweird.f32 %v4822
        %vm4829 = vmor %vm4827, %vm4828
        %v4830 = vsel %vm4829, %v4822, %v4826
        %v4831 = vand.u32 2147483647, %v4668
        %vm4832 = vcmp.eq.f32.partialorder %v4831, 8.507059e+37
        %v4833 = vand.u32 %v4668, 2147483648
        %v4834 = vor.u32 1.1754944e-38, %v4833
        %v4835 = vsel %vm4832, %v4834, %v4830
        %v4836 = vmul.f32 1.0, %v4835
        %v4837 = vrcp.pop %v4669
        %v4838 = vmul.f32 %v4669, %v4837
        %v4839 = vsub.f32 1.0, %v4838
        %v4840 = vmul.f32 %v4837, %v4839
        %v4841 = vadd.f32 %v4837, %v4840
        %vm4842 = vweird.f32 %v4669
        %vm4843 = vweird.f32 %v4837
        %vm4844 = vmor %vm4842, %vm4843
        %v4845 = vsel %vm4844, %v4837, %v4841
        %v4846 = vand.u32 2147483647, %v4669
        %vm4847 = vcmp.eq.f32.partialorder %v4846, 8.507059e+37
        %v4848 = vand.u32 %v4669, 2147483648
        %v4849 = vor.u32 1.1754944e-38, %v4848
        %v4850 = vsel %vm4847, %v4849, %v4845
        %v4851 = vmul.f32 1.0, %v4850
        %v4852 = vrcp.pop %v4670
        %v4853 = vmul.f32 %v4670, %v4852
        %v4854 = vsub.f32 1.0, %v4853
        %v4855 = vmul.f32 %v4852, %v4854
        %v4856 = vadd.f32 %v4852, %v4855
        %vm4857 = vweird.f32 %v4670
        %vm4858 = vweird.f32 %v4852
        %vm4859 = vmor %vm4857, %vm4858
        %v4860 = vsel %vm4859, %v4852, %v4856
        %v4861 = vand.u32 2147483647, %v4670
        %vm4862 = vcmp.eq.f32.partialorder %v4861, 8.507059e+37
        %v4863 = vand.u32 %v4670, 2147483648
        %v4864 = vor.u32 1.1754944e-38, %v4863
        %v4865 = vsel %vm4862, %v4864, %v4860
        %v4866 = vmul.f32 1.0, %v4865
        %v4867 = vrcp.pop %v4671
        %v4868 = vmul.f32 %v4671, %v4867
        %v4869 = vsub.f32 1.0, %v4868
        %v4870 = vmul.f32 %v4867, %v4869
        %v4871 = vadd.f32 %v4867, %v4870
        %vm4872 = vweird.f32 %v4671
        %vm4873 = vweird.f32 %v4867
        %vm4874 = vmor %vm4872, %vm4873
        %v4875 = vsel %vm4874, %v4867, %v4871
        %v4876 = vand.u32 2147483647, %v4671
        %vm4877 = vcmp.eq.f32.partialorder %v4876, 8.507059e+37
        %v4878 = vand.u32 %v4671, 2147483648
        %v4879 = vor.u32 1.1754944e-38, %v4878
        %v4880 = vsel %vm4877, %v4879, %v4875
        %v4881 = vmul.f32 1.0, %v4880
        %4882 = vst.msk [vmem:[%s300] sm:$0xff] %vm2718, %v4686
        %4883 = vst.msk [vmem:[%s300 + $0x8] sm:$0xff] %vm2718, %v4701
        %4884 = vst.msk [vmem:[%s300 + $0x10] sm:$0xff] %vm2718, %v4716
        %4885 = vst.msk [vmem:[%s300 + $0x18] sm:$0xff] %vm2718, %v4731
        %4886 = vst.msk [vmem:[%s300 + $0x20] sm:$0xff] %vm2718, %v4746
        %4887 = vst.msk [vmem:[%s300 + $0x28] sm:$0xff] %vm2718, %v4761
        %4888 = vst.msk [vmem:[%s300 + $0x30] sm:$0xff] %vm2718, %v4776
        %4889 = vst.msk [vmem:[%s300 + $0x38] sm:$0xff] %vm2718, %v4791
        %4890 = vst.msk [vmem:[%s300 + $0x40] sm:$0xff] %vm2718, %v4806
        %4891 = vst.msk [vmem:[%s300 + $0x48] sm:$0xff] %vm2718, %v4821
        %4892 = vst.msk [vmem:[%s300 + $0x50] sm:$0xff] %vm2718, %v4836
        %4893 = vst.msk [vmem:[%s300 + $0x58] sm:$0xff] %vm2718, %v4851
        %4894 = vst.msk [vmem:[%s300 + $0x60] sm:$0xff] %vm2718, %v4866
        %4895 = vst.msk [vmem:[%s300 + $0x68] sm:$0xff] %vm2718, %v4881
        %s4896 = smul.u32 14, %s21
        %p4897 = scmp.lt.s32.totalorder %s4896, 27
        %s4898 = scalar_select %p4897, %s4896, 27
        %s4899 = smul.addr %s4898, 8
        %s4900 = scalar_lea.vmem %s8, %s4899
        // Predicated region
        $region57: #{decoder_forward.1} parent=51 // pred_check
          %p4901 = pneg %p207
        $region58: #{decoder_forward.1} parent=51 // pred_check_branch
          %4903 = sbr.rel (%p4901) target = $region60
        $region59: #{decoder_forward.1} parent=51 // pred_region
          %s4904 = smul.u32 14, %s21
        $region60: #{decoder_forward.1} parent=51 // pred_fallthru
          _
      $region52: #{decoder_forward.1} parent=5 // pred_fallthru
        _
      %p4905 = scmp.le.s32.totalorder 2, %s16
      // Predicated region
      $region61: #{decoder_forward.1} parent=5 // pred_check
        %p4906 = pneg %p4905
      $region62: #{decoder_forward.1} parent=5 // pred_check_branch
        %4908 = sbr.rel (%p4906) target = $region64
      $region63: #{decoder_forward.1} parent=5 // pred_region
        %s4909 = ssub.s32 %s16, 2
        // Predicated region
        $region65: #{decoder_forward.1} parent=63 // pred_check
          %p4910 = pneg %p213
        $region66: #{decoder_forward.1} parent=63 // pred_check_branch
          %4912 = sbr.rel (%p4910) target = $region68
        $region67: #{decoder_forward.1} parent=63 // pred_region
          %s4913 = smul.u32 14, %s22
          %p4914 = scmp.lt.s32.totalorder %s4913, 27
          %s4915 = scalar_select %p4914, %s4913, 27
          %s4916 = smul.addr %s4915, 8
          %s4917 = scalar_lea.vmem %s8, %s4916
        $region68: #{decoder_forward.1} parent=63 // pred_fallthru
          _
      $region64: #{decoder_forward.1} parent=5 // pred_fallthru
        _
    $region6: #{decoder_forward.1} parent=1 // loop_footer
      %s20 = sadd.s32 1, %s16
    $region7: #{decoder_forward.1} parent=1 // loop_footer_branch
      %15 = sbr.rel target = $region3
    $region8: #{decoder_forward.1} parent=1 // loop_exit
      _
    %4918 = vsyncpa [#allocation5], 1
    %s4919 = scalar_lea.sflag [#allocation5], 1
    %4920 = vsyncpa %s4919, 1

</llo_original>
